<compile_context>
chip_gen: v6e
topology: v6e:2x2x1
jax: 0.10.0
libtpu: 0.0.40
codegen_flags: <defaults>
</compile_context>

<pallas_src>
import numpy as np
import jax
import jax.numpy as jnp
from jax import lax
from jax.experimental import pallas as pl
from jax.experimental.pallas import tpu as pltpu

N_HEAD = 8
D_K = 32
D_V = 32
DH_QK = N_HEAD * D_K      # 256
DH_V = N_HEAD * D_V       # 256
LN_EPS = 1e-6
N_ALIGN = 16              # ROI-axis padding: bf16 sublane tile (was 128)


def _round_up(x, m):
    return ((x + m - 1) // m) * m


def _roi_mha_kernel(nrois_ref,                                  # scalar prefetch (SMEM)
                    x_ref, wqkv_ref, bqkv_ref, wo_ref, bo_ref,  # inputs
                    g_ref, b_ref,
                    o_ref):                                     # output
    img = pl.program_id(0)
    n_valid = nrois_ref[img]                # real #ROIs of this image (>= 1)

    xb = x_ref[...]                         # (N_pad, D) bf16
    n_pad = xb.shape[0]
    cdt = wqkv_ref.dtype                    # compute dtype for MXU inputs (bf16)

    # Fused Q/K/V projection: one MXU pass over the D contraction, f32 accumulate.
    # 1/sqrt(d_k) is already folded into the Wq / bq columns of the fused weight.
    qkv = jnp.dot(xb, wqkv_ref[...], preferred_element_type=jnp.float32) + bqkv_ref[...]
    q = qkv[:, :DH_QK].astype(cdt)                       # 256-lane aligned slices
    k = qkv[:, DH_QK:2 * DH_QK].astype(cdt)
    v = qkv[:, 2 * DH_QK:2 * DH_QK + DH_V].astype(cdt)

    # Additive mask for padded key columns (hoisted out of the head loop, f32).
    key_pos = lax.broadcasted_iota(jnp.int32, (1, n_pad), 1)
    mask_bias = jnp.where(key_pos < n_valid, 0.0, -1e30).astype(jnp.float32)

    # Per-head attention. Scores/softmax in f32; matmul inputs bf16 (MXU-native).
    # Softmax normalization applied AFTER the PV matmul (N*32 muls per head
    # instead of N*N), using the approximate EUP reciprocal (perturbs only the
    # final per-query scale; well inside the validation tolerance).
    ctx_heads = []
    for h in range(N_HEAD):
        qh = q[:, h * D_K:(h + 1) * D_K]                 # (N_pad, d_k) bf16
        kh = k[:, h * D_K:(h + 1) * D_K]
        vh = v[:, h * D_V:(h + 1) * D_V]
        s = lax.dot_general(qh, kh, (((1,), (1,)), ((), ())),
                            preferred_element_type=jnp.float32)   # (N_pad, N_pad) f32
        s = s + mask_bias
        m = jnp.max(s, axis=-1, keepdims=True)
        p = jnp.exp(s - m)                                # unnormalized probs, f32
        denom = jnp.sum(p, axis=-1, keepdims=True)
        ctx_h = jnp.dot(p.astype(cdt), vh, preferred_element_type=jnp.float32)
        ctx_heads.append(ctx_h * pl.reciprocal(denom, approx=True))
    ctx = jnp.concatenate(ctx_heads, axis=-1)             # (N_pad, 256) f32

    out = jnp.dot(ctx.astype(cdt), wo_ref[...],
                  preferred_element_type=jnp.float32) + bo_ref[...]
    out = out + xb.astype(jnp.float32)                    # residual in f32

    # Post-norm LayerNorm over d_model (f32).
    mean = jnp.mean(out, axis=-1, keepdims=True)
    cen = out - mean
    var = jnp.mean(cen * cen, axis=-1, keepdims=True)
    inv = lax.rsqrt(var + LN_EPS)
    o_ref[...] = (cen * inv * g_ref[...] + b_ref[...]).astype(o_ref.dtype)
    # NOTE: if n_valid == 0 every key is masked and the (discarded) rows are a
    # uniform average of padding; the wrapper asserts n_rois >= 1 per image.


def _resident_spec(shape):
    """BlockSpec for an array DMA'd once and kept VMEM-resident across images."""
    zeros = (0,) * len(shape)
    return pl.BlockSpec(shape, lambda i, nrois, _z=zeros: _z)


def fuse_params(params, weights_dtype=jnp.bfloat16):
    """Fold the softmax scale into Wq/bq and fuse Wq|Wk|Wv into one weight."""
    wq, bq, wk, bk, wv, bv, wo, bo, gamma, beta = params
    scale = 1.0 / (D_K ** 0.5)
    wqkv = jnp.concatenate([wq * scale, wk, wv], axis=1).astype(weights_dtype)   # (D, 768)
    bqkv = jnp.concatenate([bq * scale, bk, bv], axis=1).astype(jnp.float32)     # (1, 768)
    return (wqkv, bqkv, wo.astype(weights_dtype), bo.astype(jnp.float32),
            gamma.astype(jnp.float32), beta.astype(jnp.float32))


def roi_mha_pallas(xp, nrois, fused):
    """xp: (num_images, N_pad, D) packed/padded ROI features (bf16).
       nrois: (num_images,) int32 real ROI counts per image."""
    num_images, n_pad, d = xp.shape
    wqkv, bqkv, wo, bo, gamma, beta = fused

    args = (xp, wqkv, bqkv, wo, bo, gamma, beta)
    roi_spec = pl.BlockSpec((None, n_pad, d), lambda i, nrois: (i, 0, 0))
    in_specs = [roi_spec] + [_resident_spec(a.shape) for a in args[1:]]
    out_spec = pl.BlockSpec((None, n_pad, d), lambda i, nrois: (i, 0, 0))

    # VMEM budget derived from actual tile sizes (2x for double buffering) plus
    # headroom for in-kernel f32 temporaries (qkv, scores, ctx, LN).
    resident_bytes = sum(int(a.size) * a.dtype.itemsize for a in args[1:])
    stream_bytes = n_pad * d * (xp.dtype.itemsize + 4)         # x in (bf16) + out (f32)
    scratch_bytes = n_pad * (3 * DH_QK * 6 + N_HEAD * n_pad * 4 + 2 * d * 4)
    vmem_limit = int(min(120 * 1024 * 1024,
                         max(32 * 1024 * 1024,
                             2 * (resident_bytes + stream_bytes) + scratch_bytes + (4 << 20))))

    flops = num_images * (
        2 * n_pad * d * (2 * DH_QK + DH_V)               # fused qkv projection
        + 2 * N_HEAD * n_pad * n_pad * (D_K + D_V)       # scores + PV
        + 2 * n_pad * DH_V * d)                          # output projection
    transcendentals = num_images * (N_HEAD * n_pad * n_pad + n_pad)
    bytes_accessed = (resident_bytes
                      + num_images * n_pad * d * xp.dtype.itemsize       # x read
                      + num_images * n_pad * d * 4)                      # out write

    return pl.pallas_call(
        _roi_mha_kernel,
        grid_spec=pltpu.PrefetchScalarGridSpec(
            num_scalar_prefetch=1,
            grid=(num_images,),
            in_specs=in_specs,
            out_specs=out_spec,
        ),
        out_shape=jax.ShapeDtypeStruct((num_images, n_pad, d), jnp.float32),
        compiler_params=pltpu.CompilerParams(
            # Images are independent (megacore); note: on v7x each core re-DMAs
            # the resident weights — acceptable at this d_model.
            dimension_semantics=("parallel",),
            vmem_limit_bytes=vmem_limit,
        ),
        cost_estimate=pl.CostEstimate(
            flops=int(flops),
            transcendentals=int(transcendentals),
            bytes_accessed=int(bytes_accessed)),
    )(nrois, *args)


def roi_attn_forward(x, n_rois, params, *, weights_dtype=jnp.bfloat16):
    """x: (sum(n_rois), C, H, W) NCHW ROI features; n_rois: python list of ints."""
    total, c, hh, ww = x.shape
    assert total == sum(n_rois)
    assert min(n_rois) >= 1, "every image must contribute at least one ROI"
    d = c * hh * ww
    num_images = len(n_rois)
    n_pad = _round_up(max(n_rois), N_ALIGN)

    # Gather-based packing (single gather, no dynamic-update-slice chain).
    # Padded rows point at clamped in-bounds rows; they are masked as keys in
    # the kernel and their outputs are dropped by the unpack gather below.
    starts = [0]
    for n in n_rois[:-1]:
        starts.append(starts[-1] + n)
    starts = np.asarray(starts, dtype=np.int64)
    pack_idx = np.clip(starts[:, None] + np.arange(n_pad)[None, :], 0, total - 1)
    valid_idx = np.concatenate(
        [i * n_pad + np.arange(n) for i, n in enumerate(n_rois)]).astype(np.int64)

    x2d = x.reshape(total, d)
    xp = jnp.take(x2d.astype(jnp.bfloat16),
                  jnp.asarray(pack_idx.reshape(-1), jnp.int32), axis=0)
    xp = xp.reshape(num_images, n_pad, d)
    nrois_arr = jnp.asarray(n_rois, dtype=jnp.int32)

    fused = fuse_params(params, weights_dtype)
    outp = roi_mha_pallas(xp, nrois_arr, fused)

    out2d = jnp.take(outp.reshape(num_images * n_pad, d),
                     jnp.asarray(valid_idx, jnp.int32), axis=0)
    return out2d.reshape(total, c, hh, ww).astype(x.dtype)


def init_params(key, d_model):
    kq, kk, kv, ko = jax.random.split(key, 4)
    wq = 0.02 * jax.random.normal(kq, (d_model, DH_QK), jnp.float32)
    wk = 0.02 * jax.random.normal(kk, (d_model, DH_QK), jnp.float32)
    wv = 0.02 * jax.random.normal(kv, (d_model, DH_V), jnp.float32)
    wo = 0.02 * jax.random.normal(ko, (DH_V, d_model), jnp.float32)
    bq = jnp.zeros((1, DH_QK), jnp.float32)
    bk = jnp.zeros((1, DH_QK), jnp.float32)
    bv = jnp.zeros((1, DH_V), jnp.float32)
    bo = jnp.zeros((1, d_model), jnp.float32)
    gamma = jnp.ones((1, d_model), jnp.float32)
    beta = jnp.zeros((1, d_model), jnp.float32)
    return (wq, bq, wk, bk, wv, bv, wo, bo, gamma, beta)


# ----------------------- pure-JAX reference (validation) -----------------------
def _mha_reference_one(x2d, params, weights_dtype):
    wq, bq, wk, bk, wv, bv, wo, bo, gamma, beta = params
    wdt = weights_dtype
    xw = x2d.astype(wdt)
    q = jnp.dot(xw, wq.astype(wdt), preferred_element_type=jnp.float32) + bq
    k = jnp.dot(xw, wk.astype(wdt), preferred_element_type=jnp.float32) + bk
    v = jnp.dot(xw, wv.astype(wdt), preferred_element_type=jnp.float32) + bv
    n = x2d.shape[0]
    qh = jnp.transpose(q.reshape(n, N_HEAD, D_K), (1, 0, 2))
    kh = jnp.transpose(k.reshape(n, N_HEAD, D_K), (1, 0, 2))
    vh = jnp.transpose(v.reshape(n, N_HEAD, D_V), (1, 0, 2))
    s = jnp.einsum('hqd,hkd->hqk', qh, kh,
                   preferred_element_type=jnp.float32) / jnp.sqrt(jnp.float32(D_K))
    p = jax.nn.softmax(s, axis=-1)
    ctx = jnp.einsum('hqk,hkd->qhd', p, vh,
                     preferred_element_type=jnp.float32).reshape(n, DH_V)
    out = jnp.dot(ctx.astype(wdt), wo.astype(wdt),
                  preferred_element_type=jnp.float32) + bo
    out = out + x2d
    mean = jnp.mean(out, axis=-1, keepdims=True)
    var = jnp.mean((out - mean) ** 2, axis=-1, keepdims=True)
    return (out - mean) * lax.rsqrt(var + LN_EPS) * gamma + beta


def roi_attn_reference(x, n_rois, params, weights_dtype=jnp.bfloat16):
    total, c, hh, ww = x.shape
    d = c * hh * ww
    x2d = x.reshape(total, d).astype(jnp.float32)
    outs = []
    start = 0
    for n in n_rois:
        outs.append(_mha_reference_one(x2d[start:start + n], params, weights_dtype))
        start += n
    return jnp.concatenate(outs, axis=0).reshape(total, c, hh, ww)


if __name__ == "__main__":
    key = jax.random.PRNGKey(0)
    C, H, W = 4, 16, 16
    D = C * H * W                       # d_model of the 'linear' attention branch
    n_rois = [8, 16]                    # ROIs per image (2 images)
    total = sum(n_rois)

    kx, kp = jax.random.split(key)
    x = jax.random.normal(kx, (total, C, H, W), jnp.float32)
    params = init_params(kp, D)

    out = roi_attn_forward(x, n_rois, params)
    out = jax.block_until_ready(out)
    assert out.shape == (total, C, H, W)
    assert out.dtype == jnp.float32
    assert bool(jnp.all(jnp.isfinite(out)))

    ref = jax.block_until_ready(roi_attn_reference(x, n_rois, params))
    max_err = float(jnp.max(jnp.abs(out - ref)))
    assert max_err < 5e-2, f"max abs error vs reference: {max_err}"

    print("KERNEL_OK")
</pallas_src>

<mosaic_0001>
module attributes {stable_mosaic.version = 11 : i64} {
  func.func @_roi_mha_kernel(%arg0: i32, %arg1: memref<2xi32, #tpu.memory_space<smem>>, %arg2: memref<1x16x1024xbf16, #tpu.memory_space<vmem>>, %arg3: memref<1024x768xbf16, #tpu.memory_space<vmem>>, %arg4: memref<1x768xf32, #tpu.memory_space<vmem>>, %arg5: memref<256x1024xbf16, #tpu.memory_space<vmem>>, %arg6: memref<1x1024xf32, #tpu.memory_space<vmem>>, %arg7: memref<1x1024xf32, #tpu.memory_space<vmem>>, %arg8: memref<1x1024xf32, #tpu.memory_space<vmem>>, %arg9: memref<1x16x1024xf32, #tpu.memory_space<vmem>>) attributes {dimension_semantics = [#tpu.dimension_semantics<parallel>], iteration_bounds = array<i64: 2>, scalar_prefetch = 1 : i64, scratch_operands = 0 : i64, tpu.core_type = #tpu.core_type<tc>, window_params = [{transform_indices = @transform_0, window_bounds = array<i64: 1, 16, 1024>}, {pipeline_mode = #tpu.pipeline_mode<synchronous>, transform_indices = @transform_1, window_bounds = array<i64: 1024, 768>}, {pipeline_mode = #tpu.pipeline_mode<synchronous>, transform_indices = @transform_2, window_bounds = array<i64: 1, 768>}, {pipeline_mode = #tpu.pipeline_mode<synchronous>, transform_indices = @transform_3, window_bounds = array<i64: 256, 1024>}, {pipeline_mode = #tpu.pipeline_mode<synchronous>, transform_indices = @transform_4, window_bounds = array<i64: 1, 1024>}, {pipeline_mode = #tpu.pipeline_mode<synchronous>, transform_indices = @transform_5, window_bounds = array<i64: 1, 1024>}, {pipeline_mode = #tpu.pipeline_mode<synchronous>, transform_indices = @transform_6, window_bounds = array<i64: 1, 1024>}, {transform_indices = @transform_7, window_bounds = array<i64: 1, 16, 1024>}]} {
    %0 = arith.index_cast %arg0 : i32 to index
    %1 = memref.load %arg1[%0] : memref<2xi32, #tpu.memory_space<smem>>
    %c0 = arith.constant 0 : index
    %c0_0 = arith.constant 0 : index
    %c0_1 = arith.constant 0 : index
    %2 = vector.load %arg2[%c0, %c0_0, %c0_1] : memref<1x16x1024xbf16, #tpu.memory_space<vmem>>, vector<1x16x1024xbf16>
    %3 = vector.shape_cast %2 : vector<1x16x1024xbf16> to vector<16x1024xbf16>
    %c0_2 = arith.constant 0 : index
    %c0_3 = arith.constant 0 : index
    %4 = vector.load %arg3[%c0_2, %c0_3] : memref<1024x768xbf16, #tpu.memory_space<vmem>>, vector<1024x768xbf16>
    %cst = arith.constant dense<0.000000e+00> : vector<16x768xf32>
    %5 = tpu.matmul %3, %4, %cst {dimension_numbers = #tpu.dot_dimension_numbers<[1], [0], [0], [1], [0, 0, 1, 1], [], []>} : vector<16x1024xbf16>, vector<1024x768xbf16>, vector<16x768xf32> -> vector<16x768xf32>
    %c0_4 = arith.constant 0 : index
    %c0_5 = arith.constant 0 : index
    %6 = vector.load %arg4[%c0_4, %c0_5] : memref<1x768xf32, #tpu.memory_space<vmem>>, vector<1x768xf32>
    %7 = vector.broadcast %6 : vector<1x768xf32> to vector<16x768xf32>
    %8 = arith.addf %5, %7 : vector<16x768xf32>
    %9 = vector.extract_strided_slice %8 {offsets = [0, 0], sizes = [16, 256], strides = [1, 1]} : vector<16x768xf32> to vector<16x256xf32>
    %10 = arith.truncf %9 : vector<16x256xf32> to vector<16x256xbf16>
    %11 = vector.extract_strided_slice %8 {offsets = [0, 256], sizes = [16, 256], strides = [1, 1]} : vector<16x768xf32> to vector<16x256xf32>
    %12 = arith.truncf %11 : vector<16x256xf32> to vector<16x256xbf16>
    %13 = vector.extract_strided_slice %8 {offsets = [0, 512], sizes = [16, 256], strides = [1, 1]} : vector<16x768xf32> to vector<16x256xf32>
    %14 = arith.truncf %13 : vector<16x256xf32> to vector<16x256xbf16>
    %15 = tpu.iota {dimensions = array<i32: 1>} : vector<1x16xi32>
    %16 = vector.broadcast %1 : i32 to vector<1x16xi32>
    %17 = arith.cmpi slt, %15, %16 : vector<1x16xi32>
    %cst_6 = arith.constant 0.000000e+00 : f32
    %cst_7 = arith.constant -1.000000e+30 : f32
    %18 = vector.broadcast %cst_6 : f32 to vector<1x16xf32>
    %19 = vector.broadcast %cst_7 : f32 to vector<1x16xf32>
    %20 = arith.select %17, %18, %19 : vector<1x16xi1>, vector<1x16xf32>
    %21 = vector.extract_strided_slice %10 {offsets = [0, 0], sizes = [16, 32], strides = [1, 1]} : vector<16x256xbf16> to vector<16x32xbf16>
    %22 = vector.extract_strided_slice %12 {offsets = [0, 0], sizes = [16, 32], strides = [1, 1]} : vector<16x256xbf16> to vector<16x32xbf16>
    %23 = vector.extract_strided_slice %14 {offsets = [0, 0], sizes = [16, 32], strides = [1, 1]} : vector<16x256xbf16> to vector<16x32xbf16>
    %cst_8 = arith.constant dense<0.000000e+00> : vector<16x16xf32>
    %24 = tpu.matmul %21, %22, %cst_8 {dimension_numbers = #tpu.dot_dimension_numbers<[1], [1], [0], [0], [0, 0, 1, 0], [], []>} : vector<16x32xbf16>, vector<16x32xbf16>, vector<16x16xf32> -> vector<16x16xf32>
    %25 = vector.broadcast %20 : vector<1x16xf32> to vector<16x16xf32>
    %26 = arith.addf %24, %25 : vector<16x16xf32>
    %cst_9 = arith.constant dense<0xFF800000> : vector<16xf32>
    %27 = vector.multi_reduction <maximumf>, %26, %cst_9 [1] : vector<16x16xf32> to vector<16xf32>
    %28 = vector.shape_cast %27 : vector<16xf32> to vector<16x1xf32>
    %29 = vector.broadcast %28 : vector<16x1xf32> to vector<16x16xf32>
    %30 = arith.subf %26, %29 : vector<16x16xf32>
    %31 = math.exp %30 : vector<16x16xf32>
    %cst_10 = arith.constant dense<0.000000e+00> : vector<16xf32>
    %32 = vector.multi_reduction <add>, %31, %cst_10 [1] : vector<16x16xf32> to vector<16xf32>
    %33 = vector.shape_cast %32 : vector<16xf32> to vector<16x1xf32>
    %34 = arith.truncf %31 : vector<16x16xf32> to vector<16x16xbf16>
    %cst_11 = arith.constant dense<0.000000e+00> : vector<16x32xf32>
    %35 = tpu.matmul %34, %23, %cst_11 {dimension_numbers = #tpu.dot_dimension_numbers<[1], [0], [0], [1], [0, 0, 1, 1], [], []>} : vector<16x16xbf16>, vector<16x32xbf16>, vector<16x32xf32> -> vector<16x32xf32>
    %36 = tpu.reciprocal %33 {approx = true} : vector<16x1xf32> -> vector<16x1xf32>
    %37 = vector.broadcast %36 : vector<16x1xf32> to vector<16x32xf32>
    %38 = arith.mulf %35, %37 : vector<16x32xf32>
    %39 = vector.extract_strided_slice %10 {offsets = [0, 32], sizes = [16, 32], strides = [1, 1]} : vector<16x256xbf16> to vector<16x32xbf16>
    %40 = vector.extract_strided_slice %12 {offsets = [0, 32], sizes = [16, 32], strides = [1, 1]} : vector<16x256xbf16> to vector<16x32xbf16>
    %41 = vector.extract_strided_slice %14 {offsets = [0, 32], sizes = [16, 32], strides = [1, 1]} : vector<16x256xbf16> to vector<16x32xbf16>
    %cst_12 = arith.constant dense<0.000000e+00> : vector<16x16xf32>
    %42 = tpu.matmul %39, %40, %cst_12 {dimension_numbers = #tpu.dot_dimension_numbers<[1], [1], [0], [0], [0, 0, 1, 0], [], []>} : vector<16x32xbf16>, vector<16x32xbf16>, vector<16x16xf32> -> vector<16x16xf32>
    %43 = vector.broadcast %20 : vector<1x16xf32> to vector<16x16xf32>
    %44 = arith.addf %42, %43 : vector<16x16xf32>
    %cst_13 = arith.constant dense<0xFF800000> : vector<16xf32>
    %45 = vector.multi_reduction <maximumf>, %44, %cst_13 [1] : vector<16x16xf32> to vector<16xf32>
    %46 = vector.shape_cast %45 : vector<16xf32> to vector<16x1xf32>
    %47 = vector.broadcast %46 : vector<16x1xf32> to vector<16x16xf32>
    %48 = arith.subf %44, %47 : vector<16x16xf32>
    %49 = math.exp %48 : vector<16x16xf32>
    %cst_14 = arith.constant dense<0.000000e+00> : vector<16xf32>
    %50 = vector.multi_reduction <add>, %49, %cst_14 [1] : vector<16x16xf32> to vector<16xf32>
    %51 = vector.shape_cast %50 : vector<16xf32> to vector<16x1xf32>
    %52 = arith.truncf %49 : vector<16x16xf32> to vector<16x16xbf16>
    %cst_15 = arith.constant dense<0.000000e+00> : vector<16x32xf32>
    %53 = tpu.matmul %52, %41, %cst_15 {dimension_numbers = #tpu.dot_dimension_numbers<[1], [0], [0], [1], [0, 0, 1, 1], [], []>} : vector<16x16xbf16>, vector<16x32xbf16>, vector<16x32xf32> -> vector<16x32xf32>
    %54 = tpu.reciprocal %51 {approx = true} : vector<16x1xf32> -> vector<16x1xf32>
    %55 = vector.broadcast %54 : vector<16x1xf32> to vector<16x32xf32>
    %56 = arith.mulf %53, %55 : vector<16x32xf32>
    %57 = vector.extract_strided_slice %10 {offsets = [0, 64], sizes = [16, 32], strides = [1, 1]} : vector<16x256xbf16> to vector<16x32xbf16>
    %58 = vector.extract_strided_slice %12 {offsets = [0, 64], sizes = [16, 32], strides = [1, 1]} : vector<16x256xbf16> to vector<16x32xbf16>
    %59 = vector.extract_strided_slice %14 {offsets = [0, 64], sizes = [16, 32], strides = [1, 1]} : vector<16x256xbf16> to vector<16x32xbf16>
    %cst_16 = arith.constant dense<0.000000e+00> : vector<16x16xf32>
    %60 = tpu.matmul %57, %58, %cst_16 {dimension_numbers = #tpu.dot_dimension_numbers<[1], [1], [0], [0], [0, 0, 1, 0], [], []>} : vector<16x32xbf16>, vector<16x32xbf16>, vector<16x16xf32> -> vector<16x16xf32>
    %61 = vector.broadcast %20 : vector<1x16xf32> to vector<16x16xf32>
    %62 = arith.addf %60, %61 : vector<16x16xf32>
    %cst_17 = arith.constant dense<0xFF800000> : vector<16xf32>
    %63 = vector.multi_reduction <maximumf>, %62, %cst_17 [1] : vector<16x16xf32> to vector<16xf32>
    %64 = vector.shape_cast %63 : vector<16xf32> to vector<16x1xf32>
    %65 = vector.broadcast %64 : vector<16x1xf32> to vector<16x16xf32>
    %66 = arith.subf %62, %65 : vector<16x16xf32>
    %67 = math.exp %66 : vector<16x16xf32>
    %cst_18 = arith.constant dense<0.000000e+00> : vector<16xf32>
    %68 = vector.multi_reduction <add>, %67, %cst_18 [1] : vector<16x16xf32> to vector<16xf32>
    %69 = vector.shape_cast %68 : vector<16xf32> to vector<16x1xf32>
    %70 = arith.truncf %67 : vector<16x16xf32> to vector<16x16xbf16>
    %cst_19 = arith.constant dense<0.000000e+00> : vector<16x32xf32>
    %71 = tpu.matmul %70, %59, %cst_19 {dimension_numbers = #tpu.dot_dimension_numbers<[1], [0], [0], [1], [0, 0, 1, 1], [], []>} : vector<16x16xbf16>, vector<16x32xbf16>, vector<16x32xf32> -> vector<16x32xf32>
    %72 = tpu.reciprocal %69 {approx = true} : vector<16x1xf32> -> vector<16x1xf32>
    %73 = vector.broadcast %72 : vector<16x1xf32> to vector<16x32xf32>
    %74 = arith.mulf %71, %73 : vector<16x32xf32>
    %75 = vector.extract_strided_slice %10 {offsets = [0, 96], sizes = [16, 32], strides = [1, 1]} : vector<16x256xbf16> to vector<16x32xbf16>
    %76 = vector.extract_strided_slice %12 {offsets = [0, 96], sizes = [16, 32], strides = [1, 1]} : vector<16x256xbf16> to vector<16x32xbf16>
    %77 = vector.extract_strided_slice %14 {offsets = [0, 96], sizes = [16, 32], strides = [1, 1]} : vector<16x256xbf16> to vector<16x32xbf16>
    %cst_20 = arith.constant dense<0.000000e+00> : vector<16x16xf32>
    %78 = tpu.matmul %75, %76, %cst_20 {dimension_numbers = #tpu.dot_dimension_numbers<[1], [1], [0], [0], [0, 0, 1, 0], [], []>} : vector<16x32xbf16>, vector<16x32xbf16>, vector<16x16xf32> -> vector<16x16xf32>
    %79 = vector.broadcast %20 : vector<1x16xf32> to vector<16x16xf32>
    %80 = arith.addf %78, %79 : vector<16x16xf32>
    %cst_21 = arith.constant dense<0xFF800000> : vector<16xf32>
    %81 = vector.multi_reduction <maximumf>, %80, %cst_21 [1] : vector<16x16xf32> to vector<16xf32>
    %82 = vector.shape_cast %81 : vector<16xf32> to vector<16x1xf32>
    %83 = vector.broadcast %82 : vector<16x1xf32> to vector<16x16xf32>
    %84 = arith.subf %80, %83 : vector<16x16xf32>
    %85 = math.exp %84 : vector<16x16xf32>
    %cst_22 = arith.constant dense<0.000000e+00> : vector<16xf32>
    %86 = vector.multi_reduction <add>, %85, %cst_22 [1] : vector<16x16xf32> to vector<16xf32>
    %87 = vector.shape_cast %86 : vector<16xf32> to vector<16x1xf32>
    %88 = arith.truncf %85 : vector<16x16xf32> to vector<16x16xbf16>
    %cst_23 = arith.constant dense<0.000000e+00> : vector<16x32xf32>
    %89 = tpu.matmul %88, %77, %cst_23 {dimension_numbers = #tpu.dot_dimension_numbers<[1], [0], [0], [1], [0, 0, 1, 1], [], []>} : vector<16x16xbf16>, vector<16x32xbf16>, vector<16x32xf32> -> vector<16x32xf32>
    %90 = tpu.reciprocal %87 {approx = true} : vector<16x1xf32> -> vector<16x1xf32>
    %91 = vector.broadcast %90 : vector<16x1xf32> to vector<16x32xf32>
    %92 = arith.mulf %89, %91 : vector<16x32xf32>
    %93 = vector.extract_strided_slice %10 {offsets = [0, 128], sizes = [16, 32], strides = [1, 1]} : vector<16x256xbf16> to vector<16x32xbf16>
    %94 = vector.extract_strided_slice %12 {offsets = [0, 128], sizes = [16, 32], strides = [1, 1]} : vector<16x256xbf16> to vector<16x32xbf16>
    %95 = vector.extract_strided_slice %14 {offsets = [0, 128], sizes = [16, 32], strides = [1, 1]} : vector<16x256xbf16> to vector<16x32xbf16>
    %cst_24 = arith.constant dense<0.000000e+00> : vector<16x16xf32>
    %96 = tpu.matmul %93, %94, %cst_24 {dimension_numbers = #tpu.dot_dimension_numbers<[1], [1], [0], [0], [0, 0, 1, 0], [], []>} : vector<16x32xbf16>, vector<16x32xbf16>, vector<16x16xf32> -> vector<16x16xf32>
    %97 = vector.broadcast %20 : vector<1x16xf32> to vector<16x16xf32>
    %98 = arith.addf %96, %97 : vector<16x16xf32>
    %cst_25 = arith.constant dense<0xFF800000> : vector<16xf32>
    %99 = vector.multi_reduction <maximumf>, %98, %cst_25 [1] : vector<16x16xf32> to vector<16xf32>
    %100 = vector.shape_cast %99 : vector<16xf32> to vector<16x1xf32>
    %101 = vector.broadcast %100 : vector<16x1xf32> to vector<16x16xf32>
    %102 = arith.subf %98, %101 : vector<16x16xf32>
    %103 = math.exp %102 : vector<16x16xf32>
    %cst_26 = arith.constant dense<0.000000e+00> : vector<16xf32>
    %104 = vector.multi_reduction <add>, %103, %cst_26 [1] : vector<16x16xf32> to vector<16xf32>
    %105 = vector.shape_cast %104 : vector<16xf32> to vector<16x1xf32>
    %106 = arith.truncf %103 : vector<16x16xf32> to vector<16x16xbf16>
    %cst_27 = arith.constant dense<0.000000e+00> : vector<16x32xf32>
    %107 = tpu.matmul %106, %95, %cst_27 {dimension_numbers = #tpu.dot_dimension_numbers<[1], [0], [0], [1], [0, 0, 1, 1], [], []>} : vector<16x16xbf16>, vector<16x32xbf16>, vector<16x32xf32> -> vector<16x32xf32>
    %108 = tpu.reciprocal %105 {approx = true} : vector<16x1xf32> -> vector<16x1xf32>
    %109 = vector.broadcast %108 : vector<16x1xf32> to vector<16x32xf32>
    %110 = arith.mulf %107, %109 : vector<16x32xf32>
    %111 = vector.extract_strided_slice %10 {offsets = [0, 160], sizes = [16, 32], strides = [1, 1]} : vector<16x256xbf16> to vector<16x32xbf16>
    %112 = vector.extract_strided_slice %12 {offsets = [0, 160], sizes = [16, 32], strides = [1, 1]} : vector<16x256xbf16> to vector<16x32xbf16>
    %113 = vector.extract_strided_slice %14 {offsets = [0, 160], sizes = [16, 32], strides = [1, 1]} : vector<16x256xbf16> to vector<16x32xbf16>
    %cst_28 = arith.constant dense<0.000000e+00> : vector<16x16xf32>
    %114 = tpu.matmul %111, %112, %cst_28 {dimension_numbers = #tpu.dot_dimension_numbers<[1], [1], [0], [0], [0, 0, 1, 0], [], []>} : vector<16x32xbf16>, vector<16x32xbf16>, vector<16x16xf32> -> vector<16x16xf32>
    %115 = vector.broadcast %20 : vector<1x16xf32> to vector<16x16xf32>
    %116 = arith.addf %114, %115 : vector<16x16xf32>
    %cst_29 = arith.constant dense<0xFF800000> : vector<16xf32>
    %117 = vector.multi_reduction <maximumf>, %116, %cst_29 [1] : vector<16x16xf32> to vector<16xf32>
    %118 = vector.shape_cast %117 : vector<16xf32> to vector<16x1xf32>
    %119 = vector.broadcast %118 : vector<16x1xf32> to vector<16x16xf32>
    %120 = arith.subf %116, %119 : vector<16x16xf32>
    %121 = math.exp %120 : vector<16x16xf32>
    %cst_30 = arith.constant dense<0.000000e+00> : vector<16xf32>
    %122 = vector.multi_reduction <add>, %121, %cst_30 [1] : vector<16x16xf32> to vector<16xf32>
    %123 = vector.shape_cast %122 : vector<16xf32> to vector<16x1xf32>
    %124 = arith.truncf %121 : vector<16x16xf32> to vector<16x16xbf16>
    %cst_31 = arith.constant dense<0.000000e+00> : vector<16x32xf32>
    %125 = tpu.matmul %124, %113, %cst_31 {dimension_numbers = #tpu.dot_dimension_numbers<[1], [0], [0], [1], [0, 0, 1, 1], [], []>} : vector<16x16xbf16>, vector<16x32xbf16>, vector<16x32xf32> -> vector<16x32xf32>
    %126 = tpu.reciprocal %123 {approx = true} : vector<16x1xf32> -> vector<16x1xf32>
    %127 = vector.broadcast %126 : vector<16x1xf32> to vector<16x32xf32>
    %128 = arith.mulf %125, %127 : vector<16x32xf32>
    %129 = vector.extract_strided_slice %10 {offsets = [0, 192], sizes = [16, 32], strides = [1, 1]} : vector<16x256xbf16> to vector<16x32xbf16>
    %130 = vector.extract_strided_slice %12 {offsets = [0, 192], sizes = [16, 32], strides = [1, 1]} : vector<16x256xbf16> to vector<16x32xbf16>
    %131 = vector.extract_strided_slice %14 {offsets = [0, 192], sizes = [16, 32], strides = [1, 1]} : vector<16x256xbf16> to vector<16x32xbf16>
    %cst_32 = arith.constant dense<0.000000e+00> : vector<16x16xf32>
    %132 = tpu.matmul %129, %130, %cst_32 {dimension_numbers = #tpu.dot_dimension_numbers<[1], [1], [0], [0], [0, 0, 1, 0], [], []>} : vector<16x32xbf16>, vector<16x32xbf16>, vector<16x16xf32> -> vector<16x16xf32>
    %133 = vector.broadcast %20 : vector<1x16xf32> to vector<16x16xf32>
    %134 = arith.addf %132, %133 : vector<16x16xf32>
    %cst_33 = arith.constant dense<0xFF800000> : vector<16xf32>
    %135 = vector.multi_reduction <maximumf>, %134, %cst_33 [1] : vector<16x16xf32> to vector<16xf32>
    %136 = vector.shape_cast %135 : vector<16xf32> to vector<16x1xf32>
    %137 = vector.broadcast %136 : vector<16x1xf32> to vector<16x16xf32>
    %138 = arith.subf %134, %137 : vector<16x16xf32>
    %139 = math.exp %138 : vector<16x16xf32>
    %cst_34 = arith.constant dense<0.000000e+00> : vector<16xf32>
    %140 = vector.multi_reduction <add>, %139, %cst_34 [1] : vector<16x16xf32> to vector<16xf32>
    %141 = vector.shape_cast %140 : vector<16xf32> to vector<16x1xf32>
    %142 = arith.truncf %139 : vector<16x16xf32> to vector<16x16xbf16>
    %cst_35 = arith.constant dense<0.000000e+00> : vector<16x32xf32>
    %143 = tpu.matmul %142, %131, %cst_35 {dimension_numbers = #tpu.dot_dimension_numbers<[1], [0], [0], [1], [0, 0, 1, 1], [], []>} : vector<16x16xbf16>, vector<16x32xbf16>, vector<16x32xf32> -> vector<16x32xf32>
    %144 = tpu.reciprocal %141 {approx = true} : vector<16x1xf32> -> vector<16x1xf32>
    %145 = vector.broadcast %144 : vector<16x1xf32> to vector<16x32xf32>
    %146 = arith.mulf %143, %145 : vector<16x32xf32>
    %147 = vector.extract_strided_slice %10 {offsets = [0, 224], sizes = [16, 32], strides = [1, 1]} : vector<16x256xbf16> to vector<16x32xbf16>
    %148 = vector.extract_strided_slice %12 {offsets = [0, 224], sizes = [16, 32], strides = [1, 1]} : vector<16x256xbf16> to vector<16x32xbf16>
    %149 = vector.extract_strided_slice %14 {offsets = [0, 224], sizes = [16, 32], strides = [1, 1]} : vector<16x256xbf16> to vector<16x32xbf16>
    %cst_36 = arith.constant dense<0.000000e+00> : vector<16x16xf32>
    %150 = tpu.matmul %147, %148, %cst_36 {dimension_numbers = #tpu.dot_dimension_numbers<[1], [1], [0], [0], [0, 0, 1, 0], [], []>} : vector<16x32xbf16>, vector<16x32xbf16>, vector<16x16xf32> -> vector<16x16xf32>
    %151 = vector.broadcast %20 : vector<1x16xf32> to vector<16x16xf32>
    %152 = arith.addf %150, %151 : vector<16x16xf32>
    %cst_37 = arith.constant dense<0xFF800000> : vector<16xf32>
    %153 = vector.multi_reduction <maximumf>, %152, %cst_37 [1] : vector<16x16xf32> to vector<16xf32>
    %154 = vector.shape_cast %153 : vector<16xf32> to vector<16x1xf32>
    %155 = vector.broadcast %154 : vector<16x1xf32> to vector<16x16xf32>
    %156 = arith.subf %152, %155 : vector<16x16xf32>
    %157 = math.exp %156 : vector<16x16xf32>
    %cst_38 = arith.constant dense<0.000000e+00> : vector<16xf32>
    %158 = vector.multi_reduction <add>, %157, %cst_38 [1] : vector<16x16xf32> to vector<16xf32>
    %159 = vector.shape_cast %158 : vector<16xf32> to vector<16x1xf32>
    %160 = arith.truncf %157 : vector<16x16xf32> to vector<16x16xbf16>
    %cst_39 = arith.constant dense<0.000000e+00> : vector<16x32xf32>
    %161 = tpu.matmul %160, %149, %cst_39 {dimension_numbers = #tpu.dot_dimension_numbers<[1], [0], [0], [1], [0, 0, 1, 1], [], []>} : vector<16x16xbf16>, vector<16x32xbf16>, vector<16x32xf32> -> vector<16x32xf32>
    %162 = tpu.reciprocal %159 {approx = true} : vector<16x1xf32> -> vector<16x1xf32>
    %163 = vector.broadcast %162 : vector<16x1xf32> to vector<16x32xf32>
    %164 = arith.mulf %161, %163 : vector<16x32xf32>
    %165 = tpu.concatenate %38, %56, %74, %92, %110, %128, %146, %164 in 1 : vector<16x32xf32>, vector<16x32xf32>, vector<16x32xf32>, vector<16x32xf32>, vector<16x32xf32>, vector<16x32xf32>, vector<16x32xf32>, vector<16x32xf32> -> vector<16x256xf32>
    %166 = arith.truncf %165 : vector<16x256xf32> to vector<16x256xbf16>
    %c0_40 = arith.constant 0 : index
    %c0_41 = arith.constant 0 : index
    %167 = vector.load %arg5[%c0_40, %c0_41] : memref<256x1024xbf16, #tpu.memory_space<vmem>>, vector<256x1024xbf16>
    %cst_42 = arith.constant dense<0.000000e+00> : vector<16x1024xf32>
    %168 = tpu.matmul %166, %167, %cst_42 {dimension_numbers = #tpu.dot_dimension_numbers<[1], [0], [0], [1], [0, 0, 1, 1], [], []>} : vector<16x256xbf16>, vector<256x1024xbf16>, vector<16x1024xf32> -> vector<16x1024xf32>
    %c0_43 = arith.constant 0 : index
    %c0_44 = arith.constant 0 : index
    %169 = vector.load %arg6[%c0_43, %c0_44] : memref<1x1024xf32, #tpu.memory_space<vmem>>, vector<1x1024xf32>
    %170 = vector.broadcast %169 : vector<1x1024xf32> to vector<16x1024xf32>
    %171 = arith.addf %168, %170 : vector<16x1024xf32>
    %172 = arith.extf %3 : vector<16x1024xbf16> to vector<16x1024xf32>
    %173 = arith.addf %171, %172 : vector<16x1024xf32>
    %cst_45 = arith.constant dense<0.000000e+00> : vector<16xf32>
    %174 = vector.multi_reduction <add>, %173, %cst_45 [1] : vector<16x1024xf32> to vector<16xf32>
    %175 = vector.shape_cast %174 : vector<16xf32> to vector<16x1xf32>
    %cst_46 = arith.constant 1.024000e+03 : f32
    %176 = vector.broadcast %cst_46 : f32 to vector<16x1xf32>
    %177 = arith.divf %175, %176 : vector<16x1xf32>
    %178 = vector.broadcast %177 : vector<16x1xf32> to vector<16x1024xf32>
    %179 = arith.subf %173, %178 : vector<16x1024xf32>
    %180 = arith.mulf %179, %179 : vector<16x1024xf32>
    %cst_47 = arith.constant dense<0.000000e+00> : vector<16xf32>
    %181 = vector.multi_reduction <add>, %180, %cst_47 [1] : vector<16x1024xf32> to vector<16xf32>
    %182 = vector.shape_cast %181 : vector<16xf32> to vector<16x1xf32>
    %cst_48 = arith.constant 1.024000e+03 : f32
    %183 = vector.broadcast %cst_48 : f32 to vector<16x1xf32>
    %184 = arith.divf %182, %183 : vector<16x1xf32>
    %cst_49 = arith.constant 9.99999997E-7 : f32
    %185 = vector.broadcast %cst_49 : f32 to vector<16x1xf32>
    %186 = arith.addf %184, %185 : vector<16x1xf32>
    %187 = math.rsqrt %186 : vector<16x1xf32>
    %188 = vector.broadcast %187 : vector<16x1xf32> to vector<16x1024xf32>
    %189 = arith.mulf %179, %188 : vector<16x1024xf32>
    %c0_50 = arith.constant 0 : index
    %c0_51 = arith.constant 0 : index
    %190 = vector.load %arg7[%c0_50, %c0_51] : memref<1x1024xf32, #tpu.memory_space<vmem>>, vector<1x1024xf32>
    %191 = vector.broadcast %190 : vector<1x1024xf32> to vector<16x1024xf32>
    %192 = arith.mulf %189, %191 : vector<16x1024xf32>
    %c0_52 = arith.constant 0 : index
    %c0_53 = arith.constant 0 : index
    %193 = vector.load %arg8[%c0_52, %c0_53] : memref<1x1024xf32, #tpu.memory_space<vmem>>, vector<1x1024xf32>
    %194 = vector.broadcast %193 : vector<1x1024xf32> to vector<16x1024xf32>
    %195 = arith.addf %192, %194 : vector<16x1024xf32>
    %c0_54 = arith.constant 0 : index
    %c0_55 = arith.constant 0 : index
    %c0_56 = arith.constant 0 : index
    %196 = vector.load %arg9[%c0_54, %c0_55, %c0_56] : memref<1x16x1024xf32, #tpu.memory_space<vmem>>, vector<1x16x1024xf32>
    %197 = vector.shape_cast %196 : vector<1x16x1024xf32> to vector<16x1024xf32>
    %198 = vector.shape_cast %195 : vector<16x1024xf32> to vector<1x16x1024xf32>
    tpu.vector_store %arg9[%c0_54, %c0_55, %c0_56], %198 {strides = array<i32>} : memref<1x16x1024xf32, #tpu.memory_space<vmem>>, vector<1x16x1024xf32>,
    return
  }
  func.func @transform_0(%arg0: i32, %arg1: memref<2xi32, #tpu.memory_space<smem>>) -> (i32, i32, i32) {
    %c0_i32 = arith.constant 0 : i32
    %c0_i32_0 = arith.constant 0 : i32
    %c0_i32_1 = arith.constant 0 : i32
    return %arg0, %c0_i32, %c0_i32_0 : i32, i32, i32
  }
  func.func @transform_1(%arg0: i32, %arg1: memref<2xi32, #tpu.memory_space<smem>>) -> (i32, i32) {
    %c0_i32 = arith.constant 0 : i32
    %c0_i32_0 = arith.constant 0 : i32
    %c0_i32_1 = arith.constant 0 : i32
    return %c0_i32, %c0_i32_0 : i32, i32
  }
  func.func @transform_2(%arg0: i32, %arg1: memref<2xi32, #tpu.memory_space<smem>>) -> (i32, i32) {
    %c0_i32 = arith.constant 0 : i32
    %c0_i32_0 = arith.constant 0 : i32
    %c0_i32_1 = arith.constant 0 : i32
    return %c0_i32, %c0_i32_0 : i32, i32
  }
  func.func @transform_3(%arg0: i32, %arg1: memref<2xi32, #tpu.memory_space<smem>>) -> (i32, i32) {
    %c0_i32 = arith.constant 0 : i32
    %c0_i32_0 = arith.constant 0 : i32
    %c0_i32_1 = arith.constant 0 : i32
    return %c0_i32, %c0_i32_0 : i32, i32
  }
  func.func @transform_4(%arg0: i32, %arg1: memref<2xi32, #tpu.memory_space<smem>>) -> (i32, i32) {
    %c0_i32 = arith.constant 0 : i32
    %c0_i32_0 = arith.constant 0 : i32
    %c0_i32_1 = arith.constant 0 : i32
    return %c0_i32, %c0_i32_0 : i32, i32
  }
  func.func @transform_5(%arg0: i32, %arg1: memref<2xi32, #tpu.memory_space<smem>>) -> (i32, i32) {
    %c0_i32 = arith.constant 0 : i32
    %c0_i32_0 = arith.constant 0 : i32
    %c0_i32_1 = arith.constant 0 : i32
    return %c0_i32, %c0_i32_0 : i32, i32
  }
  func.func @transform_6(%arg0: i32, %arg1: memref<2xi32, #tpu.memory_space<smem>>) -> (i32, i32) {
    %c0_i32 = arith.constant 0 : i32
    %c0_i32_0 = arith.constant 0 : i32
    %c0_i32_1 = arith.constant 0 : i32
    return %c0_i32, %c0_i32_0 : i32, i32
  }
  func.func @transform_7(%arg0: i32, %arg1: memref<2xi32, #tpu.memory_space<smem>>) -> (i32, i32, i32) {
    %c0_i32 = arith.constant 0 : i32
    %c0_i32_0 = arith.constant 0 : i32
    %c0_i32_1 = arith.constant 0 : i32
    return %arg0, %c0_i32, %c0_i32_0 : i32, i32, i32
  }
}

</mosaic_0001>

<llo_original>
// kernel: tpu_custom_call.1
$region0: #{tpu_custom_call.1}
  #allocation0 [shape = 'u32[]', space=smem, size = 0x4, offset = 0x4, fixed_abs, tag = 'smem constant byte address 0x4 - core index']
  #allocation1 [shape = 'u32[144,128]{1,0:T(1,128)}', space=vmem, size = 0x12000, scoped, tag = 'internal scratch']
  #allocation2 [shape = 's32[1]{0}', space=sflag, size = 0x4, scoped, tag = 'scoped memory for tpu_custom_call.1']
  #allocation3 [shape = 'u8[512]{0}', space=smem, size = 0x200, scoped, tag = 'prefetched SMEM operand 0']
  %s0 = inlined_call_operand.hbm [shape: s32[2], index: 0, kind: input, shape index: {}]
  %s1 = inlined_call_operand.hbm [shape: bf16[2,16,1024], index: 1, kind: input, shape index: {}]
  %s2 = inlined_call_operand.hbm [shape: bf16[1024,768], index: 2, kind: input, shape index: {}]
  %s3 = inlined_call_operand.hbm [shape: f32[1,768], index: 3, kind: input, shape index: {}]
  %s4 = inlined_call_operand.hbm [shape: bf16[256,1024], index: 4, kind: input, shape index: {}]
  %s5 = inlined_call_operand.hbm [shape: f32[1,1024], index: 5, kind: input, shape index: {}]
  %s6 = inlined_call_operand.hbm [shape: f32[1,1024], index: 6, kind: input, shape index: {}]
  %s7 = inlined_call_operand.hbm [shape: f32[1,1024], index: 7, kind: input, shape index: {}]
  %s8 = inlined_call_operand.hbm [shape: f32[2,16,1024], index: 8, kind: output, shape index: {}]
  %s9 = sld [smem:[#allocation0]]
  $region89: #{tpu_custom_call.1} parent=0
    _
  %s11 = ssub.s32 1, %s9
  %s12 = scalar_select 0, %s11, %s9
  %14 = dma.hbm_to_smem %s0, 16, [#allocation3], [#allocation2]
  %15 = dma.done [#allocation2], 16
  %16 = sfence
  $region1: #{tpu_custom_call.1} parent=0
    #allocation4 [shape = 'u8[65536]{0}', space=vmem, size = 0x10000, scoped, tag = 'input window, operand 1']
    #allocation5 [shape = 's32[2]{0}', space=sflag, size = 0x8, scoped, tag = 'scoped memory for tpu_custom_call.1']
    #allocation6 [shape = 's32[2]{0}', space=sflag, size = 0x8, scoped, tag = 'scoped memory for tpu_custom_call.1']
    #allocation7 [shape = 'u8[1572864]{0}', space=vmem, size = 0x180000, scoped, tag = 'input window, operand 2, single buffered']
    #allocation8 [shape = 's32[1]{0}', space=sflag, size = 0x4, scoped, tag = 'scoped memory for tpu_custom_call.1']
    #allocation9 [shape = 'u8[3072]{0}', space=vmem, size = 0xc00, scoped, tag = 'input window, operand 3, single buffered']
    #allocation10 [shape = 'u8[524288]{0}', space=vmem, size = 0x80000, scoped, tag = 'input window, operand 4, single buffered']
    #allocation11 [shape = 's32[1]{0}', space=sflag, size = 0x4, scoped, tag = 'scoped memory for tpu_custom_call.1']
    #allocation12 [shape = 'u8[4096]{0}', space=vmem, size = 0x1000, scoped, tag = 'input window, operand 5, single buffered']
    #allocation13 [shape = 'u8[4096]{0}', space=vmem, size = 0x1000, scoped, tag = 'input window, operand 6, single buffered']
    #allocation14 [shape = 's32[1]{0}', space=sflag, size = 0x4, scoped, tag = 'scoped memory for tpu_custom_call.1']
    #allocation15 [shape = 'u8[4096]{0}', space=vmem, size = 0x1000, scoped, tag = 'input window, operand 7, single buffered']
    #allocation16 [shape = 'u8[131072]{0}', space=vmem, size = 0x20000, scoped, tag = 'output window, operand 0']
    %17 = vsyncpa [#allocation5], 0
    %s18 = scalar_lea.sflag [#allocation5], 1
    %19 = vsyncpa %s18, 0
    %20 = vsyncpa [#allocation8], 0
    %21 = vsyncpa [#allocation11], 0
    %22 = vsyncpa [#allocation14], 0
    %23 = vsyncpa [#allocation6], 0
    %s24 = scalar_lea.sflag [#allocation6], 1
    %25 = vsyncpa %s24, 0
    loop: start=0, step=1, limit=4
    $region2: #{tpu_custom_call.1} parent=1 // loop_pre_header
      _
    $region3: #{tpu_custom_call.1} parent=1 // loop_header
      %s27 = sphi 0, %s31
      %p28 = scmp.ge.s32.totalorder %s27, 4
      %s37 = sphi 0, %s39
      %s40 = sphi 0, %s37
      %s41 = sphi 0, %s40
      %s57 = sphi 0, %s41
      %s61 = sphi 0, %s61
      %s63 = sphi 0, %s61
      %s64 = sphi 0, %s63
      %s78 = sphi 0, %s64
      %s82 = sphi 0, %s82
      %s84 = sphi 0, %s82
      %s85 = sphi 0, %s84
      %s99 = sphi 0, %s85
      %s103 = sphi 0, %s103
      %s105 = sphi 0, %s103
      %s106 = sphi 0, %s105
      %s120 = sphi 0, %s106
      %s124 = sphi 0, %s124
      %s126 = sphi 0, %s124
      %s127 = sphi 0, %s126
      %s141 = sphi 0, %s127
      %s145 = sphi 0, %s145
      %s147 = sphi 0, %s145
      %s148 = sphi 0, %s147
      %s162 = sphi 0, %s148
      %s166 = sphi 0, %s166
      %s168 = sphi 0, %s166
      %s169 = sphi 0, %s168
      %s183 = sphi 0, %s169
      %s189 = sphi 0, %s191
      %s192 = sphi 0, %s189
      %s193 = sphi 0, %s192
      %s209 = sphi 0, %s193
    $region4: #{tpu_custom_call.1} parent=1 // loop_header_branch
      %30 = sbr.rel (%p28) target = $region8
    $region5: #{tpu_custom_call.1} parent=1 // loop_body
      %s32 = ssub.s32 %s27, 1
      %s33 = ssub.s32 %s27, 2
      %s34 = sadd.s32 %s27, 1
      %s35 = ssub.s32 %s27, %s34
      %p36 = scmp.eq.s32.totalorder %s35, 0
      %s38 = sadd.s32 %s37, 1
      %s39 = scalar_select %p36, %s37, %s38
      %p42 = pneg %p36
      %p43 = scmp.eq.s32.totalorder %s27, 1
      %p44 = por %p42, %p43
      %p45 = scmp.ne.s32.totalorder %s37, %s40
      %p46 = scmp.eq.s32.totalorder %s27, 0
      %p47 = por %p45, %p46
      %p48 = scmp.ne.s32.totalorder %s37, %s40
      %p49 = scmp.eq.s32.totalorder %s32, 1
      %p50 = por %p48, %p49
      %p51 = scmp.ne.s32.totalorder %s40, %s41
      %p52 = scmp.eq.s32.totalorder %s32, 0
      %p53 = por %p51, %p52
      %p54 = scmp.ne.s32.totalorder %s40, %s41
      %p55 = scmp.eq.s32.totalorder %s33, 1
      %p56 = por %p54, %p55
      %p58 = scmp.ne.s32.totalorder %s41, %s57
      %p59 = scmp.eq.s32.totalorder %s33, 0
      %p60 = por %p58, %p59
      %s62 = sadd.s32 %s61, 1
      %p65 = scmp.eq.s32.totalorder %s27, 1
      %p66 = scmp.ne.s32.totalorder %s61, %s63
      %p67 = scmp.eq.s32.totalorder %s27, 0
      %p68 = por %p66, %p67
      %p69 = scmp.ne.s32.totalorder %s61, %s63
      %p70 = scmp.eq.s32.totalorder %s32, 1
      %p71 = por %p69, %p70
      %p72 = scmp.ne.s32.totalorder %s63, %s64
      %p73 = scmp.eq.s32.totalorder %s32, 0
      %p74 = por %p72, %p73
      %p75 = scmp.ne.s32.totalorder %s63, %s64
      %p76 = scmp.eq.s32.totalorder %s33, 1
      %p77 = por %p75, %p76
      %p79 = scmp.ne.s32.totalorder %s64, %s78
      %p80 = scmp.eq.s32.totalorder %s33, 0
      %p81 = por %p79, %p80
      %s83 = sadd.s32 %s82, 1
      %p86 = scmp.eq.s32.totalorder %s27, 1
      %p87 = scmp.ne.s32.totalorder %s82, %s84
      %p88 = scmp.eq.s32.totalorder %s27, 0
      %p89 = por %p87, %p88
      %p90 = scmp.ne.s32.totalorder %s82, %s84
      %p91 = scmp.eq.s32.totalorder %s32, 1
      %p92 = por %p90, %p91
      %p93 = scmp.ne.s32.totalorder %s84, %s85
      %p94 = scmp.eq.s32.totalorder %s32, 0
      %p95 = por %p93, %p94
      %p96 = scmp.ne.s32.totalorder %s84, %s85
      %p97 = scmp.eq.s32.totalorder %s33, 1
      %p98 = por %p96, %p97
      %p100 = scmp.ne.s32.totalorder %s85, %s99
      %p101 = scmp.eq.s32.totalorder %s33, 0
      %p102 = por %p100, %p101
      %s104 = sadd.s32 %s103, 1
      %p107 = scmp.eq.s32.totalorder %s27, 1
      %p108 = scmp.ne.s32.totalorder %s103, %s105
      %p109 = scmp.eq.s32.totalorder %s27, 0
      %p110 = por %p108, %p109
      %p111 = scmp.ne.s32.totalorder %s103, %s105
      %p112 = scmp.eq.s32.totalorder %s32, 1
      %p113 = por %p111, %p112
      %p114 = scmp.ne.s32.totalorder %s105, %s106
      %p115 = scmp.eq.s32.totalorder %s32, 0
      %p116 = por %p114, %p115
      %p117 = scmp.ne.s32.totalorder %s105, %s106
      %p118 = scmp.eq.s32.totalorder %s33, 1
      %p119 = por %p117, %p118
      %p121 = scmp.ne.s32.totalorder %s106, %s120
      %p122 = scmp.eq.s32.totalorder %s33, 0
      %p123 = por %p121, %p122
      %s125 = sadd.s32 %s124, 1
      %p128 = scmp.eq.s32.totalorder %s27, 1
      %p129 = scmp.ne.s32.totalorder %s124, %s126
      %p130 = scmp.eq.s32.totalorder %s27, 0
      %p131 = por %p129, %p130
      %p132 = scmp.ne.s32.totalorder %s124, %s126
      %p133 = scmp.eq.s32.totalorder %s32, 1
      %p134 = por %p132, %p133
      %p135 = scmp.ne.s32.totalorder %s126, %s127
      %p136 = scmp.eq.s32.totalorder %s32, 0
      %p137 = por %p135, %p136
      %p138 = scmp.ne.s32.totalorder %s126, %s127
      %p139 = scmp.eq.s32.totalorder %s33, 1
      %p140 = por %p138, %p139
      %p142 = scmp.ne.s32.totalorder %s127, %s141
      %p143 = scmp.eq.s32.totalorder %s33, 0
      %p144 = por %p142, %p143
      %s146 = sadd.s32 %s145, 1
      %p149 = scmp.eq.s32.totalorder %s27, 1
      %p150 = scmp.ne.s32.totalorder %s145, %s147
      %p151 = scmp.eq.s32.totalorder %s27, 0
      %p152 = por %p150, %p151
      %p153 = scmp.ne.s32.totalorder %s145, %s147
      %p154 = scmp.eq.s32.totalorder %s32, 1
      %p155 = por %p153, %p154
      %p156 = scmp.ne.s32.totalorder %s147, %s148
      %p157 = scmp.eq.s32.totalorder %s32, 0
      %p158 = por %p156, %p157
      %p159 = scmp.ne.s32.totalorder %s147, %s148
      %p160 = scmp.eq.s32.totalorder %s33, 1
      %p161 = por %p159, %p160
      %p163 = scmp.ne.s32.totalorder %s148, %s162
      %p164 = scmp.eq.s32.totalorder %s33, 0
      %p165 = por %p163, %p164
      %s167 = sadd.s32 %s166, 1
      %p170 = scmp.eq.s32.totalorder %s27, 1
      %p171 = scmp.ne.s32.totalorder %s166, %s168
      %p172 = scmp.eq.s32.totalorder %s27, 0
      %p173 = por %p171, %p172
      %p174 = scmp.ne.s32.totalorder %s166, %s168
      %p175 = scmp.eq.s32.totalorder %s32, 1
      %p176 = por %p174, %p175
      %p177 = scmp.ne.s32.totalorder %s168, %s169
      %p178 = scmp.eq.s32.totalorder %s32, 0
      %p179 = por %p177, %p178
      %p180 = scmp.ne.s32.totalorder %s168, %s169
      %p181 = scmp.eq.s32.totalorder %s33, 1
      %p182 = por %p180, %p181
      %p184 = scmp.ne.s32.totalorder %s169, %s183
      %p185 = scmp.eq.s32.totalorder %s33, 0
      %p186 = por %p184, %p185
      %s187 = ssub.s32 %s27, %s34
      %p188 = scmp.eq.s32.totalorder %s187, 0
      %s190 = sadd.s32 %s189, 1
      %s191 = scalar_select %p188, %s189, %s190
      %p194 = pneg %p188
      %p195 = scmp.eq.s32.totalorder %s27, 1
      %p196 = por %p194, %p195
      %p197 = scmp.ne.s32.totalorder %s189, %s192
      %p198 = scmp.eq.s32.totalorder %s27, 0
      %p199 = por %p197, %p198
      %p200 = scmp.ne.s32.totalorder %s189, %s192
      %p201 = scmp.eq.s32.totalorder %s32, 1
      %p202 = por %p200, %p201
      %p203 = scmp.ne.s32.totalorder %s192, %s193
      %p204 = scmp.eq.s32.totalorder %s32, 0
      %p205 = por %p203, %p204
      %p206 = scmp.ne.s32.totalorder %s192, %s193
      %p207 = scmp.eq.s32.totalorder %s33, 1
      %p208 = por %p206, %p207
      %p210 = scmp.ne.s32.totalorder %s193, %s209
      %p211 = scmp.eq.s32.totalorder %s33, 0
      %p212 = por %p210, %p211
      %p213 = scmp.le.s32.totalorder 1, %s27
      %p214 = scmp.lt.s32.totalorder %s27, 3
      %p215 = pnand %p213, %p214
      %p216 = pneg %p215
      // Predicated region
      $region9: #{tpu_custom_call.1} parent=5 // pred_check
        _
      $region10: #{tpu_custom_call.1} parent=5 // pred_check_branch
        %218 = sbr.rel (%p215) target = $region12
      $region11: #{tpu_custom_call.1} parent=5 // pred_region
        %s219 = ssub.s32 %s27, 1
        // Predicated region
        $region13: #{tpu_custom_call.1} parent=11 // pred_check
          %p220 = pneg %p74
        $region14: #{tpu_custom_call.1} parent=11 // pred_check_branch
          %222 = sbr.rel (%p220) target = $region16
        $region15: #{tpu_custom_call.1} parent=11 // pred_region
          %s224 = ssub.s32 49152, 49152
          %225 = vsyncadd [#allocation8], %s224
          %s226 = sshll.u32 [#allocation7], 4
          %s227 = int_to_ptr.vmem [resolvable:$true] %s226
          %232 = dma.hbm_to_vmem [thread:$0]  %s2, 49152, %s227, [#allocation8], 384, 384, 24
        $region16: #{tpu_custom_call.1} parent=11 // pred_fallthru
          _
        // Predicated region
        $region17: #{tpu_custom_call.1} parent=11 // pred_check
          %p233 = pneg %p95
        $region18: #{tpu_custom_call.1} parent=11 // pred_check_branch
          %235 = sbr.rel (%p233) target = $region20
        $region19: #{tpu_custom_call.1} parent=11 // pred_region
          %s237 = ssub.s32 96, 96
          %238 = vsyncadd [#allocation8], %s237
          %s240 = sshll.u32 [#allocation9], 4
          %s241 = int_to_ptr.vmem [resolvable:$true] %s240
          %243 = dma.hbm_to_vmem [thread:$0]  %s3, 96, %s241, [#allocation8]
        $region20: #{tpu_custom_call.1} parent=11 // pred_fallthru
          _
        // Predicated region
        $region21: #{tpu_custom_call.1} parent=11 // pred_check
          %p244 = pneg %p116
        $region22: #{tpu_custom_call.1} parent=11 // pred_check_branch
          %246 = sbr.rel (%p244) target = $region24
        $region23: #{tpu_custom_call.1} parent=11 // pred_region
          %s248 = ssub.s32 16384, 16384
          %249 = vsyncadd [#allocation11], %s248
          %s250 = sshll.u32 [#allocation10], 4
          %s251 = int_to_ptr.vmem [resolvable:$true] %s250
          %256 = dma.hbm_to_vmem [thread:$0]  %s4, 16384, %s251, [#allocation11], 512, 512, 32
        $region24: #{tpu_custom_call.1} parent=11 // pred_fallthru
          _
        // Predicated region
        $region25: #{tpu_custom_call.1} parent=11 // pred_check
          %p257 = pneg %p137
        $region26: #{tpu_custom_call.1} parent=11 // pred_check_branch
          %259 = sbr.rel (%p257) target = $region28
        $region27: #{tpu_custom_call.1} parent=11 // pred_region
          %s261 = ssub.s32 128, 128
          %262 = vsyncadd [#allocation11], %s261
          %s264 = sshll.u32 [#allocation12], 4
          %s265 = int_to_ptr.vmem [resolvable:$true] %s264
          %267 = dma.hbm_to_vmem [thread:$0]  %s5, 128, %s265, [#allocation11]
        $region28: #{tpu_custom_call.1} parent=11 // pred_fallthru
          _
        // Predicated region
        $region29: #{tpu_custom_call.1} parent=11 // pred_check
          %p268 = pneg %p158
        $region30: #{tpu_custom_call.1} parent=11 // pred_check_branch
          %270 = sbr.rel (%p268) target = $region32
        $region31: #{tpu_custom_call.1} parent=11 // pred_region
          %s272 = ssub.s32 128, 128
          %273 = vsyncadd [#allocation14], %s272
          %s275 = sshll.u32 [#allocation13], 4
          %s276 = int_to_ptr.vmem [resolvable:$true] %s275
          %278 = dma.hbm_to_vmem [thread:$0]  %s6, 128, %s276, [#allocation14]
        $region32: #{tpu_custom_call.1} parent=11 // pred_fallthru
          _
        // Predicated region
        $region33: #{tpu_custom_call.1} parent=11 // pred_check
          %p279 = pneg %p179
        $region34: #{tpu_custom_call.1} parent=11 // pred_check_branch
          %281 = sbr.rel (%p279) target = $region36
        $region35: #{tpu_custom_call.1} parent=11 // pred_region
          %s283 = ssub.s32 128, 128
          %284 = vsyncadd [#allocation14], %s283
          %s286 = sshll.u32 [#allocation15], 4
          %s287 = int_to_ptr.vmem [resolvable:$true] %s286
          %289 = dma.hbm_to_vmem [thread:$0]  %s7, 128, %s287, [#allocation14]
        $region36: #{tpu_custom_call.1} parent=11 // pred_fallthru
          _
      $region12: #{tpu_custom_call.1} parent=5 // pred_fallthru
        _
      %p290 = scmp.lt.s32.totalorder %s27, 2
      // Predicated region
      $region37: #{tpu_custom_call.1} parent=5 // pred_check
        %p291 = pneg %p290
      $region38: #{tpu_custom_call.1} parent=5 // pred_check_branch
        %293 = sbr.rel (%p291) target = $region40
      $region39: #{tpu_custom_call.1} parent=5 // pred_region
        // Predicated region
        $region41: #{tpu_custom_call.1} parent=39 // pred_check
          %p294 = pneg %p47
        $region42: #{tpu_custom_call.1} parent=39 // pred_check_branch
          %296 = sbr.rel (%p294) target = $region44
        $region43: #{tpu_custom_call.1} parent=39 // pred_region
          %s297 = sand.u32 %s37, 1
          %s298 = scalar_lea.sflag [#allocation5], %s297
          %s299 = sand.u32 %s37, 1
          %s300 = smul.addr %s299, 64
          %s301 = scalar_lea.vmem [#allocation4], %s300
          %s303 = ssub.s32 1024, 1024
          %304 = vsyncadd %s298, %s303
          %s305 = smul.addr %s27, 16
          %s306 = smul.addr %s305, 64
          %s307 = scalar_lea.hbm %s1, %s306
          %s308 = sshll.u32 %s301, 4
          %s309 = int_to_ptr.vmem [resolvable:$true] %s308
          %314 = dma.hbm_to_vmem [thread:$0]  %s307, 1024, %s309, %s298, 512, 512, 32
        $region44: #{tpu_custom_call.1} parent=39 // pred_fallthru
          _
      $region40: #{tpu_custom_call.1} parent=5 // pred_fallthru
        _
      %p315 = scmp.le.s32.totalorder 1, %s27
      %p316 = scmp.lt.s32.totalorder %s27, 3
      %p317 = pnand %p315, %p316
      %p318 = pneg %p317
      // Predicated region
      $region45: #{tpu_custom_call.1} parent=5 // pred_check
        _
      $region46: #{tpu_custom_call.1} parent=5 // pred_check_branch
        %320 = sbr.rel (%p317) target = $region48
      $region47: #{tpu_custom_call.1} parent=5 // pred_region
        %s321 = ssub.s32 %s27, 1
        %s322 = sand.u32 %s40, 1
        %s323 = scalar_lea.sflag [#allocation5], %s322
        %s324 = sand.u32 %s40, 1
        %s325 = smul.addr %s324, 64
        %s326 = scalar_lea.vmem [#allocation4], %s325
        // Predicated region
        $region49: #{tpu_custom_call.1} parent=47 // pred_check
          %p327 = pneg %p53
        $region50: #{tpu_custom_call.1} parent=47 // pred_check_branch
          %329 = sbr.rel (%p327) target = $region52
        $region51: #{tpu_custom_call.1} parent=47 // pred_region
          %330 = dma.done %s323, 1024
        $region52: #{tpu_custom_call.1} parent=47 // pred_fallthru
          _
        // Predicated region
        $region53: #{tpu_custom_call.1} parent=47 // pred_check
          %p331 = pneg %p74
        $region54: #{tpu_custom_call.1} parent=47 // pred_check_branch
          %333 = sbr.rel (%p331) target = $region56
        $region55: #{tpu_custom_call.1} parent=47 // pred_region
          %334 = dma.done [#allocation8], 49152
        $region56: #{tpu_custom_call.1} parent=47 // pred_fallthru
          _
        // Predicated region
        $region57: #{tpu_custom_call.1} parent=47 // pred_check
          %p335 = pneg %p95
        $region58: #{tpu_custom_call.1} parent=47 // pred_check_branch
          %337 = sbr.rel (%p335) target = $region60
        $region59: #{tpu_custom_call.1} parent=47 // pred_region
          %338 = dma.done [#allocation8], 96
        $region60: #{tpu_custom_call.1} parent=47 // pred_fallthru
          _
        // Predicated region
        $region61: #{tpu_custom_call.1} parent=47 // pred_check
          %p339 = pneg %p116
        $region62: #{tpu_custom_call.1} parent=47 // pred_check_branch
          %341 = sbr.rel (%p339) target = $region64
        $region63: #{tpu_custom_call.1} parent=47 // pred_region
          %342 = dma.done [#allocation11], 16384
        $region64: #{tpu_custom_call.1} parent=47 // pred_fallthru
          _
        // Predicated region
        $region65: #{tpu_custom_call.1} parent=47 // pred_check
          %p343 = pneg %p137
        $region66: #{tpu_custom_call.1} parent=47 // pred_check_branch
          %345 = sbr.rel (%p343) target = $region68
        $region67: #{tpu_custom_call.1} parent=47 // pred_region
          %346 = dma.done [#allocation11], 128
        $region68: #{tpu_custom_call.1} parent=47 // pred_fallthru
          _
        // Predicated region
        $region69: #{tpu_custom_call.1} parent=47 // pred_check
          %p347 = pneg %p158
        $region70: #{tpu_custom_call.1} parent=47 // pred_check_branch
          %349 = sbr.rel (%p347) target = $region72
        $region71: #{tpu_custom_call.1} parent=47 // pred_region
          %350 = dma.done [#allocation14], 128
        $region72: #{tpu_custom_call.1} parent=47 // pred_fallthru
          _
        // Predicated region
        $region73: #{tpu_custom_call.1} parent=47 // pred_check
          %p351 = pneg %p179
        $region74: #{tpu_custom_call.1} parent=47 // pred_check_branch
          %353 = sbr.rel (%p351) target = $region76
        $region75: #{tpu_custom_call.1} parent=47 // pred_region
          %354 = dma.done [#allocation14], 128
        $region76: #{tpu_custom_call.1} parent=47 // pred_fallthru
          _
        %s355 = sand.u32 %s40, 1
        %s356 = scalar_lea.sflag [#allocation5], %s355
        %s357 = sand.u32 %s40, 1
        %s358 = smul.addr %s357, 64
        %s359 = scalar_lea.vmem [#allocation4], %s358
        %p360 = pneg %p53
        %p361 = pneg %p50
        %p362 = pneg %p74
        %p363 = pneg %p71
        %p364 = pneg %p95
        %p365 = pneg %p92
        %p366 = pneg %p116
        %p367 = pneg %p113
        %p368 = pneg %p137
        %p369 = pneg %p134
        %p370 = pneg %p158
        %p371 = pneg %p155
        %p372 = pneg %p179
        %p373 = pneg %p176
        %p374 = pneg %p205
        %p375 = pneg %p202
        %s376 = sand.u32 %s192, 1
        %s377 = scalar_lea.sflag [#allocation6], %s376
        %s378 = sand.u32 %s192, 1
        %s379 = smul.addr %s378, 128
        %s380 = scalar_lea.vmem [#allocation16], %s379
        %s382 = sld [smem:[#allocation3 + %s32]]
        %v383 = vld [vmem:[%s326] sm:$0xff]
        %v384 = vld [vmem:[%s326 + $0x8] sm:$0xff]
        %v385 = vld [vmem:[%s326 + $0x10] sm:$0xff]
        %v386 = vld [vmem:[%s326 + $0x18] sm:$0xff]
        %v387 = vld [vmem:[%s326 + $0x20] sm:$0xff]
        %v388 = vld [vmem:[%s326 + $0x28] sm:$0xff]
        %v389 = vld [vmem:[%s326 + $0x30] sm:$0xff]
        %v390 = vld [vmem:[%s326 + $0x38] sm:$0xff]
        %v391 = vld [vmem:[#allocation7] sm:$0xff]
        %v392 = vld [vmem:[#allocation7 + $0x8] sm:$0xff]
        %v393 = vld [vmem:[#allocation7 + $0x10] sm:$0xff]
        %v394 = vld [vmem:[#allocation7 + $0x18] sm:$0xff]
        %v395 = vld [vmem:[#allocation7 + $0x20] sm:$0xff]
        %v396 = vld [vmem:[#allocation7 + $0x28] sm:$0xff]
        %v397 = vld [vmem:[#allocation7 + $0x30] sm:$0xff]
        %v398 = vld [vmem:[#allocation7 + $0x38] sm:$0xff]
        %v399 = vld [vmem:[#allocation7 + $0x40] sm:$0xff]
        %v400 = vld [vmem:[#allocation7 + $0x48] sm:$0xff]
        %v401 = vld [vmem:[#allocation7 + $0x50] sm:$0xff]
        %v402 = vld [vmem:[#allocation7 + $0x58] sm:$0xff]
        %v403 = vld [vmem:[#allocation7 + $0x60] sm:$0xff]
        %v404 = vld [vmem:[#allocation7 + $0x68] sm:$0xff]
        %v405 = vld [vmem:[#allocation7 + $0x70] sm:$0xff]
        %v406 = vld [vmem:[#allocation7 + $0x78] sm:$0xff]
        %v407 = vld [vmem:[#allocation7 + $0x80] sm:$0xff]
        %v408 = vld [vmem:[#allocation7 + $0x88] sm:$0xff]
        %v409 = vld [vmem:[#allocation7 + $0x90] sm:$0xff]
        %v410 = vld [vmem:[#allocation7 + $0x98] sm:$0xff]
        %v411 = vld [vmem:[#allocation7 + $0xa0] sm:$0xff]
        %v412 = vld [vmem:[#allocation7 + $0xa8] sm:$0xff]
        %v413 = vld [vmem:[#allocation7 + $0xb0] sm:$0xff]
        %v414 = vld [vmem:[#allocation7 + $0xb8] sm:$0xff]
        %v415 = vld [vmem:[#allocation7 + $0xc0] sm:$0xff]
        %v416 = vld [vmem:[#allocation7 + $0xc8] sm:$0xff]
        %v417 = vld [vmem:[#allocation7 + $0xd0] sm:$0xff]
        %v418 = vld [vmem:[#allocation7 + $0xd8] sm:$0xff]
        %v419 = vld [vmem:[#allocation7 + $0xe0] sm:$0xff]
        %v420 = vld [vmem:[#allocation7 + $0xe8] sm:$0xff]
        %v421 = vld [vmem:[#allocation7 + $0xf0] sm:$0xff]
        %v422 = vld [vmem:[#allocation7 + $0xf8] sm:$0xff]
        %v423 = vld [vmem:[#allocation7 + $0x100] sm:$0xff]
        %v424 = vld [vmem:[#allocation7 + $0x108] sm:$0xff]
        %v425 = vld [vmem:[#allocation7 + $0x110] sm:$0xff]
        %v426 = vld [vmem:[#allocation7 + $0x118] sm:$0xff]
        %v427 = vld [vmem:[#allocation7 + $0x120] sm:$0xff]
        %v428 = vld [vmem:[#allocation7 + $0x128] sm:$0xff]
        %v429 = vld [vmem:[#allocation7 + $0x130] sm:$0xff]
        %v430 = vld [vmem:[#allocation7 + $0x138] sm:$0xff]
        %v431 = vld [vmem:[#allocation7 + $0x140] sm:$0xff]
        %v432 = vld [vmem:[#allocation7 + $0x148] sm:$0xff]
        %v433 = vld [vmem:[#allocation7 + $0x150] sm:$0xff]
        %v434 = vld [vmem:[#allocation7 + $0x158] sm:$0xff]
        %v435 = vld [vmem:[#allocation7 + $0x160] sm:$0xff]
        %v436 = vld [vmem:[#allocation7 + $0x168] sm:$0xff]
        %v437 = vld [vmem:[#allocation7 + $0x170] sm:$0xff]
        %v438 = vld [vmem:[#allocation7 + $0x178] sm:$0xff]
        %v439 = vld [vmem:[#allocation7 + $0x180] sm:$0xff]
        %v440 = vld [vmem:[#allocation7 + $0x188] sm:$0xff]
        %v441 = vld [vmem:[#allocation7 + $0x190] sm:$0xff]
        %v442 = vld [vmem:[#allocation7 + $0x198] sm:$0xff]
        %v443 = vld [vmem:[#allocation7 + $0x1a0] sm:$0xff]
        %v444 = vld [vmem:[#allocation7 + $0x1a8] sm:$0xff]
        %v445 = vld [vmem:[#allocation7 + $0x1b0] sm:$0xff]
        %v446 = vld [vmem:[#allocation7 + $0x1b8] sm:$0xff]
        %v447 = vld [vmem:[#allocation7 + $0x1c0] sm:$0xff]
        %v448 = vld [vmem:[#allocation7 + $0x1c8] sm:$0xff]
        %v449 = vld [vmem:[#allocation7 + $0x1d0] sm:$0xff]
        %v450 = vld [vmem:[#allocation7 + $0x1d8] sm:$0xff]
        %v451 = vld [vmem:[#allocation7 + $0x1e0] sm:$0xff]
        %v452 = vld [vmem:[#allocation7 + $0x1e8] sm:$0xff]
        %v453 = vld [vmem:[#allocation7 + $0x1f0] sm:$0xff]
        %v454 = vld [vmem:[#allocation7 + $0x1f8] sm:$0xff]
        %v455 = vld [vmem:[#allocation7 + $0x200] sm:$0xff]
        %v456 = vld [vmem:[#allocation7 + $0x208] sm:$0xff]
        %v457 = vld [vmem:[#allocation7 + $0x210] sm:$0xff]
        %v458 = vld [vmem:[#allocation7 + $0x218] sm:$0xff]
        %v459 = vld [vmem:[#allocation7 + $0x220] sm:$0xff]
        %v460 = vld [vmem:[#allocation7 + $0x228] sm:$0xff]
        %v461 = vld [vmem:[#allocation7 + $0x230] sm:$0xff]
        %v462 = vld [vmem:[#allocation7 + $0x238] sm:$0xff]
        %v463 = vld [vmem:[#allocation7 + $0x240] sm:$0xff]
        %v464 = vld [vmem:[#allocation7 + $0x248] sm:$0xff]
        %v465 = vld [vmem:[#allocation7 + $0x250] sm:$0xff]
        %v466 = vld [vmem:[#allocation7 + $0x258] sm:$0xff]
        %v467 = vld [vmem:[#allocation7 + $0x260] sm:$0xff]
        %v468 = vld [vmem:[#allocation7 + $0x268] sm:$0xff]
        %v469 = vld [vmem:[#allocation7 + $0x270] sm:$0xff]
        %v470 = vld [vmem:[#allocation7 + $0x278] sm:$0xff]
        %v471 = vld [vmem:[#allocation7 + $0x280] sm:$0xff]
        %v472 = vld [vmem:[#allocation7 + $0x288] sm:$0xff]
        %v473 = vld [vmem:[#allocation7 + $0x290] sm:$0xff]
        %v474 = vld [vmem:[#allocation7 + $0x298] sm:$0xff]
        %v475 = vld [vmem:[#allocation7 + $0x2a0] sm:$0xff]
        %v476 = vld [vmem:[#allocation7 + $0x2a8] sm:$0xff]
        %v477 = vld [vmem:[#allocation7 + $0x2b0] sm:$0xff]
        %v478 = vld [vmem:[#allocation7 + $0x2b8] sm:$0xff]
        %v479 = vld [vmem:[#allocation7 + $0x2c0] sm:$0xff]
        %v480 = vld [vmem:[#allocation7 + $0x2c8] sm:$0xff]
        %v481 = vld [vmem:[#allocation7 + $0x2d0] sm:$0xff]
        %v482 = vld [vmem:[#allocation7 + $0x2d8] sm:$0xff]
        %v483 = vld [vmem:[#allocation7 + $0x2e0] sm:$0xff]
        %v484 = vld [vmem:[#allocation7 + $0x2e8] sm:$0xff]
        %v485 = vld [vmem:[#allocation7 + $0x2f0] sm:$0xff]
        %v486 = vld [vmem:[#allocation7 + $0x2f8] sm:$0xff]
        %v487 = vld [vmem:[#allocation7 + $0x300] sm:$0xff]
        %v488 = vld [vmem:[#allocation7 + $0x308] sm:$0xff]
        %v489 = vld [vmem:[#allocation7 + $0x310] sm:$0xff]
        %v490 = vld [vmem:[#allocation7 + $0x318] sm:$0xff]
        %v491 = vld [vmem:[#allocation7 + $0x320] sm:$0xff]
        %v492 = vld [vmem:[#allocation7 + $0x328] sm:$0xff]
        %v493 = vld [vmem:[#allocation7 + $0x330] sm:$0xff]
        %v494 = vld [vmem:[#allocation7 + $0x338] sm:$0xff]
        %v495 = vld [vmem:[#allocation7 + $0x340] sm:$0xff]
        %v496 = vld [vmem:[#allocation7 + $0x348] sm:$0xff]
        %v497 = vld [vmem:[#allocation7 + $0x350] sm:$0xff]
        %v498 = vld [vmem:[#allocation7 + $0x358] sm:$0xff]
        %v499 = vld [vmem:[#allocation7 + $0x360] sm:$0xff]
        %v500 = vld [vmem:[#allocation7 + $0x368] sm:$0xff]
        %v501 = vld [vmem:[#allocation7 + $0x370] sm:$0xff]
        %v502 = vld [vmem:[#allocation7 + $0x378] sm:$0xff]
        %v503 = vld [vmem:[#allocation7 + $0x380] sm:$0xff]
        %v504 = vld [vmem:[#allocation7 + $0x388] sm:$0xff]
        %v505 = vld [vmem:[#allocation7 + $0x390] sm:$0xff]
        %v506 = vld [vmem:[#allocation7 + $0x398] sm:$0xff]
        %v507 = vld [vmem:[#allocation7 + $0x3a0] sm:$0xff]
        %v508 = vld [vmem:[#allocation7 + $0x3a8] sm:$0xff]
        %v509 = vld [vmem:[#allocation7 + $0x3b0] sm:$0xff]
        %v510 = vld [vmem:[#allocation7 + $0x3b8] sm:$0xff]
        %v511 = vld [vmem:[#allocation7 + $0x3c0] sm:$0xff]
        %v512 = vld [vmem:[#allocation7 + $0x3c8] sm:$0xff]
        %v513 = vld [vmem:[#allocation7 + $0x3d0] sm:$0xff]
        %v514 = vld [vmem:[#allocation7 + $0x3d8] sm:$0xff]
        %v515 = vld [vmem:[#allocation7 + $0x3e0] sm:$0xff]
        %v516 = vld [vmem:[#allocation7 + $0x3e8] sm:$0xff]
        %v517 = vld [vmem:[#allocation7 + $0x3f0] sm:$0xff]
        %v518 = vld [vmem:[#allocation7 + $0x3f8] sm:$0xff]
        %v519 = vld [vmem:[#allocation7 + $0x400] sm:$0xff]
        %v520 = vld [vmem:[#allocation7 + $0x408] sm:$0xff]
        %v521 = vld [vmem:[#allocation7 + $0x410] sm:$0xff]
        %v522 = vld [vmem:[#allocation7 + $0x418] sm:$0xff]
        %v523 = vld [vmem:[#allocation7 + $0x420] sm:$0xff]
        %v524 = vld [vmem:[#allocation7 + $0x428] sm:$0xff]
        %v525 = vld [vmem:[#allocation7 + $0x430] sm:$0xff]
        %v526 = vld [vmem:[#allocation7 + $0x438] sm:$0xff]
        %v527 = vld [vmem:[#allocation7 + $0x440] sm:$0xff]
        %v528 = vld [vmem:[#allocation7 + $0x448] sm:$0xff]
        %v529 = vld [vmem:[#allocation7 + $0x450] sm:$0xff]
        %v530 = vld [vmem:[#allocation7 + $0x458] sm:$0xff]
        %v531 = vld [vmem:[#allocation7 + $0x460] sm:$0xff]
        %v532 = vld [vmem:[#allocation7 + $0x468] sm:$0xff]
        %v533 = vld [vmem:[#allocation7 + $0x470] sm:$0xff]
        %v534 = vld [vmem:[#allocation7 + $0x478] sm:$0xff]
        %v535 = vld [vmem:[#allocation7 + $0x480] sm:$0xff]
        %v536 = vld [vmem:[#allocation7 + $0x488] sm:$0xff]
        %v537 = vld [vmem:[#allocation7 + $0x490] sm:$0xff]
        %v538 = vld [vmem:[#allocation7 + $0x498] sm:$0xff]
        %v539 = vld [vmem:[#allocation7 + $0x4a0] sm:$0xff]
        %v540 = vld [vmem:[#allocation7 + $0x4a8] sm:$0xff]
        %v541 = vld [vmem:[#allocation7 + $0x4b0] sm:$0xff]
        %v542 = vld [vmem:[#allocation7 + $0x4b8] sm:$0xff]
        %v543 = vld [vmem:[#allocation7 + $0x4c0] sm:$0xff]
        %v544 = vld [vmem:[#allocation7 + $0x4c8] sm:$0xff]
        %v545 = vld [vmem:[#allocation7 + $0x4d0] sm:$0xff]
        %v546 = vld [vmem:[#allocation7 + $0x4d8] sm:$0xff]
        %v547 = vld [vmem:[#allocation7 + $0x4e0] sm:$0xff]
        %v548 = vld [vmem:[#allocation7 + $0x4e8] sm:$0xff]
        %v549 = vld [vmem:[#allocation7 + $0x4f0] sm:$0xff]
        %v550 = vld [vmem:[#allocation7 + $0x4f8] sm:$0xff]
        %v551 = vld [vmem:[#allocation7 + $0x500] sm:$0xff]
        %v552 = vld [vmem:[#allocation7 + $0x508] sm:$0xff]
        %v553 = vld [vmem:[#allocation7 + $0x510] sm:$0xff]
        %v554 = vld [vmem:[#allocation7 + $0x518] sm:$0xff]
        %v555 = vld [vmem:[#allocation7 + $0x520] sm:$0xff]
        %v556 = vld [vmem:[#allocation7 + $0x528] sm:$0xff]
        %v557 = vld [vmem:[#allocation7 + $0x530] sm:$0xff]
        %v558 = vld [vmem:[#allocation7 + $0x538] sm:$0xff]
        %v559 = vld [vmem:[#allocation7 + $0x540] sm:$0xff]
        %v560 = vld [vmem:[#allocation7 + $0x548] sm:$0xff]
        %v561 = vld [vmem:[#allocation7 + $0x550] sm:$0xff]
        %v562 = vld [vmem:[#allocation7 + $0x558] sm:$0xff]
        %v563 = vld [vmem:[#allocation7 + $0x560] sm:$0xff]
        %v564 = vld [vmem:[#allocation7 + $0x568] sm:$0xff]
        %v565 = vld [vmem:[#allocation7 + $0x570] sm:$0xff]
        %v566 = vld [vmem:[#allocation7 + $0x578] sm:$0xff]
        %v567 = vld [vmem:[#allocation7 + $0x580] sm:$0xff]
        %v568 = vld [vmem:[#allocation7 + $0x588] sm:$0xff]
        %v569 = vld [vmem:[#allocation7 + $0x590] sm:$0xff]
        %v570 = vld [vmem:[#allocation7 + $0x598] sm:$0xff]
        %v571 = vld [vmem:[#allocation7 + $0x5a0] sm:$0xff]
        %v572 = vld [vmem:[#allocation7 + $0x5a8] sm:$0xff]
        %v573 = vld [vmem:[#allocation7 + $0x5b0] sm:$0xff]
        %v574 = vld [vmem:[#allocation7 + $0x5b8] sm:$0xff]
        %v575 = vld [vmem:[#allocation7 + $0x5c0] sm:$0xff]
        %v576 = vld [vmem:[#allocation7 + $0x5c8] sm:$0xff]
        %v577 = vld [vmem:[#allocation7 + $0x5d0] sm:$0xff]
        %v578 = vld [vmem:[#allocation7 + $0x5d8] sm:$0xff]
        %v579 = vld [vmem:[#allocation7 + $0x5e0] sm:$0xff]
        %v580 = vld [vmem:[#allocation7 + $0x5e8] sm:$0xff]
        %v581 = vld [vmem:[#allocation7 + $0x5f0] sm:$0xff]
        %v582 = vld [vmem:[#allocation7 + $0x5f8] sm:$0xff]
        %v583 = vld [vmem:[#allocation7 + $0x600] sm:$0xff]
        %v584 = vld [vmem:[#allocation7 + $0x608] sm:$0xff]
        %v585 = vld [vmem:[#allocation7 + $0x610] sm:$0xff]
        %v586 = vld [vmem:[#allocation7 + $0x618] sm:$0xff]
        %v587 = vld [vmem:[#allocation7 + $0x620] sm:$0xff]
        %v588 = vld [vmem:[#allocation7 + $0x628] sm:$0xff]
        %v589 = vld [vmem:[#allocation7 + $0x630] sm:$0xff]
        %v590 = vld [vmem:[#allocation7 + $0x638] sm:$0xff]
        %v591 = vld [vmem:[#allocation7 + $0x640] sm:$0xff]
        %v592 = vld [vmem:[#allocation7 + $0x648] sm:$0xff]
        %v593 = vld [vmem:[#allocation7 + $0x650] sm:$0xff]
        %v594 = vld [vmem:[#allocation7 + $0x658] sm:$0xff]
        %v595 = vld [vmem:[#allocation7 + $0x660] sm:$0xff]
        %v596 = vld [vmem:[#allocation7 + $0x668] sm:$0xff]
        %v597 = vld [vmem:[#allocation7 + $0x670] sm:$0xff]
        %v598 = vld [vmem:[#allocation7 + $0x678] sm:$0xff]
        %v599 = vld [vmem:[#allocation7 + $0x680] sm:$0xff]
        %v600 = vld [vmem:[#allocation7 + $0x688] sm:$0xff]
        %v601 = vld [vmem:[#allocation7 + $0x690] sm:$0xff]
        %v602 = vld [vmem:[#allocation7 + $0x698] sm:$0xff]
        %v603 = vld [vmem:[#allocation7 + $0x6a0] sm:$0xff]
        %v604 = vld [vmem:[#allocation7 + $0x6a8] sm:$0xff]
        %v605 = vld [vmem:[#allocation7 + $0x6b0] sm:$0xff]
        %v606 = vld [vmem:[#allocation7 + $0x6b8] sm:$0xff]
        %v607 = vld [vmem:[#allocation7 + $0x6c0] sm:$0xff]
        %v608 = vld [vmem:[#allocation7 + $0x6c8] sm:$0xff]
        %v609 = vld [vmem:[#allocation7 + $0x6d0] sm:$0xff]
        %v610 = vld [vmem:[#allocation7 + $0x6d8] sm:$0xff]
        %v611 = vld [vmem:[#allocation7 + $0x6e0] sm:$0xff]
        %v612 = vld [vmem:[#allocation7 + $0x6e8] sm:$0xff]
        %v613 = vld [vmem:[#allocation7 + $0x6f0] sm:$0xff]
        %v614 = vld [vmem:[#allocation7 + $0x6f8] sm:$0xff]
        %v615 = vld [vmem:[#allocation7 + $0x700] sm:$0xff]
        %v616 = vld [vmem:[#allocation7 + $0x708] sm:$0xff]
        %v617 = vld [vmem:[#allocation7 + $0x710] sm:$0xff]
        %v618 = vld [vmem:[#allocation7 + $0x718] sm:$0xff]
        %v619 = vld [vmem:[#allocation7 + $0x720] sm:$0xff]
        %v620 = vld [vmem:[#allocation7 + $0x728] sm:$0xff]
        %v621 = vld [vmem:[#allocation7 + $0x730] sm:$0xff]
        %v622 = vld [vmem:[#allocation7 + $0x738] sm:$0xff]
        %v623 = vld [vmem:[#allocation7 + $0x740] sm:$0xff]
        %v624 = vld [vmem:[#allocation7 + $0x748] sm:$0xff]
        %v625 = vld [vmem:[#allocation7 + $0x750] sm:$0xff]
        %v626 = vld [vmem:[#allocation7 + $0x758] sm:$0xff]
        %v627 = vld [vmem:[#allocation7 + $0x760] sm:$0xff]
        %v628 = vld [vmem:[#allocation7 + $0x768] sm:$0xff]
        %v629 = vld [vmem:[#allocation7 + $0x770] sm:$0xff]
        %v630 = vld [vmem:[#allocation7 + $0x778] sm:$0xff]
        %v631 = vld [vmem:[#allocation7 + $0x780] sm:$0xff]
        %v632 = vld [vmem:[#allocation7 + $0x788] sm:$0xff]
        %v633 = vld [vmem:[#allocation7 + $0x790] sm:$0xff]
        %v634 = vld [vmem:[#allocation7 + $0x798] sm:$0xff]
        %v635 = vld [vmem:[#allocation7 + $0x7a0] sm:$0xff]
        %v636 = vld [vmem:[#allocation7 + $0x7a8] sm:$0xff]
        %v637 = vld [vmem:[#allocation7 + $0x7b0] sm:$0xff]
        %v638 = vld [vmem:[#allocation7 + $0x7b8] sm:$0xff]
        %v639 = vld [vmem:[#allocation7 + $0x7c0] sm:$0xff]
        %v640 = vld [vmem:[#allocation7 + $0x7c8] sm:$0xff]
        %v641 = vld [vmem:[#allocation7 + $0x7d0] sm:$0xff]
        %v642 = vld [vmem:[#allocation7 + $0x7d8] sm:$0xff]
        %v643 = vld [vmem:[#allocation7 + $0x7e0] sm:$0xff]
        %v644 = vld [vmem:[#allocation7 + $0x7e8] sm:$0xff]
        %v645 = vld [vmem:[#allocation7 + $0x7f0] sm:$0xff]
        %v646 = vld [vmem:[#allocation7 + $0x7f8] sm:$0xff]
        %v647 = vld [vmem:[#allocation7 + $0x800] sm:$0xff]
        %v648 = vld [vmem:[#allocation7 + $0x808] sm:$0xff]
        %v649 = vld [vmem:[#allocation7 + $0x810] sm:$0xff]
        %v650 = vld [vmem:[#allocation7 + $0x818] sm:$0xff]
        %v651 = vld [vmem:[#allocation7 + $0x820] sm:$0xff]
        %v652 = vld [vmem:[#allocation7 + $0x828] sm:$0xff]
        %v653 = vld [vmem:[#allocation7 + $0x830] sm:$0xff]
        %v654 = vld [vmem:[#allocation7 + $0x838] sm:$0xff]
        %v655 = vld [vmem:[#allocation7 + $0x840] sm:$0xff]
        %v656 = vld [vmem:[#allocation7 + $0x848] sm:$0xff]
        %v657 = vld [vmem:[#allocation7 + $0x850] sm:$0xff]
        %v658 = vld [vmem:[#allocation7 + $0x858] sm:$0xff]
        %v659 = vld [vmem:[#allocation7 + $0x860] sm:$0xff]
        %v660 = vld [vmem:[#allocation7 + $0x868] sm:$0xff]
        %v661 = vld [vmem:[#allocation7 + $0x870] sm:$0xff]
        %v662 = vld [vmem:[#allocation7 + $0x878] sm:$0xff]
        %v663 = vld [vmem:[#allocation7 + $0x880] sm:$0xff]
        %v664 = vld [vmem:[#allocation7 + $0x888] sm:$0xff]
        %v665 = vld [vmem:[#allocation7 + $0x890] sm:$0xff]
        %v666 = vld [vmem:[#allocation7 + $0x898] sm:$0xff]
        %v667 = vld [vmem:[#allocation7 + $0x8a0] sm:$0xff]
        %v668 = vld [vmem:[#allocation7 + $0x8a8] sm:$0xff]
        %v669 = vld [vmem:[#allocation7 + $0x8b0] sm:$0xff]
        %v670 = vld [vmem:[#allocation7 + $0x8b8] sm:$0xff]
        %v671 = vld [vmem:[#allocation7 + $0x8c0] sm:$0xff]
        %v672 = vld [vmem:[#allocation7 + $0x8c8] sm:$0xff]
        %v673 = vld [vmem:[#allocation7 + $0x8d0] sm:$0xff]
        %v674 = vld [vmem:[#allocation7 + $0x8d8] sm:$0xff]
        %v675 = vld [vmem:[#allocation7 + $0x8e0] sm:$0xff]
        %v676 = vld [vmem:[#allocation7 + $0x8e8] sm:$0xff]
        %v677 = vld [vmem:[#allocation7 + $0x8f0] sm:$0xff]
        %v678 = vld [vmem:[#allocation7 + $0x8f8] sm:$0xff]
        %v679 = vld [vmem:[#allocation7 + $0x900] sm:$0xff]
        %v680 = vld [vmem:[#allocation7 + $0x908] sm:$0xff]
        %v681 = vld [vmem:[#allocation7 + $0x910] sm:$0xff]
        %v682 = vld [vmem:[#allocation7 + $0x918] sm:$0xff]
        %v683 = vld [vmem:[#allocation7 + $0x920] sm:$0xff]
        %v684 = vld [vmem:[#allocation7 + $0x928] sm:$0xff]
        %v685 = vld [vmem:[#allocation7 + $0x930] sm:$0xff]
        %v686 = vld [vmem:[#allocation7 + $0x938] sm:$0xff]
        %v687 = vld [vmem:[#allocation7 + $0x940] sm:$0xff]
        %v688 = vld [vmem:[#allocation7 + $0x948] sm:$0xff]
        %v689 = vld [vmem:[#allocation7 + $0x950] sm:$0xff]
        %v690 = vld [vmem:[#allocation7 + $0x958] sm:$0xff]
        %v691 = vld [vmem:[#allocation7 + $0x960] sm:$0xff]
        %v692 = vld [vmem:[#allocation7 + $0x968] sm:$0xff]
        %v693 = vld [vmem:[#allocation7 + $0x970] sm:$0xff]
        %v694 = vld [vmem:[#allocation7 + $0x978] sm:$0xff]
        %v695 = vld [vmem:[#allocation7 + $0x980] sm:$0xff]
        %v696 = vld [vmem:[#allocation7 + $0x988] sm:$0xff]
        %v697 = vld [vmem:[#allocation7 + $0x990] sm:$0xff]
        %v698 = vld [vmem:[#allocation7 + $0x998] sm:$0xff]
        %v699 = vld [vmem:[#allocation7 + $0x9a0] sm:$0xff]
        %v700 = vld [vmem:[#allocation7 + $0x9a8] sm:$0xff]
        %v701 = vld [vmem:[#allocation7 + $0x9b0] sm:$0xff]
        %v702 = vld [vmem:[#allocation7 + $0x9b8] sm:$0xff]
        %v703 = vld [vmem:[#allocation7 + $0x9c0] sm:$0xff]
        %v704 = vld [vmem:[#allocation7 + $0x9c8] sm:$0xff]
        %v705 = vld [vmem:[#allocation7 + $0x9d0] sm:$0xff]
        %v706 = vld [vmem:[#allocation7 + $0x9d8] sm:$0xff]
        %v707 = vld [vmem:[#allocation7 + $0x9e0] sm:$0xff]
        %v708 = vld [vmem:[#allocation7 + $0x9e8] sm:$0xff]
        %v709 = vld [vmem:[#allocation7 + $0x9f0] sm:$0xff]
        %v710 = vld [vmem:[#allocation7 + $0x9f8] sm:$0xff]
        %v711 = vld [vmem:[#allocation7 + $0xa00] sm:$0xff]
        %v712 = vld [vmem:[#allocation7 + $0xa08] sm:$0xff]
        %v713 = vld [vmem:[#allocation7 + $0xa10] sm:$0xff]
        %v714 = vld [vmem:[#allocation7 + $0xa18] sm:$0xff]
        %v715 = vld [vmem:[#allocation7 + $0xa20] sm:$0xff]
        %v716 = vld [vmem:[#allocation7 + $0xa28] sm:$0xff]
        %v717 = vld [vmem:[#allocation7 + $0xa30] sm:$0xff]
        %v718 = vld [vmem:[#allocation7 + $0xa38] sm:$0xff]
        %v719 = vld [vmem:[#allocation7 + $0xa40] sm:$0xff]
        %v720 = vld [vmem:[#allocation7 + $0xa48] sm:$0xff]
        %v721 = vld [vmem:[#allocation7 + $0xa50] sm:$0xff]
        %v722 = vld [vmem:[#allocation7 + $0xa58] sm:$0xff]
        %v723 = vld [vmem:[#allocation7 + $0xa60] sm:$0xff]
        %v724 = vld [vmem:[#allocation7 + $0xa68] sm:$0xff]
        %v725 = vld [vmem:[#allocation7 + $0xa70] sm:$0xff]
        %v726 = vld [vmem:[#allocation7 + $0xa78] sm:$0xff]
        %v727 = vld [vmem:[#allocation7 + $0xa80] sm:$0xff]
        %v728 = vld [vmem:[#allocation7 + $0xa88] sm:$0xff]
        %v729 = vld [vmem:[#allocation7 + $0xa90] sm:$0xff]
        %v730 = vld [vmem:[#allocation7 + $0xa98] sm:$0xff]
        %v731 = vld [vmem:[#allocation7 + $0xaa0] sm:$0xff]
        %v732 = vld [vmem:[#allocation7 + $0xaa8] sm:$0xff]
        %v733 = vld [vmem:[#allocation7 + $0xab0] sm:$0xff]
        %v734 = vld [vmem:[#allocation7 + $0xab8] sm:$0xff]
        %v735 = vld [vmem:[#allocation7 + $0xac0] sm:$0xff]
        %v736 = vld [vmem:[#allocation7 + $0xac8] sm:$0xff]
        %v737 = vld [vmem:[#allocation7 + $0xad0] sm:$0xff]
        %v738 = vld [vmem:[#allocation7 + $0xad8] sm:$0xff]
        %v739 = vld [vmem:[#allocation7 + $0xae0] sm:$0xff]
        %v740 = vld [vmem:[#allocation7 + $0xae8] sm:$0xff]
        %v741 = vld [vmem:[#allocation7 + $0xaf0] sm:$0xff]
        %v742 = vld [vmem:[#allocation7 + $0xaf8] sm:$0xff]
        %v743 = vld [vmem:[#allocation7 + $0xb00] sm:$0xff]
        %v744 = vld [vmem:[#allocation7 + $0xb08] sm:$0xff]
        %v745 = vld [vmem:[#allocation7 + $0xb10] sm:$0xff]
        %v746 = vld [vmem:[#allocation7 + $0xb18] sm:$0xff]
        %v747 = vld [vmem:[#allocation7 + $0xb20] sm:$0xff]
        %v748 = vld [vmem:[#allocation7 + $0xb28] sm:$0xff]
        %v749 = vld [vmem:[#allocation7 + $0xb30] sm:$0xff]
        %v750 = vld [vmem:[#allocation7 + $0xb38] sm:$0xff]
        %v751 = vld [vmem:[#allocation7 + $0xb40] sm:$0xff]
        %v752 = vld [vmem:[#allocation7 + $0xb48] sm:$0xff]
        %v753 = vld [vmem:[#allocation7 + $0xb50] sm:$0xff]
        %v754 = vld [vmem:[#allocation7 + $0xb58] sm:$0xff]
        %v755 = vld [vmem:[#allocation7 + $0xb60] sm:$0xff]
        %v756 = vld [vmem:[#allocation7 + $0xb68] sm:$0xff]
        %v757 = vld [vmem:[#allocation7 + $0xb70] sm:$0xff]
        %v758 = vld [vmem:[#allocation7 + $0xb78] sm:$0xff]
        %v759 = vld [vmem:[#allocation7 + $0xb80] sm:$0xff]
        %v760 = vld [vmem:[#allocation7 + $0xb88] sm:$0xff]
        %v761 = vld [vmem:[#allocation7 + $0xb90] sm:$0xff]
        %v762 = vld [vmem:[#allocation7 + $0xb98] sm:$0xff]
        %v763 = vld [vmem:[#allocation7 + $0xba0] sm:$0xff]
        %v764 = vld [vmem:[#allocation7 + $0xba8] sm:$0xff]
        %v765 = vld [vmem:[#allocation7 + $0xbb0] sm:$0xff]
        %v766 = vld [vmem:[#allocation7 + $0xbb8] sm:$0xff]
        %v767 = vld [vmem:[#allocation7 + $0xbc0] sm:$0xff]
        %v768 = vld [vmem:[#allocation7 + $0xbc8] sm:$0xff]
        %v769 = vld [vmem:[#allocation7 + $0xbd0] sm:$0xff]
        %v770 = vld [vmem:[#allocation7 + $0xbd8] sm:$0xff]
        %v771 = vld [vmem:[#allocation7 + $0xbe0] sm:$0xff]
        %v772 = vld [vmem:[#allocation7 + $0xbe8] sm:$0xff]
        %v773 = vld [vmem:[#allocation7 + $0xbf0] sm:$0xff]
        %v774 = vld [vmem:[#allocation7 + $0xbf8] sm:$0xff]
        %v775 = vld [vmem:[#allocation9] sm:$0x3f]
        %v777 = vlaneseq
        %v778 = vshrl.u32 %v777, 7
        %v779 = vsub.s32 0, %v778
        %v780 = vrot.slane %v775, %v779
        %v781 = vlaneseq
        %v782 = vshrl.u32 %v781, 7
        %v783 = vsub.s32 1, %v782
        %v784 = vrot.slane %v775, %v783
        %v785 = vlaneseq
        %v786 = vshrl.u32 %v785, 7
        %v787 = vsub.s32 2, %v786
        %v788 = vrot.slane %v775, %v787
        %v789 = vlaneseq
        %v790 = vshrl.u32 %v789, 7
        %v791 = vsub.s32 3, %v790
        %v792 = vrot.slane %v775, %v791
        %v793 = vlaneseq
        %v794 = vshrl.u32 %v793, 7
        %v795 = vsub.s32 4, %v794
        %v796 = vrot.slane %v775, %v795
        %v797 = vlaneseq
        %v798 = vshrl.u32 %v797, 7
        %v799 = vsub.s32 5, %v798
        %v800 = vrot.slane %v775, %v799
        %v815 = vunpack.c.l.b16 %v383
        %v816 = vunpack.c.h.b16 %v383
        %v817 = vunpack.c.l.b16 %v384
        %v818 = vunpack.c.h.b16 %v384
        %v819 = vunpack.c.l.b16 %v385
        %v820 = vunpack.c.h.b16 %v385
        %v821 = vunpack.c.l.b16 %v386
        %v822 = vunpack.c.h.b16 %v386
        %v823 = vunpack.c.l.b16 %v387
        %v824 = vunpack.c.h.b16 %v387
        %v825 = vunpack.c.l.b16 %v388
        %v826 = vunpack.c.h.b16 %v388
        %v827 = vunpack.c.l.b16 %v389
        %v828 = vunpack.c.h.b16 %v389
        %v829 = vunpack.c.l.b16 %v390
        %v830 = vunpack.c.h.b16 %v390
        %v831 = vpack.c.b16 %v823, %v815
        %v832 = vpack.c.b16 %v824, %v816
        %v833 = vpack.c.b16 %v825, %v817
        %v834 = vpack.c.b16 %v826, %v818
        %v835 = vpack.c.b16 %v827, %v819
        %v836 = vpack.c.b16 %v828, %v820
        %v837 = vpack.c.b16 %v829, %v821
        %v838 = vpack.c.b16 %v830, %v822
        %v1231 = vunpack.c.l.b16 %v391
        %v1232 = vunpack.c.h.b16 %v391
        %v1233 = vunpack.c.l.b16 %v392
        %v1234 = vunpack.c.h.b16 %v392
        %v1235 = vunpack.c.l.b16 %v393
        %v1236 = vunpack.c.h.b16 %v393
        %v1237 = vunpack.c.l.b16 %v394
        %v1238 = vunpack.c.h.b16 %v394
        %v1239 = vunpack.c.l.b16 %v395
        %v1240 = vunpack.c.h.b16 %v395
        %v1241 = vunpack.c.l.b16 %v396
        %v1242 = vunpack.c.h.b16 %v396
        %v1243 = vunpack.c.l.b16 %v397
        %v1244 = vunpack.c.h.b16 %v397
        %v1245 = vunpack.c.l.b16 %v398
        %v1246 = vunpack.c.h.b16 %v398
        %v1247 = vunpack.c.l.b16 %v399
        %v1248 = vunpack.c.h.b16 %v399
        %v1249 = vunpack.c.l.b16 %v400
        %v1250 = vunpack.c.h.b16 %v400
        %v1251 = vunpack.c.l.b16 %v401
        %v1252 = vunpack.c.h.b16 %v401
        %v1253 = vunpack.c.l.b16 %v402
        %v1254 = vunpack.c.h.b16 %v402
        %v1255 = vunpack.c.l.b16 %v403
        %v1256 = vunpack.c.h.b16 %v403
        %v1257 = vunpack.c.l.b16 %v404
        %v1258 = vunpack.c.h.b16 %v404
        %v1259 = vunpack.c.l.b16 %v405
        %v1260 = vunpack.c.h.b16 %v405
        %v1261 = vunpack.c.l.b16 %v406
        %v1262 = vunpack.c.h.b16 %v406
        %v1263 = vunpack.c.l.b16 %v407
        %v1264 = vunpack.c.h.b16 %v407
        %v1265 = vunpack.c.l.b16 %v408
        %v1266 = vunpack.c.h.b16 %v408
        %v1267 = vunpack.c.l.b16 %v409
        %v1268 = vunpack.c.h.b16 %v409
        %v1269 = vunpack.c.l.b16 %v410
        %v1270 = vunpack.c.h.b16 %v410
        %v1271 = vunpack.c.l.b16 %v411
        %v1272 = vunpack.c.h.b16 %v411
        %v1273 = vunpack.c.l.b16 %v412
        %v1274 = vunpack.c.h.b16 %v412
        %v1275 = vunpack.c.l.b16 %v413
        %v1276 = vunpack.c.h.b16 %v413
        %v1277 = vunpack.c.l.b16 %v414
        %v1278 = vunpack.c.h.b16 %v414
        %v1279 = vunpack.c.l.b16 %v415
        %v1280 = vunpack.c.h.b16 %v415
        %v1281 = vunpack.c.l.b16 %v416
        %v1282 = vunpack.c.h.b16 %v416
        %v1283 = vunpack.c.l.b16 %v417
        %v1284 = vunpack.c.h.b16 %v417
        %v1285 = vunpack.c.l.b16 %v418
        %v1286 = vunpack.c.h.b16 %v418
        %v1287 = vunpack.c.l.b16 %v419
        %v1288 = vunpack.c.h.b16 %v419
        %v1289 = vunpack.c.l.b16 %v420
        %v1290 = vunpack.c.h.b16 %v420
        %v1291 = vunpack.c.l.b16 %v421
        %v1292 = vunpack.c.h.b16 %v421
        %v1293 = vunpack.c.l.b16 %v422
        %v1294 = vunpack.c.h.b16 %v422
        %v1295 = vunpack.c.l.b16 %v423
        %v1296 = vunpack.c.h.b16 %v423
        %v1297 = vunpack.c.l.b16 %v424
        %v1298 = vunpack.c.h.b16 %v424
        %v1299 = vunpack.c.l.b16 %v425
        %v1300 = vunpack.c.h.b16 %v425
        %v1301 = vunpack.c.l.b16 %v426
        %v1302 = vunpack.c.h.b16 %v426
        %v1303 = vunpack.c.l.b16 %v427
        %v1304 = vunpack.c.h.b16 %v427
        %v1305 = vunpack.c.l.b16 %v428
        %v1306 = vunpack.c.h.b16 %v428
        %v1307 = vunpack.c.l.b16 %v429
        %v1308 = vunpack.c.h.b16 %v429
        %v1309 = vunpack.c.l.b16 %v430
        %v1310 = vunpack.c.h.b16 %v430
        %v1311 = vunpack.c.l.b16 %v431
        %v1312 = vunpack.c.h.b16 %v431
        %v1313 = vunpack.c.l.b16 %v432
        %v1314 = vunpack.c.h.b16 %v432
        %v1315 = vunpack.c.l.b16 %v433
        %v1316 = vunpack.c.h.b16 %v433
        %v1317 = vunpack.c.l.b16 %v434
        %v1318 = vunpack.c.h.b16 %v434
        %v1319 = vunpack.c.l.b16 %v435
        %v1320 = vunpack.c.h.b16 %v435
        %v1321 = vunpack.c.l.b16 %v436
        %v1322 = vunpack.c.h.b16 %v436
        %v1323 = vunpack.c.l.b16 %v437
        %v1324 = vunpack.c.h.b16 %v437
        %v1325 = vunpack.c.l.b16 %v438
        %v1326 = vunpack.c.h.b16 %v438
        %v1327 = vunpack.c.l.b16 %v439
        %v1328 = vunpack.c.h.b16 %v439
        %v1329 = vunpack.c.l.b16 %v440
        %v1330 = vunpack.c.h.b16 %v440
        %v1331 = vunpack.c.l.b16 %v441
        %v1332 = vunpack.c.h.b16 %v441
        %v1333 = vunpack.c.l.b16 %v442
        %v1334 = vunpack.c.h.b16 %v442
        %v1335 = vunpack.c.l.b16 %v443
        %v1336 = vunpack.c.h.b16 %v443
        %v1337 = vunpack.c.l.b16 %v444
        %v1338 = vunpack.c.h.b16 %v444
        %v1339 = vunpack.c.l.b16 %v445
        %v1340 = vunpack.c.h.b16 %v445
        %v1341 = vunpack.c.l.b16 %v446
        %v1342 = vunpack.c.h.b16 %v446
        %v1343 = vunpack.c.l.b16 %v447
        %v1344 = vunpack.c.h.b16 %v447
        %v1345 = vunpack.c.l.b16 %v448
        %v1346 = vunpack.c.h.b16 %v448
        %v1347 = vunpack.c.l.b16 %v449
        %v1348 = vunpack.c.h.b16 %v449
        %v1349 = vunpack.c.l.b16 %v450
        %v1350 = vunpack.c.h.b16 %v450
        %v1351 = vunpack.c.l.b16 %v451
        %v1352 = vunpack.c.h.b16 %v451
        %v1353 = vunpack.c.l.b16 %v452
        %v1354 = vunpack.c.h.b16 %v452
        %v1355 = vunpack.c.l.b16 %v453
        %v1356 = vunpack.c.h.b16 %v453
        %v1357 = vunpack.c.l.b16 %v454
        %v1358 = vunpack.c.h.b16 %v454
        %v1359 = vunpack.c.l.b16 %v455
        %v1360 = vunpack.c.h.b16 %v455
        %v1361 = vunpack.c.l.b16 %v456
        %v1362 = vunpack.c.h.b16 %v456
        %v1363 = vunpack.c.l.b16 %v457
        %v1364 = vunpack.c.h.b16 %v457
        %v1365 = vunpack.c.l.b16 %v458
        %v1366 = vunpack.c.h.b16 %v458
        %v1367 = vunpack.c.l.b16 %v459
        %v1368 = vunpack.c.h.b16 %v459
        %v1369 = vunpack.c.l.b16 %v460
        %v1370 = vunpack.c.h.b16 %v460
        %v1371 = vunpack.c.l.b16 %v461
        %v1372 = vunpack.c.h.b16 %v461
        %v1373 = vunpack.c.l.b16 %v462
        %v1374 = vunpack.c.h.b16 %v462
        %v1375 = vunpack.c.l.b16 %v463
        %v1376 = vunpack.c.h.b16 %v463
        %v1377 = vunpack.c.l.b16 %v464
        %v1378 = vunpack.c.h.b16 %v464
        %v1379 = vunpack.c.l.b16 %v465
        %v1380 = vunpack.c.h.b16 %v465
        %v1381 = vunpack.c.l.b16 %v466
        %v1382 = vunpack.c.h.b16 %v466
        %v1383 = vunpack.c.l.b16 %v467
        %v1384 = vunpack.c.h.b16 %v467
        %v1385 = vunpack.c.l.b16 %v468
        %v1386 = vunpack.c.h.b16 %v468
        %v1387 = vunpack.c.l.b16 %v469
        %v1388 = vunpack.c.h.b16 %v469
        %v1389 = vunpack.c.l.b16 %v470
        %v1390 = vunpack.c.h.b16 %v470
        %v1391 = vunpack.c.l.b16 %v471
        %v1392 = vunpack.c.h.b16 %v471
        %v1393 = vunpack.c.l.b16 %v472
        %v1394 = vunpack.c.h.b16 %v472
        %v1395 = vunpack.c.l.b16 %v473
        %v1396 = vunpack.c.h.b16 %v473
        %v1397 = vunpack.c.l.b16 %v474
        %v1398 = vunpack.c.h.b16 %v474
        %v1399 = vunpack.c.l.b16 %v475
        %v1400 = vunpack.c.h.b16 %v475
        %v1401 = vunpack.c.l.b16 %v476
        %v1402 = vunpack.c.h.b16 %v476
        %v1403 = vunpack.c.l.b16 %v477
        %v1404 = vunpack.c.h.b16 %v477
        %v1405 = vunpack.c.l.b16 %v478
        %v1406 = vunpack.c.h.b16 %v478
        %v1407 = vunpack.c.l.b16 %v479
        %v1408 = vunpack.c.h.b16 %v479
        %v1409 = vunpack.c.l.b16 %v480
        %v1410 = vunpack.c.h.b16 %v480
        %v1411 = vunpack.c.l.b16 %v481
        %v1412 = vunpack.c.h.b16 %v481
        %v1413 = vunpack.c.l.b16 %v482
        %v1414 = vunpack.c.h.b16 %v482
        %v1415 = vunpack.c.l.b16 %v483
        %v1416 = vunpack.c.h.b16 %v483
        %v1417 = vunpack.c.l.b16 %v484
        %v1418 = vunpack.c.h.b16 %v484
        %v1419 = vunpack.c.l.b16 %v485
        %v1420 = vunpack.c.h.b16 %v485
        %v1421 = vunpack.c.l.b16 %v486
        %v1422 = vunpack.c.h.b16 %v486
        %v1423 = vunpack.c.l.b16 %v487
        %v1424 = vunpack.c.h.b16 %v487
        %v1425 = vunpack.c.l.b16 %v488
        %v1426 = vunpack.c.h.b16 %v488
        %v1427 = vunpack.c.l.b16 %v489
        %v1428 = vunpack.c.h.b16 %v489
        %v1429 = vunpack.c.l.b16 %v490
        %v1430 = vunpack.c.h.b16 %v490
        %v1431 = vunpack.c.l.b16 %v491
        %v1432 = vunpack.c.h.b16 %v491
        %v1433 = vunpack.c.l.b16 %v492
        %v1434 = vunpack.c.h.b16 %v492
        %v1435 = vunpack.c.l.b16 %v493
        %v1436 = vunpack.c.h.b16 %v493
        %v1437 = vunpack.c.l.b16 %v494
        %v1438 = vunpack.c.h.b16 %v494
        %v1439 = vunpack.c.l.b16 %v495
        %v1440 = vunpack.c.h.b16 %v495
        %v1441 = vunpack.c.l.b16 %v496
        %v1442 = vunpack.c.h.b16 %v496
        %v1443 = vunpack.c.l.b16 %v497
        %v1444 = vunpack.c.h.b16 %v497
        %v1445 = vunpack.c.l.b16 %v498
        %v1446 = vunpack.c.h.b16 %v498
        %v1447 = vunpack.c.l.b16 %v499
        %v1448 = vunpack.c.h.b16 %v499
        %v1449 = vunpack.c.l.b16 %v500
        %v1450 = vunpack.c.h.b16 %v500
        %v1451 = vunpack.c.l.b16 %v501
        %v1452 = vunpack.c.h.b16 %v501
        %v1453 = vunpack.c.l.b16 %v502
        %v1454 = vunpack.c.h.b16 %v502
        %v1455 = vunpack.c.l.b16 %v503
        %v1456 = vunpack.c.h.b16 %v503
        %v1457 = vunpack.c.l.b16 %v504
        %v1458 = vunpack.c.h.b16 %v504
        %v1459 = vunpack.c.l.b16 %v505
        %v1460 = vunpack.c.h.b16 %v505
        %v1461 = vunpack.c.l.b16 %v506
        %v1462 = vunpack.c.h.b16 %v506
        %v1463 = vunpack.c.l.b16 %v507
        %v1464 = vunpack.c.h.b16 %v507
        %v1465 = vunpack.c.l.b16 %v508
        %v1466 = vunpack.c.h.b16 %v508
        %v1467 = vunpack.c.l.b16 %v509
        %v1468 = vunpack.c.h.b16 %v509
        %v1469 = vunpack.c.l.b16 %v510
        %v1470 = vunpack.c.h.b16 %v510
        %v1471 = vunpack.c.l.b16 %v511
        %v1472 = vunpack.c.h.b16 %v511
        %v1473 = vunpack.c.l.b16 %v512
        %v1474 = vunpack.c.h.b16 %v512
        %v1475 = vunpack.c.l.b16 %v513
        %v1476 = vunpack.c.h.b16 %v513
        %v1477 = vunpack.c.l.b16 %v514
        %v1478 = vunpack.c.h.b16 %v514
        %v1479 = vunpack.c.l.b16 %v515
        %v1480 = vunpack.c.h.b16 %v515
        %v1481 = vunpack.c.l.b16 %v516
        %v1482 = vunpack.c.h.b16 %v516
        %v1483 = vunpack.c.l.b16 %v517
        %v1484 = vunpack.c.h.b16 %v517
        %v1485 = vunpack.c.l.b16 %v518
        %v1486 = vunpack.c.h.b16 %v518
        %v1487 = vunpack.c.l.b16 %v519
        %v1488 = vunpack.c.h.b16 %v519
        %v1489 = vunpack.c.l.b16 %v520
        %v1490 = vunpack.c.h.b16 %v520
        %v1491 = vunpack.c.l.b16 %v521
        %v1492 = vunpack.c.h.b16 %v521
        %v1493 = vunpack.c.l.b16 %v522
        %v1494 = vunpack.c.h.b16 %v522
        %v1495 = vunpack.c.l.b16 %v523
        %v1496 = vunpack.c.h.b16 %v523
        %v1497 = vunpack.c.l.b16 %v524
        %v1498 = vunpack.c.h.b16 %v524
        %v1499 = vunpack.c.l.b16 %v525
        %v1500 = vunpack.c.h.b16 %v525
        %v1501 = vunpack.c.l.b16 %v526
        %v1502 = vunpack.c.h.b16 %v526
        %v1503 = vunpack.c.l.b16 %v527
        %v1504 = vunpack.c.h.b16 %v527
        %v1505 = vunpack.c.l.b16 %v528
        %v1506 = vunpack.c.h.b16 %v528
        %v1507 = vunpack.c.l.b16 %v529
        %v1508 = vunpack.c.h.b16 %v529
        %v1509 = vunpack.c.l.b16 %v530
        %v1510 = vunpack.c.h.b16 %v530
        %v1511 = vunpack.c.l.b16 %v531
        %v1512 = vunpack.c.h.b16 %v531
        %v1513 = vunpack.c.l.b16 %v532
        %v1514 = vunpack.c.h.b16 %v532
        %v1515 = vunpack.c.l.b16 %v533
        %v1516 = vunpack.c.h.b16 %v533
        %v1517 = vunpack.c.l.b16 %v534
        %v1518 = vunpack.c.h.b16 %v534
        %v1519 = vunpack.c.l.b16 %v535
        %v1520 = vunpack.c.h.b16 %v535
        %v1521 = vunpack.c.l.b16 %v536
        %v1522 = vunpack.c.h.b16 %v536
        %v1523 = vunpack.c.l.b16 %v537
        %v1524 = vunpack.c.h.b16 %v537
        %v1525 = vunpack.c.l.b16 %v538
        %v1526 = vunpack.c.h.b16 %v538
        %v1527 = vunpack.c.l.b16 %v539
        %v1528 = vunpack.c.h.b16 %v539
        %v1529 = vunpack.c.l.b16 %v540
        %v1530 = vunpack.c.h.b16 %v540
        %v1531 = vunpack.c.l.b16 %v541
        %v1532 = vunpack.c.h.b16 %v541
        %v1533 = vunpack.c.l.b16 %v542
        %v1534 = vunpack.c.h.b16 %v542
        %v1535 = vunpack.c.l.b16 %v543
        %v1536 = vunpack.c.h.b16 %v543
        %v1537 = vunpack.c.l.b16 %v544
        %v1538 = vunpack.c.h.b16 %v544
        %v1539 = vunpack.c.l.b16 %v545
        %v1540 = vunpack.c.h.b16 %v545
        %v1541 = vunpack.c.l.b16 %v546
        %v1542 = vunpack.c.h.b16 %v546
        %v1543 = vunpack.c.l.b16 %v547
        %v1544 = vunpack.c.h.b16 %v547
        %v1545 = vunpack.c.l.b16 %v548
        %v1546 = vunpack.c.h.b16 %v548
        %v1547 = vunpack.c.l.b16 %v549
        %v1548 = vunpack.c.h.b16 %v549
        %v1549 = vunpack.c.l.b16 %v550
        %v1550 = vunpack.c.h.b16 %v550
        %v1551 = vunpack.c.l.b16 %v551
        %v1552 = vunpack.c.h.b16 %v551
        %v1553 = vunpack.c.l.b16 %v552
        %v1554 = vunpack.c.h.b16 %v552
        %v1555 = vunpack.c.l.b16 %v553
        %v1556 = vunpack.c.h.b16 %v553
        %v1557 = vunpack.c.l.b16 %v554
        %v1558 = vunpack.c.h.b16 %v554
        %v1559 = vunpack.c.l.b16 %v555
        %v1560 = vunpack.c.h.b16 %v555
        %v1561 = vunpack.c.l.b16 %v556
        %v1562 = vunpack.c.h.b16 %v556
        %v1563 = vunpack.c.l.b16 %v557
        %v1564 = vunpack.c.h.b16 %v557
        %v1565 = vunpack.c.l.b16 %v558
        %v1566 = vunpack.c.h.b16 %v558
        %v1567 = vunpack.c.l.b16 %v559
        %v1568 = vunpack.c.h.b16 %v559
        %v1569 = vunpack.c.l.b16 %v560
        %v1570 = vunpack.c.h.b16 %v560
        %v1571 = vunpack.c.l.b16 %v561
        %v1572 = vunpack.c.h.b16 %v561
        %v1573 = vunpack.c.l.b16 %v562
        %v1574 = vunpack.c.h.b16 %v562
        %v1575 = vunpack.c.l.b16 %v563
        %v1576 = vunpack.c.h.b16 %v563
        %v1577 = vunpack.c.l.b16 %v564
        %v1578 = vunpack.c.h.b16 %v564
        %v1579 = vunpack.c.l.b16 %v565
        %v1580 = vunpack.c.h.b16 %v565
        %v1581 = vunpack.c.l.b16 %v566
        %v1582 = vunpack.c.h.b16 %v566
        %v1583 = vunpack.c.l.b16 %v567
        %v1584 = vunpack.c.h.b16 %v567
        %v1585 = vunpack.c.l.b16 %v568
        %v1586 = vunpack.c.h.b16 %v568
        %v1587 = vunpack.c.l.b16 %v569
        %v1588 = vunpack.c.h.b16 %v569
        %v1589 = vunpack.c.l.b16 %v570
        %v1590 = vunpack.c.h.b16 %v570
        %v1591 = vunpack.c.l.b16 %v571
        %v1592 = vunpack.c.h.b16 %v571
        %v1593 = vunpack.c.l.b16 %v572
        %v1594 = vunpack.c.h.b16 %v572
        %v1595 = vunpack.c.l.b16 %v573
        %v1596 = vunpack.c.h.b16 %v573
        %v1597 = vunpack.c.l.b16 %v574
        %v1598 = vunpack.c.h.b16 %v574
        %v1599 = vunpack.c.l.b16 %v575
        %v1600 = vunpack.c.h.b16 %v575
        %v1601 = vunpack.c.l.b16 %v576
        %v1602 = vunpack.c.h.b16 %v576
        %v1603 = vunpack.c.l.b16 %v577
        %v1604 = vunpack.c.h.b16 %v577
        %v1605 = vunpack.c.l.b16 %v578
        %v1606 = vunpack.c.h.b16 %v578
        %v1607 = vunpack.c.l.b16 %v579
        %v1608 = vunpack.c.h.b16 %v579
        %v1609 = vunpack.c.l.b16 %v580
        %v1610 = vunpack.c.h.b16 %v580
        %v1611 = vunpack.c.l.b16 %v581
        %v1612 = vunpack.c.h.b16 %v581
        %v1613 = vunpack.c.l.b16 %v582
        %v1614 = vunpack.c.h.b16 %v582
        %v1615 = vunpack.c.l.b16 %v583
        %v1616 = vunpack.c.h.b16 %v583
        %v1617 = vunpack.c.l.b16 %v584
        %v1618 = vunpack.c.h.b16 %v584
        %v1619 = vunpack.c.l.b16 %v585
        %v1620 = vunpack.c.h.b16 %v585
        %v1621 = vunpack.c.l.b16 %v586
        %v1622 = vunpack.c.h.b16 %v586
        %v1623 = vunpack.c.l.b16 %v587
        %v1624 = vunpack.c.h.b16 %v587
        %v1625 = vunpack.c.l.b16 %v588
        %v1626 = vunpack.c.h.b16 %v588
        %v1627 = vunpack.c.l.b16 %v589
        %v1628 = vunpack.c.h.b16 %v589
        %v1629 = vunpack.c.l.b16 %v590
        %v1630 = vunpack.c.h.b16 %v590
        %v1631 = vunpack.c.l.b16 %v591
        %v1632 = vunpack.c.h.b16 %v591
        %v1633 = vunpack.c.l.b16 %v592
        %v1634 = vunpack.c.h.b16 %v592
        %v1635 = vunpack.c.l.b16 %v593
        %v1636 = vunpack.c.h.b16 %v593
        %v1637 = vunpack.c.l.b16 %v594
        %v1638 = vunpack.c.h.b16 %v594
        %v1639 = vunpack.c.l.b16 %v595
        %v1640 = vunpack.c.h.b16 %v595
        %v1641 = vunpack.c.l.b16 %v596
        %v1642 = vunpack.c.h.b16 %v596
        %v1643 = vunpack.c.l.b16 %v597
        %v1644 = vunpack.c.h.b16 %v597
        %v1645 = vunpack.c.l.b16 %v598
        %v1646 = vunpack.c.h.b16 %v598
        %v1647 = vunpack.c.l.b16 %v599
        %v1648 = vunpack.c.h.b16 %v599
        %v1649 = vunpack.c.l.b16 %v600
        %v1650 = vunpack.c.h.b16 %v600
        %v1651 = vunpack.c.l.b16 %v601
        %v1652 = vunpack.c.h.b16 %v601
        %v1653 = vunpack.c.l.b16 %v602
        %v1654 = vunpack.c.h.b16 %v602
        %v1655 = vunpack.c.l.b16 %v603
        %v1656 = vunpack.c.h.b16 %v603
        %v1657 = vunpack.c.l.b16 %v604
        %v1658 = vunpack.c.h.b16 %v604
        %v1659 = vunpack.c.l.b16 %v605
        %v1660 = vunpack.c.h.b16 %v605
        %v1661 = vunpack.c.l.b16 %v606
        %v1662 = vunpack.c.h.b16 %v606
        %v1663 = vunpack.c.l.b16 %v607
        %v1664 = vunpack.c.h.b16 %v607
        %v1665 = vunpack.c.l.b16 %v608
        %v1666 = vunpack.c.h.b16 %v608
        %v1667 = vunpack.c.l.b16 %v609
        %v1668 = vunpack.c.h.b16 %v609
        %v1669 = vunpack.c.l.b16 %v610
        %v1670 = vunpack.c.h.b16 %v610
        %v1671 = vunpack.c.l.b16 %v611
        %v1672 = vunpack.c.h.b16 %v611
        %v1673 = vunpack.c.l.b16 %v612
        %v1674 = vunpack.c.h.b16 %v612
        %v1675 = vunpack.c.l.b16 %v613
        %v1676 = vunpack.c.h.b16 %v613
        %v1677 = vunpack.c.l.b16 %v614
        %v1678 = vunpack.c.h.b16 %v614
        %v1679 = vunpack.c.l.b16 %v615
        %v1680 = vunpack.c.h.b16 %v615
        %v1681 = vunpack.c.l.b16 %v616
        %v1682 = vunpack.c.h.b16 %v616
        %v1683 = vunpack.c.l.b16 %v617
        %v1684 = vunpack.c.h.b16 %v617
        %v1685 = vunpack.c.l.b16 %v618
        %v1686 = vunpack.c.h.b16 %v618
        %v1687 = vunpack.c.l.b16 %v619
        %v1688 = vunpack.c.h.b16 %v619
        %v1689 = vunpack.c.l.b16 %v620
        %v1690 = vunpack.c.h.b16 %v620
        %v1691 = vunpack.c.l.b16 %v621
        %v1692 = vunpack.c.h.b16 %v621
        %v1693 = vunpack.c.l.b16 %v622
        %v1694 = vunpack.c.h.b16 %v622
        %v1695 = vunpack.c.l.b16 %v623
        %v1696 = vunpack.c.h.b16 %v623
        %v1697 = vunpack.c.l.b16 %v624
        %v1698 = vunpack.c.h.b16 %v624
        %v1699 = vunpack.c.l.b16 %v625
        %v1700 = vunpack.c.h.b16 %v625
        %v1701 = vunpack.c.l.b16 %v626
        %v1702 = vunpack.c.h.b16 %v626
        %v1703 = vunpack.c.l.b16 %v627
        %v1704 = vunpack.c.h.b16 %v627
        %v1705 = vunpack.c.l.b16 %v628
        %v1706 = vunpack.c.h.b16 %v628
        %v1707 = vunpack.c.l.b16 %v629
        %v1708 = vunpack.c.h.b16 %v629
        %v1709 = vunpack.c.l.b16 %v630
        %v1710 = vunpack.c.h.b16 %v630
        %v1711 = vunpack.c.l.b16 %v631
        %v1712 = vunpack.c.h.b16 %v631
        %v1713 = vunpack.c.l.b16 %v632
        %v1714 = vunpack.c.h.b16 %v632
        %v1715 = vunpack.c.l.b16 %v633
        %v1716 = vunpack.c.h.b16 %v633
        %v1717 = vunpack.c.l.b16 %v634
        %v1718 = vunpack.c.h.b16 %v634
        %v1719 = vunpack.c.l.b16 %v635
        %v1720 = vunpack.c.h.b16 %v635
        %v1721 = vunpack.c.l.b16 %v636
        %v1722 = vunpack.c.h.b16 %v636
        %v1723 = vunpack.c.l.b16 %v637
        %v1724 = vunpack.c.h.b16 %v637
        %v1725 = vunpack.c.l.b16 %v638
        %v1726 = vunpack.c.h.b16 %v638
        %v1727 = vunpack.c.l.b16 %v639
        %v1728 = vunpack.c.h.b16 %v639
        %v1729 = vunpack.c.l.b16 %v640
        %v1730 = vunpack.c.h.b16 %v640
        %v1731 = vunpack.c.l.b16 %v641
        %v1732 = vunpack.c.h.b16 %v641
        %v1733 = vunpack.c.l.b16 %v642
        %v1734 = vunpack.c.h.b16 %v642
        %v1735 = vunpack.c.l.b16 %v643
        %v1736 = vunpack.c.h.b16 %v643
        %v1737 = vunpack.c.l.b16 %v644
        %v1738 = vunpack.c.h.b16 %v644
        %v1739 = vunpack.c.l.b16 %v645
        %v1740 = vunpack.c.h.b16 %v645
        %v1741 = vunpack.c.l.b16 %v646
        %v1742 = vunpack.c.h.b16 %v646
        %v1743 = vunpack.c.l.b16 %v647
        %v1744 = vunpack.c.h.b16 %v647
        %v1745 = vunpack.c.l.b16 %v648
        %v1746 = vunpack.c.h.b16 %v648
        %v1747 = vunpack.c.l.b16 %v649
        %v1748 = vunpack.c.h.b16 %v649
        %v1749 = vunpack.c.l.b16 %v650
        %v1750 = vunpack.c.h.b16 %v650
        %v1751 = vunpack.c.l.b16 %v651
        %v1752 = vunpack.c.h.b16 %v651
        %v1753 = vunpack.c.l.b16 %v652
        %v1754 = vunpack.c.h.b16 %v652
        %v1755 = vunpack.c.l.b16 %v653
        %v1756 = vunpack.c.h.b16 %v653
        %v1757 = vunpack.c.l.b16 %v654
        %v1758 = vunpack.c.h.b16 %v654
        %v1759 = vunpack.c.l.b16 %v655
        %v1760 = vunpack.c.h.b16 %v655
        %v1761 = vunpack.c.l.b16 %v656
        %v1762 = vunpack.c.h.b16 %v656
        %v1763 = vunpack.c.l.b16 %v657
        %v1764 = vunpack.c.h.b16 %v657
        %v1765 = vunpack.c.l.b16 %v658
        %v1766 = vunpack.c.h.b16 %v658
        %v1767 = vunpack.c.l.b16 %v659
        %v1768 = vunpack.c.h.b16 %v659
        %v1769 = vunpack.c.l.b16 %v660
        %v1770 = vunpack.c.h.b16 %v660
        %v1771 = vunpack.c.l.b16 %v661
        %v1772 = vunpack.c.h.b16 %v661
        %v1773 = vunpack.c.l.b16 %v662
        %v1774 = vunpack.c.h.b16 %v662
        %v1775 = vunpack.c.l.b16 %v663
        %v1776 = vunpack.c.h.b16 %v663
        %v1777 = vunpack.c.l.b16 %v664
        %v1778 = vunpack.c.h.b16 %v664
        %v1779 = vunpack.c.l.b16 %v665
        %v1780 = vunpack.c.h.b16 %v665
        %v1781 = vunpack.c.l.b16 %v666
        %v1782 = vunpack.c.h.b16 %v666
        %v1783 = vunpack.c.l.b16 %v667
        %v1784 = vunpack.c.h.b16 %v667
        %v1785 = vunpack.c.l.b16 %v668
        %v1786 = vunpack.c.h.b16 %v668
        %v1787 = vunpack.c.l.b16 %v669
        %v1788 = vunpack.c.h.b16 %v669
        %v1789 = vunpack.c.l.b16 %v670
        %v1790 = vunpack.c.h.b16 %v670
        %v1791 = vunpack.c.l.b16 %v671
        %v1792 = vunpack.c.h.b16 %v671
        %v1793 = vunpack.c.l.b16 %v672
        %v1794 = vunpack.c.h.b16 %v672
        %v1795 = vunpack.c.l.b16 %v673
        %v1796 = vunpack.c.h.b16 %v673
        %v1797 = vunpack.c.l.b16 %v674
        %v1798 = vunpack.c.h.b16 %v674
        %v1799 = vunpack.c.l.b16 %v675
        %v1800 = vunpack.c.h.b16 %v675
        %v1801 = vunpack.c.l.b16 %v676
        %v1802 = vunpack.c.h.b16 %v676
        %v1803 = vunpack.c.l.b16 %v677
        %v1804 = vunpack.c.h.b16 %v677
        %v1805 = vunpack.c.l.b16 %v678
        %v1806 = vunpack.c.h.b16 %v678
        %v1807 = vunpack.c.l.b16 %v679
        %v1808 = vunpack.c.h.b16 %v679
        %v1809 = vunpack.c.l.b16 %v680
        %v1810 = vunpack.c.h.b16 %v680
        %v1811 = vunpack.c.l.b16 %v681
        %v1812 = vunpack.c.h.b16 %v681
        %v1813 = vunpack.c.l.b16 %v682
        %v1814 = vunpack.c.h.b16 %v682
        %v1815 = vunpack.c.l.b16 %v683
        %v1816 = vunpack.c.h.b16 %v683
        %v1817 = vunpack.c.l.b16 %v684
        %v1818 = vunpack.c.h.b16 %v684
        %v1819 = vunpack.c.l.b16 %v685
        %v1820 = vunpack.c.h.b16 %v685
        %v1821 = vunpack.c.l.b16 %v686
        %v1822 = vunpack.c.h.b16 %v686
        %v1823 = vunpack.c.l.b16 %v687
        %v1824 = vunpack.c.h.b16 %v687
        %v1825 = vunpack.c.l.b16 %v688
        %v1826 = vunpack.c.h.b16 %v688
        %v1827 = vunpack.c.l.b16 %v689
        %v1828 = vunpack.c.h.b16 %v689
        %v1829 = vunpack.c.l.b16 %v690
        %v1830 = vunpack.c.h.b16 %v690
        %v1831 = vunpack.c.l.b16 %v691
        %v1832 = vunpack.c.h.b16 %v691
        %v1833 = vunpack.c.l.b16 %v692
        %v1834 = vunpack.c.h.b16 %v692
        %v1835 = vunpack.c.l.b16 %v693
        %v1836 = vunpack.c.h.b16 %v693
        %v1837 = vunpack.c.l.b16 %v694
        %v1838 = vunpack.c.h.b16 %v694
        %v1839 = vunpack.c.l.b16 %v695
        %v1840 = vunpack.c.h.b16 %v695
        %v1841 = vunpack.c.l.b16 %v696
        %v1842 = vunpack.c.h.b16 %v696
        %v1843 = vunpack.c.l.b16 %v697
        %v1844 = vunpack.c.h.b16 %v697
        %v1845 = vunpack.c.l.b16 %v698
        %v1846 = vunpack.c.h.b16 %v698
        %v1847 = vunpack.c.l.b16 %v699
        %v1848 = vunpack.c.h.b16 %v699
        %v1849 = vunpack.c.l.b16 %v700
        %v1850 = vunpack.c.h.b16 %v700
        %v1851 = vunpack.c.l.b16 %v701
        %v1852 = vunpack.c.h.b16 %v701
        %v1853 = vunpack.c.l.b16 %v702
        %v1854 = vunpack.c.h.b16 %v702
        %v1855 = vunpack.c.l.b16 %v703
        %v1856 = vunpack.c.h.b16 %v703
        %v1857 = vunpack.c.l.b16 %v704
        %v1858 = vunpack.c.h.b16 %v704
        %v1859 = vunpack.c.l.b16 %v705
        %v1860 = vunpack.c.h.b16 %v705
        %v1861 = vunpack.c.l.b16 %v706
        %v1862 = vunpack.c.h.b16 %v706
        %v1863 = vunpack.c.l.b16 %v707
        %v1864 = vunpack.c.h.b16 %v707
        %v1865 = vunpack.c.l.b16 %v708
        %v1866 = vunpack.c.h.b16 %v708
        %v1867 = vunpack.c.l.b16 %v709
        %v1868 = vunpack.c.h.b16 %v709
        %v1869 = vunpack.c.l.b16 %v710
        %v1870 = vunpack.c.h.b16 %v710
        %v1871 = vunpack.c.l.b16 %v711
        %v1872 = vunpack.c.h.b16 %v711
        %v1873 = vunpack.c.l.b16 %v712
        %v1874 = vunpack.c.h.b16 %v712
        %v1875 = vunpack.c.l.b16 %v713
        %v1876 = vunpack.c.h.b16 %v713
        %v1877 = vunpack.c.l.b16 %v714
        %v1878 = vunpack.c.h.b16 %v714
        %v1879 = vunpack.c.l.b16 %v715
        %v1880 = vunpack.c.h.b16 %v715
        %v1881 = vunpack.c.l.b16 %v716
        %v1882 = vunpack.c.h.b16 %v716
        %v1883 = vunpack.c.l.b16 %v717
        %v1884 = vunpack.c.h.b16 %v717
        %v1885 = vunpack.c.l.b16 %v718
        %v1886 = vunpack.c.h.b16 %v718
        %v1887 = vunpack.c.l.b16 %v719
        %v1888 = vunpack.c.h.b16 %v719
        %v1889 = vunpack.c.l.b16 %v720
        %v1890 = vunpack.c.h.b16 %v720
        %v1891 = vunpack.c.l.b16 %v721
        %v1892 = vunpack.c.h.b16 %v721
        %v1893 = vunpack.c.l.b16 %v722
        %v1894 = vunpack.c.h.b16 %v722
        %v1895 = vunpack.c.l.b16 %v723
        %v1896 = vunpack.c.h.b16 %v723
        %v1897 = vunpack.c.l.b16 %v724
        %v1898 = vunpack.c.h.b16 %v724
        %v1899 = vunpack.c.l.b16 %v725
        %v1900 = vunpack.c.h.b16 %v725
        %v1901 = vunpack.c.l.b16 %v726
        %v1902 = vunpack.c.h.b16 %v726
        %v1903 = vunpack.c.l.b16 %v727
        %v1904 = vunpack.c.h.b16 %v727
        %v1905 = vunpack.c.l.b16 %v728
        %v1906 = vunpack.c.h.b16 %v728
        %v1907 = vunpack.c.l.b16 %v729
        %v1908 = vunpack.c.h.b16 %v729
        %v1909 = vunpack.c.l.b16 %v730
        %v1910 = vunpack.c.h.b16 %v730
        %v1911 = vunpack.c.l.b16 %v731
        %v1912 = vunpack.c.h.b16 %v731
        %v1913 = vunpack.c.l.b16 %v732
        %v1914 = vunpack.c.h.b16 %v732
        %v1915 = vunpack.c.l.b16 %v733
        %v1916 = vunpack.c.h.b16 %v733
        %v1917 = vunpack.c.l.b16 %v734
        %v1918 = vunpack.c.h.b16 %v734
        %v1919 = vunpack.c.l.b16 %v735
        %v1920 = vunpack.c.h.b16 %v735
        %v1921 = vunpack.c.l.b16 %v736
        %v1922 = vunpack.c.h.b16 %v736
        %v1923 = vunpack.c.l.b16 %v737
        %v1924 = vunpack.c.h.b16 %v737
        %v1925 = vunpack.c.l.b16 %v738
        %v1926 = vunpack.c.h.b16 %v738
        %v1927 = vunpack.c.l.b16 %v739
        %v1928 = vunpack.c.h.b16 %v739
        %v1929 = vunpack.c.l.b16 %v740
        %v1930 = vunpack.c.h.b16 %v740
        %v1931 = vunpack.c.l.b16 %v741
        %v1932 = vunpack.c.h.b16 %v741
        %v1933 = vunpack.c.l.b16 %v742
        %v1934 = vunpack.c.h.b16 %v742
        %v1935 = vunpack.c.l.b16 %v743
        %v1936 = vunpack.c.h.b16 %v743
        %v1937 = vunpack.c.l.b16 %v744
        %v1938 = vunpack.c.h.b16 %v744
        %v1939 = vunpack.c.l.b16 %v745
        %v1940 = vunpack.c.h.b16 %v745
        %v1941 = vunpack.c.l.b16 %v746
        %v1942 = vunpack.c.h.b16 %v746
        %v1943 = vunpack.c.l.b16 %v747
        %v1944 = vunpack.c.h.b16 %v747
        %v1945 = vunpack.c.l.b16 %v748
        %v1946 = vunpack.c.h.b16 %v748
        %v1947 = vunpack.c.l.b16 %v749
        %v1948 = vunpack.c.h.b16 %v749
        %v1949 = vunpack.c.l.b16 %v750
        %v1950 = vunpack.c.h.b16 %v750
        %v1951 = vunpack.c.l.b16 %v751
        %v1952 = vunpack.c.h.b16 %v751
        %v1953 = vunpack.c.l.b16 %v752
        %v1954 = vunpack.c.h.b16 %v752
        %v1955 = vunpack.c.l.b16 %v753
        %v1956 = vunpack.c.h.b16 %v753
        %v1957 = vunpack.c.l.b16 %v754
        %v1958 = vunpack.c.h.b16 %v754
        %v1959 = vunpack.c.l.b16 %v755
        %v1960 = vunpack.c.h.b16 %v755
        %v1961 = vunpack.c.l.b16 %v756
        %v1962 = vunpack.c.h.b16 %v756
        %v1963 = vunpack.c.l.b16 %v757
        %v1964 = vunpack.c.h.b16 %v757
        %v1965 = vunpack.c.l.b16 %v758
        %v1966 = vunpack.c.h.b16 %v758
        %v1967 = vunpack.c.l.b16 %v759
        %v1968 = vunpack.c.h.b16 %v759
        %v1969 = vunpack.c.l.b16 %v760
        %v1970 = vunpack.c.h.b16 %v760
        %v1971 = vunpack.c.l.b16 %v761
        %v1972 = vunpack.c.h.b16 %v761
        %v1973 = vunpack.c.l.b16 %v762
        %v1974 = vunpack.c.h.b16 %v762
        %v1975 = vunpack.c.l.b16 %v763
        %v1976 = vunpack.c.h.b16 %v763
        %v1977 = vunpack.c.l.b16 %v764
        %v1978 = vunpack.c.h.b16 %v764
        %v1979 = vunpack.c.l.b16 %v765
        %v1980 = vunpack.c.h.b16 %v765
        %v1981 = vunpack.c.l.b16 %v766
        %v1982 = vunpack.c.h.b16 %v766
        %v1983 = vunpack.c.l.b16 %v767
        %v1984 = vunpack.c.h.b16 %v767
        %v1985 = vunpack.c.l.b16 %v768
        %v1986 = vunpack.c.h.b16 %v768
        %v1987 = vunpack.c.l.b16 %v769
        %v1988 = vunpack.c.h.b16 %v769
        %v1989 = vunpack.c.l.b16 %v770
        %v1990 = vunpack.c.h.b16 %v770
        %v1991 = vunpack.c.l.b16 %v771
        %v1992 = vunpack.c.h.b16 %v771
        %v1993 = vunpack.c.l.b16 %v772
        %v1994 = vunpack.c.h.b16 %v772
        %v1995 = vunpack.c.l.b16 %v773
        %v1996 = vunpack.c.h.b16 %v773
        %v1997 = vunpack.c.l.b16 %v774
        %v1998 = vunpack.c.h.b16 %v774
        %v1999 = vpack.c.b16 %v1237, %v1231
        %v2000 = vpack.c.b16 %v1238, %v1232
        %v2001 = vpack.c.b16 %v1239, %v1233
        %v2002 = vpack.c.b16 %v1240, %v1234
        %v2003 = vpack.c.b16 %v1241, %v1235
        %v2004 = vpack.c.b16 %v1242, %v1236
        %v2005 = vpack.c.b16 %v1249, %v1243
        %v2006 = vpack.c.b16 %v1250, %v1244
        %v2007 = vpack.c.b16 %v1251, %v1245
        %v2008 = vpack.c.b16 %v1252, %v1246
        %v2009 = vpack.c.b16 %v1253, %v1247
        %v2010 = vpack.c.b16 %v1254, %v1248
        %v2011 = vpack.c.b16 %v1261, %v1255
        %v2012 = vpack.c.b16 %v1262, %v1256
        %v2013 = vpack.c.b16 %v1263, %v1257
        %v2014 = vpack.c.b16 %v1264, %v1258
        %v2015 = vpack.c.b16 %v1265, %v1259
        %v2016 = vpack.c.b16 %v1266, %v1260
        %v2017 = vpack.c.b16 %v1273, %v1267
        %v2018 = vpack.c.b16 %v1274, %v1268
        %v2019 = vpack.c.b16 %v1275, %v1269
        %v2020 = vpack.c.b16 %v1276, %v1270
        %v2021 = vpack.c.b16 %v1277, %v1271
        %v2022 = vpack.c.b16 %v1278, %v1272
        %v2023 = vpack.c.b16 %v1285, %v1279
        %v2024 = vpack.c.b16 %v1286, %v1280
        %v2025 = vpack.c.b16 %v1287, %v1281
        %v2026 = vpack.c.b16 %v1288, %v1282
        %v2027 = vpack.c.b16 %v1289, %v1283
        %v2028 = vpack.c.b16 %v1290, %v1284
        %v2029 = vpack.c.b16 %v1297, %v1291
        %v2030 = vpack.c.b16 %v1298, %v1292
        %v2031 = vpack.c.b16 %v1299, %v1293
        %v2032 = vpack.c.b16 %v1300, %v1294
        %v2033 = vpack.c.b16 %v1301, %v1295
        %v2034 = vpack.c.b16 %v1302, %v1296
        %v2035 = vpack.c.b16 %v1309, %v1303
        %v2036 = vpack.c.b16 %v1310, %v1304
        %v2037 = vpack.c.b16 %v1311, %v1305
        %v2038 = vpack.c.b16 %v1312, %v1306
        %v2039 = vpack.c.b16 %v1313, %v1307
        %v2040 = vpack.c.b16 %v1314, %v1308
        %v2041 = vpack.c.b16 %v1321, %v1315
        %v2042 = vpack.c.b16 %v1322, %v1316
        %v2043 = vpack.c.b16 %v1323, %v1317
        %v2044 = vpack.c.b16 %v1324, %v1318
        %v2045 = vpack.c.b16 %v1325, %v1319
        %v2046 = vpack.c.b16 %v1326, %v1320
        %v2047 = vpack.c.b16 %v1333, %v1327
        %v2048 = vpack.c.b16 %v1334, %v1328
        %v2049 = vpack.c.b16 %v1335, %v1329
        %v2050 = vpack.c.b16 %v1336, %v1330
        %v2051 = vpack.c.b16 %v1337, %v1331
        %v2052 = vpack.c.b16 %v1338, %v1332
        %v2053 = vpack.c.b16 %v1345, %v1339
        %v2054 = vpack.c.b16 %v1346, %v1340
        %v2055 = vpack.c.b16 %v1347, %v1341
        %v2056 = vpack.c.b16 %v1348, %v1342
        %v2057 = vpack.c.b16 %v1349, %v1343
        %v2058 = vpack.c.b16 %v1350, %v1344
        %v2059 = vpack.c.b16 %v1357, %v1351
        %v2060 = vpack.c.b16 %v1358, %v1352
        %v2061 = vpack.c.b16 %v1359, %v1353
        %v2062 = vpack.c.b16 %v1360, %v1354
        %v2063 = vpack.c.b16 %v1361, %v1355
        %v2064 = vpack.c.b16 %v1362, %v1356
        %v2065 = vpack.c.b16 %v1369, %v1363
        %v2066 = vpack.c.b16 %v1370, %v1364
        %v2067 = vpack.c.b16 %v1371, %v1365
        %v2068 = vpack.c.b16 %v1372, %v1366
        %v2069 = vpack.c.b16 %v1373, %v1367
        %v2070 = vpack.c.b16 %v1374, %v1368
        %v2071 = vpack.c.b16 %v1381, %v1375
        %v2072 = vpack.c.b16 %v1382, %v1376
        %v2073 = vpack.c.b16 %v1383, %v1377
        %v2074 = vpack.c.b16 %v1384, %v1378
        %v2075 = vpack.c.b16 %v1385, %v1379
        %v2076 = vpack.c.b16 %v1386, %v1380
        %v2077 = vpack.c.b16 %v1393, %v1387
        %v2078 = vpack.c.b16 %v1394, %v1388
        %v2079 = vpack.c.b16 %v1395, %v1389
        %v2080 = vpack.c.b16 %v1396, %v1390
        %v2081 = vpack.c.b16 %v1397, %v1391
        %v2082 = vpack.c.b16 %v1398, %v1392
        %v2083 = vpack.c.b16 %v1405, %v1399
        %v2084 = vpack.c.b16 %v1406, %v1400
        %v2085 = vpack.c.b16 %v1407, %v1401
        %v2086 = vpack.c.b16 %v1408, %v1402
        %v2087 = vpack.c.b16 %v1409, %v1403
        %v2088 = vpack.c.b16 %v1410, %v1404
        %v2089 = vpack.c.b16 %v1417, %v1411
        %v2090 = vpack.c.b16 %v1418, %v1412
        %v2091 = vpack.c.b16 %v1419, %v1413
        %v2092 = vpack.c.b16 %v1420, %v1414
        %v2093 = vpack.c.b16 %v1421, %v1415
        %v2094 = vpack.c.b16 %v1422, %v1416
        %v2095 = vpack.c.b16 %v1429, %v1423
        %v2096 = vpack.c.b16 %v1430, %v1424
        %v2097 = vpack.c.b16 %v1431, %v1425
        %v2098 = vpack.c.b16 %v1432, %v1426
        %v2099 = vpack.c.b16 %v1433, %v1427
        %v2100 = vpack.c.b16 %v1434, %v1428
        %v2101 = vpack.c.b16 %v1441, %v1435
        %v2102 = vpack.c.b16 %v1442, %v1436
        %v2103 = vpack.c.b16 %v1443, %v1437
        %v2104 = vpack.c.b16 %v1444, %v1438
        %v2105 = vpack.c.b16 %v1445, %v1439
        %v2106 = vpack.c.b16 %v1446, %v1440
        %v2107 = vpack.c.b16 %v1453, %v1447
        %v2108 = vpack.c.b16 %v1454, %v1448
        %v2109 = vpack.c.b16 %v1455, %v1449
        %v2110 = vpack.c.b16 %v1456, %v1450
        %v2111 = vpack.c.b16 %v1457, %v1451
        %v2112 = vpack.c.b16 %v1458, %v1452
        %v2113 = vpack.c.b16 %v1465, %v1459
        %v2114 = vpack.c.b16 %v1466, %v1460
        %v2115 = vpack.c.b16 %v1467, %v1461
        %v2116 = vpack.c.b16 %v1468, %v1462
        %v2117 = vpack.c.b16 %v1469, %v1463
        %v2118 = vpack.c.b16 %v1470, %v1464
        %v2119 = vpack.c.b16 %v1477, %v1471
        %v2120 = vpack.c.b16 %v1478, %v1472
        %v2121 = vpack.c.b16 %v1479, %v1473
        %v2122 = vpack.c.b16 %v1480, %v1474
        %v2123 = vpack.c.b16 %v1481, %v1475
        %v2124 = vpack.c.b16 %v1482, %v1476
        %v2125 = vpack.c.b16 %v1489, %v1483
        %v2126 = vpack.c.b16 %v1490, %v1484
        %v2127 = vpack.c.b16 %v1491, %v1485
        %v2128 = vpack.c.b16 %v1492, %v1486
        %v2129 = vpack.c.b16 %v1493, %v1487
        %v2130 = vpack.c.b16 %v1494, %v1488
        %v2131 = vpack.c.b16 %v1501, %v1495
        %v2132 = vpack.c.b16 %v1502, %v1496
        %v2133 = vpack.c.b16 %v1503, %v1497
        %v2134 = vpack.c.b16 %v1504, %v1498
        %v2135 = vpack.c.b16 %v1505, %v1499
        %v2136 = vpack.c.b16 %v1506, %v1500
        %v2137 = vpack.c.b16 %v1513, %v1507
        %v2138 = vpack.c.b16 %v1514, %v1508
        %v2139 = vpack.c.b16 %v1515, %v1509
        %v2140 = vpack.c.b16 %v1516, %v1510
        %v2141 = vpack.c.b16 %v1517, %v1511
        %v2142 = vpack.c.b16 %v1518, %v1512
        %v2143 = vpack.c.b16 %v1525, %v1519
        %v2144 = vpack.c.b16 %v1526, %v1520
        %v2145 = vpack.c.b16 %v1527, %v1521
        %v2146 = vpack.c.b16 %v1528, %v1522
        %v2147 = vpack.c.b16 %v1529, %v1523
        %v2148 = vpack.c.b16 %v1530, %v1524
        %v2149 = vpack.c.b16 %v1537, %v1531
        %v2150 = vpack.c.b16 %v1538, %v1532
        %v2151 = vpack.c.b16 %v1539, %v1533
        %v2152 = vpack.c.b16 %v1540, %v1534
        %v2153 = vpack.c.b16 %v1541, %v1535
        %v2154 = vpack.c.b16 %v1542, %v1536
        %v2155 = vpack.c.b16 %v1549, %v1543
        %v2156 = vpack.c.b16 %v1550, %v1544
        %v2157 = vpack.c.b16 %v1551, %v1545
        %v2158 = vpack.c.b16 %v1552, %v1546
        %v2159 = vpack.c.b16 %v1553, %v1547
        %v2160 = vpack.c.b16 %v1554, %v1548
        %v2161 = vpack.c.b16 %v1561, %v1555
        %v2162 = vpack.c.b16 %v1562, %v1556
        %v2163 = vpack.c.b16 %v1563, %v1557
        %v2164 = vpack.c.b16 %v1564, %v1558
        %v2165 = vpack.c.b16 %v1565, %v1559
        %v2166 = vpack.c.b16 %v1566, %v1560
        %v2167 = vpack.c.b16 %v1573, %v1567
        %v2168 = vpack.c.b16 %v1574, %v1568
        %v2169 = vpack.c.b16 %v1575, %v1569
        %v2170 = vpack.c.b16 %v1576, %v1570
        %v2171 = vpack.c.b16 %v1577, %v1571
        %v2172 = vpack.c.b16 %v1578, %v1572
        %v2173 = vpack.c.b16 %v1585, %v1579
        %v2174 = vpack.c.b16 %v1586, %v1580
        %v2175 = vpack.c.b16 %v1587, %v1581
        %v2176 = vpack.c.b16 %v1588, %v1582
        %v2177 = vpack.c.b16 %v1589, %v1583
        %v2178 = vpack.c.b16 %v1590, %v1584
        %v2179 = vpack.c.b16 %v1597, %v1591
        %v2180 = vpack.c.b16 %v1598, %v1592
        %v2181 = vpack.c.b16 %v1599, %v1593
        %v2182 = vpack.c.b16 %v1600, %v1594
        %v2183 = vpack.c.b16 %v1601, %v1595
        %v2184 = vpack.c.b16 %v1602, %v1596
        %v2185 = vpack.c.b16 %v1609, %v1603
        %v2186 = vpack.c.b16 %v1610, %v1604
        %v2187 = vpack.c.b16 %v1611, %v1605
        %v2188 = vpack.c.b16 %v1612, %v1606
        %v2189 = vpack.c.b16 %v1613, %v1607
        %v2190 = vpack.c.b16 %v1614, %v1608
        %v2191 = vpack.c.b16 %v1621, %v1615
        %v2192 = vpack.c.b16 %v1622, %v1616
        %v2193 = vpack.c.b16 %v1623, %v1617
        %v2194 = vpack.c.b16 %v1624, %v1618
        %v2195 = vpack.c.b16 %v1625, %v1619
        %v2196 = vpack.c.b16 %v1626, %v1620
        %v2197 = vpack.c.b16 %v1633, %v1627
        %v2198 = vpack.c.b16 %v1634, %v1628
        %v2199 = vpack.c.b16 %v1635, %v1629
        %v2200 = vpack.c.b16 %v1636, %v1630
        %v2201 = vpack.c.b16 %v1637, %v1631
        %v2202 = vpack.c.b16 %v1638, %v1632
        %v2203 = vpack.c.b16 %v1645, %v1639
        %v2204 = vpack.c.b16 %v1646, %v1640
        %v2205 = vpack.c.b16 %v1647, %v1641
        %v2206 = vpack.c.b16 %v1648, %v1642
        %v2207 = vpack.c.b16 %v1649, %v1643
        %v2208 = vpack.c.b16 %v1650, %v1644
        %v2209 = vpack.c.b16 %v1657, %v1651
        %v2210 = vpack.c.b16 %v1658, %v1652
        %v2211 = vpack.c.b16 %v1659, %v1653
        %v2212 = vpack.c.b16 %v1660, %v1654
        %v2213 = vpack.c.b16 %v1661, %v1655
        %v2214 = vpack.c.b16 %v1662, %v1656
        %v2215 = vpack.c.b16 %v1669, %v1663
        %v2216 = vpack.c.b16 %v1670, %v1664
        %v2217 = vpack.c.b16 %v1671, %v1665
        %v2218 = vpack.c.b16 %v1672, %v1666
        %v2219 = vpack.c.b16 %v1673, %v1667
        %v2220 = vpack.c.b16 %v1674, %v1668
        %v2221 = vpack.c.b16 %v1681, %v1675
        %v2222 = vpack.c.b16 %v1682, %v1676
        %v2223 = vpack.c.b16 %v1683, %v1677
        %v2224 = vpack.c.b16 %v1684, %v1678
        %v2225 = vpack.c.b16 %v1685, %v1679
        %v2226 = vpack.c.b16 %v1686, %v1680
        %v2227 = vpack.c.b16 %v1693, %v1687
        %v2228 = vpack.c.b16 %v1694, %v1688
        %v2229 = vpack.c.b16 %v1695, %v1689
        %v2230 = vpack.c.b16 %v1696, %v1690
        %v2231 = vpack.c.b16 %v1697, %v1691
        %v2232 = vpack.c.b16 %v1698, %v1692
        %v2233 = vpack.c.b16 %v1705, %v1699
        %v2234 = vpack.c.b16 %v1706, %v1700
        %v2235 = vpack.c.b16 %v1707, %v1701
        %v2236 = vpack.c.b16 %v1708, %v1702
        %v2237 = vpack.c.b16 %v1709, %v1703
        %v2238 = vpack.c.b16 %v1710, %v1704
        %v2239 = vpack.c.b16 %v1717, %v1711
        %v2240 = vpack.c.b16 %v1718, %v1712
        %v2241 = vpack.c.b16 %v1719, %v1713
        %v2242 = vpack.c.b16 %v1720, %v1714
        %v2243 = vpack.c.b16 %v1721, %v1715
        %v2244 = vpack.c.b16 %v1722, %v1716
        %v2245 = vpack.c.b16 %v1729, %v1723
        %v2246 = vpack.c.b16 %v1730, %v1724
        %v2247 = vpack.c.b16 %v1731, %v1725
        %v2248 = vpack.c.b16 %v1732, %v1726
        %v2249 = vpack.c.b16 %v1733, %v1727
        %v2250 = vpack.c.b16 %v1734, %v1728
        %v2251 = vpack.c.b16 %v1741, %v1735
        %v2252 = vpack.c.b16 %v1742, %v1736
        %v2253 = vpack.c.b16 %v1743, %v1737
        %v2254 = vpack.c.b16 %v1744, %v1738
        %v2255 = vpack.c.b16 %v1745, %v1739
        %v2256 = vpack.c.b16 %v1746, %v1740
        %v2257 = vpack.c.b16 %v1753, %v1747
        %v2258 = vpack.c.b16 %v1754, %v1748
        %v2259 = vpack.c.b16 %v1755, %v1749
        %v2260 = vpack.c.b16 %v1756, %v1750
        %v2261 = vpack.c.b16 %v1757, %v1751
        %v2262 = vpack.c.b16 %v1758, %v1752
        %v2263 = vpack.c.b16 %v1765, %v1759
        %v2264 = vpack.c.b16 %v1766, %v1760
        %v2265 = vpack.c.b16 %v1767, %v1761
        %v2266 = vpack.c.b16 %v1768, %v1762
        %v2267 = vpack.c.b16 %v1769, %v1763
        %v2268 = vpack.c.b16 %v1770, %v1764
        %v2269 = vpack.c.b16 %v1777, %v1771
        %v2270 = vpack.c.b16 %v1778, %v1772
        %v2271 = vpack.c.b16 %v1779, %v1773
        %v2272 = vpack.c.b16 %v1780, %v1774
        %v2273 = vpack.c.b16 %v1781, %v1775
        %v2274 = vpack.c.b16 %v1782, %v1776
        %v2275 = vpack.c.b16 %v1789, %v1783
        %v2276 = vpack.c.b16 %v1790, %v1784
        %v2277 = vpack.c.b16 %v1791, %v1785
        %v2278 = vpack.c.b16 %v1792, %v1786
        %v2279 = vpack.c.b16 %v1793, %v1787
        %v2280 = vpack.c.b16 %v1794, %v1788
        %v2281 = vpack.c.b16 %v1801, %v1795
        %v2282 = vpack.c.b16 %v1802, %v1796
        %v2283 = vpack.c.b16 %v1803, %v1797
        %v2284 = vpack.c.b16 %v1804, %v1798
        %v2285 = vpack.c.b16 %v1805, %v1799
        %v2286 = vpack.c.b16 %v1806, %v1800
        %v2287 = vpack.c.b16 %v1813, %v1807
        %v2288 = vpack.c.b16 %v1814, %v1808
        %v2289 = vpack.c.b16 %v1815, %v1809
        %v2290 = vpack.c.b16 %v1816, %v1810
        %v2291 = vpack.c.b16 %v1817, %v1811
        %v2292 = vpack.c.b16 %v1818, %v1812
        %v2293 = vpack.c.b16 %v1825, %v1819
        %v2294 = vpack.c.b16 %v1826, %v1820
        %v2295 = vpack.c.b16 %v1827, %v1821
        %v2296 = vpack.c.b16 %v1828, %v1822
        %v2297 = vpack.c.b16 %v1829, %v1823
        %v2298 = vpack.c.b16 %v1830, %v1824
        %v2299 = vpack.c.b16 %v1837, %v1831
        %v2300 = vpack.c.b16 %v1838, %v1832
        %v2301 = vpack.c.b16 %v1839, %v1833
        %v2302 = vpack.c.b16 %v1840, %v1834
        %v2303 = vpack.c.b16 %v1841, %v1835
        %v2304 = vpack.c.b16 %v1842, %v1836
        %v2305 = vpack.c.b16 %v1849, %v1843
        %v2306 = vpack.c.b16 %v1850, %v1844
        %v2307 = vpack.c.b16 %v1851, %v1845
        %v2308 = vpack.c.b16 %v1852, %v1846
        %v2309 = vpack.c.b16 %v1853, %v1847
        %v2310 = vpack.c.b16 %v1854, %v1848
        %v2311 = vpack.c.b16 %v1861, %v1855
        %v2312 = vpack.c.b16 %v1862, %v1856
        %v2313 = vpack.c.b16 %v1863, %v1857
        %v2314 = vpack.c.b16 %v1864, %v1858
        %v2315 = vpack.c.b16 %v1865, %v1859
        %v2316 = vpack.c.b16 %v1866, %v1860
        %v2317 = vpack.c.b16 %v1873, %v1867
        %v2318 = vpack.c.b16 %v1874, %v1868
        %v2319 = vpack.c.b16 %v1875, %v1869
        %v2320 = vpack.c.b16 %v1876, %v1870
        %v2321 = vpack.c.b16 %v1877, %v1871
        %v2322 = vpack.c.b16 %v1878, %v1872
        %v2323 = vpack.c.b16 %v1885, %v1879
        %v2324 = vpack.c.b16 %v1886, %v1880
        %v2325 = vpack.c.b16 %v1887, %v1881
        %v2326 = vpack.c.b16 %v1888, %v1882
        %v2327 = vpack.c.b16 %v1889, %v1883
        %v2328 = vpack.c.b16 %v1890, %v1884
        %v2329 = vpack.c.b16 %v1897, %v1891
        %v2330 = vpack.c.b16 %v1898, %v1892
        %v2331 = vpack.c.b16 %v1899, %v1893
        %v2332 = vpack.c.b16 %v1900, %v1894
        %v2333 = vpack.c.b16 %v1901, %v1895
        %v2334 = vpack.c.b16 %v1902, %v1896
        %v2335 = vpack.c.b16 %v1909, %v1903
        %v2336 = vpack.c.b16 %v1910, %v1904
        %v2337 = vpack.c.b16 %v1911, %v1905
        %v2338 = vpack.c.b16 %v1912, %v1906
        %v2339 = vpack.c.b16 %v1913, %v1907
        %v2340 = vpack.c.b16 %v1914, %v1908
        %v2341 = vpack.c.b16 %v1921, %v1915
        %v2342 = vpack.c.b16 %v1922, %v1916
        %v2343 = vpack.c.b16 %v1923, %v1917
        %v2344 = vpack.c.b16 %v1924, %v1918
        %v2345 = vpack.c.b16 %v1925, %v1919
        %v2346 = vpack.c.b16 %v1926, %v1920
        %v2347 = vpack.c.b16 %v1933, %v1927
        %v2348 = vpack.c.b16 %v1934, %v1928
        %v2349 = vpack.c.b16 %v1935, %v1929
        %v2350 = vpack.c.b16 %v1936, %v1930
        %v2351 = vpack.c.b16 %v1937, %v1931
        %v2352 = vpack.c.b16 %v1938, %v1932
        %v2353 = vpack.c.b16 %v1945, %v1939
        %v2354 = vpack.c.b16 %v1946, %v1940
        %v2355 = vpack.c.b16 %v1947, %v1941
        %v2356 = vpack.c.b16 %v1948, %v1942
        %v2357 = vpack.c.b16 %v1949, %v1943
        %v2358 = vpack.c.b16 %v1950, %v1944
        %v2359 = vpack.c.b16 %v1957, %v1951
        %v2360 = vpack.c.b16 %v1958, %v1952
        %v2361 = vpack.c.b16 %v1959, %v1953
        %v2362 = vpack.c.b16 %v1960, %v1954
        %v2363 = vpack.c.b16 %v1961, %v1955
        %v2364 = vpack.c.b16 %v1962, %v1956
        %v2365 = vpack.c.b16 %v1969, %v1963
        %v2366 = vpack.c.b16 %v1970, %v1964
        %v2367 = vpack.c.b16 %v1971, %v1965
        %v2368 = vpack.c.b16 %v1972, %v1966
        %v2369 = vpack.c.b16 %v1973, %v1967
        %v2370 = vpack.c.b16 %v1974, %v1968
        %v2371 = vpack.c.b16 %v1981, %v1975
        %v2372 = vpack.c.b16 %v1982, %v1976
        %v2373 = vpack.c.b16 %v1983, %v1977
        %v2374 = vpack.c.b16 %v1984, %v1978
        %v2375 = vpack.c.b16 %v1985, %v1979
        %v2376 = vpack.c.b16 %v1986, %v1980
        %v2377 = vpack.c.b16 %v1993, %v1987
        %v2378 = vpack.c.b16 %v1994, %v1988
        %v2379 = vpack.c.b16 %v1995, %v1989
        %v2380 = vpack.c.b16 %v1996, %v1990
        %v2381 = vpack.c.b16 %v1997, %v1991
        %v2382 = vpack.c.b16 %v1998, %v1992
        %2767 = vmatprep.subr.bf16.mxu0 %v2042
        %2768 = vmatpush1.bf16.msra.mxu0 %v2041
        %2769 = vmatprep.subr.bf16.mxu0 %v2036
        %2770 = vmatpush1.bf16.msra.mxu0 %v2035
        %2771 = vmatprep.subr.bf16.mxu0 %v2030
        %2772 = vmatpush1.bf16.msra.mxu0 %v2029
        %2773 = vmatprep.subr.bf16.mxu0 %v2024
        %2774 = vmatpush1.bf16.msra.mxu0 %v2023
        %2775 = vmatprep.subr.bf16.mxu0 %v2018
        %2776 = vmatpush1.bf16.msra.mxu0 %v2017
        %2777 = vmatprep.subr.bf16.mxu0 %v2012
        %2778 = vmatpush1.bf16.msra.mxu0 %v2011
        %2779 = vmatprep.subr.bf16.mxu0 %v2006
        %2780 = vmatpush1.bf16.msra.mxu0 %v2005
        %2781 = vmatprep.subr.bf16.mxu0 %v2000
        %2782 = vmatpush1.bf16.msra.mxu0 %v1999
        %2783 = vmatprep.subr.bf16.mxu0 %v2090
        %2784 = vmatpush2.bf16.msra.mxu0 %v2089
        %2785 = vmatprep.subr.bf16.mxu0 %v2084
        %2786 = vmatpush2.bf16.msra.mxu0 %v2083
        %2787 = vmatprep.subr.bf16.mxu0 %v2078
        %2788 = vmatpush2.bf16.msra.mxu0 %v2077
        %2789 = vmatprep.subr.bf16.mxu0 %v2072
        %2790 = vmatpush2.bf16.msra.mxu0 %v2071
        %2791 = vmatprep.subr.bf16.mxu0 %v2066
        %2792 = vmatpush2.bf16.msra.mxu0 %v2065
        %2793 = vmatprep.subr.bf16.mxu0 %v2060
        %2794 = vmatpush2.bf16.msra.mxu0 %v2059
        %2795 = vmatprep.subr.bf16.mxu0 %v2054
        %2796 = vmatpush2.bf16.msra.mxu0 %v2053
        %2797 = vmatprep.subr.bf16.mxu0 %v2048
        %2798 = vmatpush2.bf16.msra.mxu0 %v2047
        %2799 = vmatprep.mubr.bf16.mxu0 %v832
        %2800 = vmatmul.mubr.bf16.gmra.mxu0 %v831
        %v2801 = vpop.f32.mrf.mxu0
        %v2802 = vadd.f32 %v780, %v2801
        %v2803 = vpop.f32.mrf.mxu0
        %v2804 = vadd.f32 %v784, %v2803
        %v2805 = vpop.f32.mrf.mxu0
        %v2806 = vadd.f32 %v780, %v2805
        %v2807 = vpop.f32.mrf.mxu0
        %v2808 = vadd.f32 %v784, %v2807
        %2809 = vdwg.mxu0
        %2810 = vmatprep.subr.bf16.mxu0 %v2138
        %2811 = vmatpush1.bf16.msra.mxu0 %v2137
        %2812 = vmatprep.subr.bf16.mxu0 %v2132
        %2813 = vmatpush1.bf16.msra.mxu0 %v2131
        %2814 = vmatprep.subr.bf16.mxu0 %v2126
        %2815 = vmatpush1.bf16.msra.mxu0 %v2125
        %2816 = vmatprep.subr.bf16.mxu0 %v2120
        %2817 = vmatpush1.bf16.msra.mxu0 %v2119
        %2818 = vmatprep.subr.bf16.mxu0 %v2114
        %2819 = vmatpush1.bf16.msra.mxu0 %v2113
        %2820 = vmatprep.subr.bf16.mxu0 %v2108
        %2821 = vmatpush1.bf16.msra.mxu0 %v2107
        %2822 = vmatprep.subr.bf16.mxu0 %v2102
        %2823 = vmatpush1.bf16.msra.mxu0 %v2101
        %2824 = vmatprep.subr.bf16.mxu0 %v2096
        %2825 = vmatpush1.bf16.msra.mxu0 %v2095
        %2826 = vmatprep.subr.bf16.mxu0 %v2186
        %2827 = vmatpush2.bf16.msra.mxu0 %v2185
        %2828 = vmatprep.subr.bf16.mxu0 %v2180
        %2829 = vmatpush2.bf16.msra.mxu0 %v2179
        %2830 = vmatprep.subr.bf16.mxu0 %v2174
        %2831 = vmatpush2.bf16.msra.mxu0 %v2173
        %2832 = vmatprep.subr.bf16.mxu0 %v2168
        %2833 = vmatpush2.bf16.msra.mxu0 %v2167
        %2834 = vmatprep.subr.bf16.mxu0 %v2162
        %2835 = vmatpush2.bf16.msra.mxu0 %v2161
        %2836 = vmatprep.subr.bf16.mxu0 %v2156
        %2837 = vmatpush2.bf16.msra.mxu0 %v2155
        %2838 = vmatprep.subr.bf16.mxu0 %v2150
        %2839 = vmatpush2.bf16.msra.mxu0 %v2149
        %2840 = vmatprep.subr.bf16.mxu0 %v2144
        %2841 = vmatpush2.bf16.msra.mxu0 %v2143
        %2842 = vmatprep.mubr.bf16.mxu0 %v834
        %2843 = vmatmul.mubr.bf16.gmra.mxu0 %v833
        %v2844 = vpop.f32.mrf.mxu0
        %v2845 = vadd.f32 %v2802, %v2844
        %v2846 = vpop.f32.mrf.mxu0
        %v2847 = vadd.f32 %v2804, %v2846
        %v2848 = vpop.f32.mrf.mxu0
        %v2849 = vadd.f32 %v2806, %v2848
        %v2850 = vpop.f32.mrf.mxu0
        %v2851 = vadd.f32 %v2808, %v2850
        %2852 = vdwg.mxu0
        %2853 = vmatprep.subr.bf16.mxu0 %v2234
        %2854 = vmatpush1.bf16.msra.mxu0 %v2233
        %2855 = vmatprep.subr.bf16.mxu0 %v2228
        %2856 = vmatpush1.bf16.msra.mxu0 %v2227
        %2857 = vmatprep.subr.bf16.mxu0 %v2222
        %2858 = vmatpush1.bf16.msra.mxu0 %v2221
        %2859 = vmatprep.subr.bf16.mxu0 %v2216
        %2860 = vmatpush1.bf16.msra.mxu0 %v2215
        %2861 = vmatprep.subr.bf16.mxu0 %v2210
        %2862 = vmatpush1.bf16.msra.mxu0 %v2209
        %2863 = vmatprep.subr.bf16.mxu0 %v2204
        %2864 = vmatpush1.bf16.msra.mxu0 %v2203
        %2865 = vmatprep.subr.bf16.mxu0 %v2198
        %2866 = vmatpush1.bf16.msra.mxu0 %v2197
        %2867 = vmatprep.subr.bf16.mxu0 %v2192
        %2868 = vmatpush1.bf16.msra.mxu0 %v2191
        %2869 = vmatprep.subr.bf16.mxu0 %v2282
        %2870 = vmatpush2.bf16.msra.mxu0 %v2281
        %2871 = vmatprep.subr.bf16.mxu0 %v2276
        %2872 = vmatpush2.bf16.msra.mxu0 %v2275
        %2873 = vmatprep.subr.bf16.mxu0 %v2270
        %2874 = vmatpush2.bf16.msra.mxu0 %v2269
        %2875 = vmatprep.subr.bf16.mxu0 %v2264
        %2876 = vmatpush2.bf16.msra.mxu0 %v2263
        %2877 = vmatprep.subr.bf16.mxu0 %v2258
        %2878 = vmatpush2.bf16.msra.mxu0 %v2257
        %2879 = vmatprep.subr.bf16.mxu0 %v2252
        %2880 = vmatpush2.bf16.msra.mxu0 %v2251
        %2881 = vmatprep.subr.bf16.mxu0 %v2246
        %2882 = vmatpush2.bf16.msra.mxu0 %v2245
        %2883 = vmatprep.subr.bf16.mxu0 %v2240
        %2884 = vmatpush2.bf16.msra.mxu0 %v2239
        %2885 = vmatprep.mubr.bf16.mxu0 %v836
        %2886 = vmatmul.mubr.bf16.gmra.mxu0 %v835
        %v2887 = vpop.f32.mrf.mxu0
        %v2888 = vadd.f32 %v2845, %v2887
        %v2889 = vpop.f32.mrf.mxu0
        %v2890 = vadd.f32 %v2847, %v2889
        %v2891 = vpop.f32.mrf.mxu0
        %v2892 = vadd.f32 %v2849, %v2891
        %v2893 = vpop.f32.mrf.mxu0
        %v2894 = vadd.f32 %v2851, %v2893
        %2895 = vdwg.mxu0
        %2896 = vmatprep.subr.bf16.mxu0 %v2330
        %2897 = vmatpush1.bf16.msra.mxu0 %v2329
        %2898 = vmatprep.subr.bf16.mxu0 %v2324
        %2899 = vmatpush1.bf16.msra.mxu0 %v2323
        %2900 = vmatprep.subr.bf16.mxu0 %v2318
        %2901 = vmatpush1.bf16.msra.mxu0 %v2317
        %2902 = vmatprep.subr.bf16.mxu0 %v2312
        %2903 = vmatpush1.bf16.msra.mxu0 %v2311
        %2904 = vmatprep.subr.bf16.mxu0 %v2306
        %2905 = vmatpush1.bf16.msra.mxu0 %v2305
        %2906 = vmatprep.subr.bf16.mxu0 %v2300
        %2907 = vmatpush1.bf16.msra.mxu0 %v2299
        %2908 = vmatprep.subr.bf16.mxu0 %v2294
        %2909 = vmatpush1.bf16.msra.mxu0 %v2293
        %2910 = vmatprep.subr.bf16.mxu0 %v2288
        %2911 = vmatpush1.bf16.msra.mxu0 %v2287
        %2912 = vmatprep.subr.bf16.mxu0 %v2378
        %2913 = vmatpush2.bf16.msra.mxu0 %v2377
        %2914 = vmatprep.subr.bf16.mxu0 %v2372
        %2915 = vmatpush2.bf16.msra.mxu0 %v2371
        %2916 = vmatprep.subr.bf16.mxu0 %v2366
        %2917 = vmatpush2.bf16.msra.mxu0 %v2365
        %2918 = vmatprep.subr.bf16.mxu0 %v2360
        %2919 = vmatpush2.bf16.msra.mxu0 %v2359
        %2920 = vmatprep.subr.bf16.mxu0 %v2354
        %2921 = vmatpush2.bf16.msra.mxu0 %v2353
        %2922 = vmatprep.subr.bf16.mxu0 %v2348
        %2923 = vmatpush2.bf16.msra.mxu0 %v2347
        %2924 = vmatprep.subr.bf16.mxu0 %v2342
        %2925 = vmatpush2.bf16.msra.mxu0 %v2341
        %2926 = vmatprep.subr.bf16.mxu0 %v2336
        %2927 = vmatpush2.bf16.msra.mxu0 %v2335
        %2928 = vmatprep.mubr.bf16.mxu0 %v838
        %2929 = vmatmul.mubr.bf16.gmra.mxu0 %v837
        %v2930 = vpop.f32.mrf.mxu0
        %v2931 = vadd.f32 %v2888, %v2930
        %v2932 = vpop.f32.mrf.mxu0
        %v2933 = vadd.f32 %v2890, %v2932
        %v2934 = vpop.f32.mrf.mxu0
        %v2935 = vadd.f32 %v2892, %v2934
        %v2936 = vpop.f32.mrf.mxu0
        %v2937 = vadd.f32 %v2894, %v2936
        %2938 = vdwg.mxu0
        %2939 = vmatprep.subr.bf16.mxu0 %v2044
        %2940 = vmatpush1.bf16.msra.mxu0 %v2043
        %2941 = vmatprep.subr.bf16.mxu0 %v2038
        %2942 = vmatpush1.bf16.msra.mxu0 %v2037
        %2943 = vmatprep.subr.bf16.mxu0 %v2032
        %2944 = vmatpush1.bf16.msra.mxu0 %v2031
        %2945 = vmatprep.subr.bf16.mxu0 %v2026
        %2946 = vmatpush1.bf16.msra.mxu0 %v2025
        %2947 = vmatprep.subr.bf16.mxu0 %v2020
        %2948 = vmatpush1.bf16.msra.mxu0 %v2019
        %2949 = vmatprep.subr.bf16.mxu0 %v2014
        %2950 = vmatpush1.bf16.msra.mxu0 %v2013
        %2951 = vmatprep.subr.bf16.mxu0 %v2008
        %2952 = vmatpush1.bf16.msra.mxu0 %v2007
        %2953 = vmatprep.subr.bf16.mxu0 %v2002
        %2954 = vmatpush1.bf16.msra.mxu0 %v2001
        %2955 = vmatprep.subr.bf16.mxu0 %v2092
        %2956 = vmatpush2.bf16.msra.mxu0 %v2091
        %2957 = vmatprep.subr.bf16.mxu0 %v2086
        %2958 = vmatpush2.bf16.msra.mxu0 %v2085
        %2959 = vmatprep.subr.bf16.mxu0 %v2080
        %2960 = vmatpush2.bf16.msra.mxu0 %v2079
        %2961 = vmatprep.subr.bf16.mxu0 %v2074
        %2962 = vmatpush2.bf16.msra.mxu0 %v2073
        %2963 = vmatprep.subr.bf16.mxu0 %v2068
        %2964 = vmatpush2.bf16.msra.mxu0 %v2067
        %2965 = vmatprep.subr.bf16.mxu0 %v2062
        %2966 = vmatpush2.bf16.msra.mxu0 %v2061
        %2967 = vmatprep.subr.bf16.mxu0 %v2056
        %2968 = vmatpush2.bf16.msra.mxu0 %v2055
        %2969 = vmatprep.subr.bf16.mxu0 %v2050
        %2970 = vmatpush2.bf16.msra.mxu0 %v2049
        %2971 = vmatprep.mubr.bf16.mxu0 %v832
        %2972 = vmatmul.mubr.bf16.gmra.mxu0 %v831
        %v2973 = vpop.f32.mrf.mxu0
        %v2974 = vadd.f32 %v788, %v2973
        %v2975 = vpop.f32.mrf.mxu0
        %v2976 = vadd.f32 %v792, %v2975
        %v2977 = vpop.f32.mrf.mxu0
        %v2978 = vadd.f32 %v788, %v2977
        %v2979 = vpop.f32.mrf.mxu0
        %v2980 = vadd.f32 %v792, %v2979
        %2981 = vdwg.mxu0
        %2982 = vmatprep.subr.bf16.mxu0 %v2140
        %2983 = vmatpush1.bf16.msra.mxu0 %v2139
        %2984 = vmatprep.subr.bf16.mxu0 %v2134
        %2985 = vmatpush1.bf16.msra.mxu0 %v2133
        %2986 = vmatprep.subr.bf16.mxu0 %v2128
        %2987 = vmatpush1.bf16.msra.mxu0 %v2127
        %2988 = vmatprep.subr.bf16.mxu0 %v2122
        %2989 = vmatpush1.bf16.msra.mxu0 %v2121
        %2990 = vmatprep.subr.bf16.mxu0 %v2116
        %2991 = vmatpush1.bf16.msra.mxu0 %v2115
        %2992 = vmatprep.subr.bf16.mxu0 %v2110
        %2993 = vmatpush1.bf16.msra.mxu0 %v2109
        %2994 = vmatprep.subr.bf16.mxu0 %v2104
        %2995 = vmatpush1.bf16.msra.mxu0 %v2103
        %2996 = vmatprep.subr.bf16.mxu0 %v2098
        %2997 = vmatpush1.bf16.msra.mxu0 %v2097
        %2998 = vmatprep.subr.bf16.mxu0 %v2188
        %2999 = vmatpush2.bf16.msra.mxu0 %v2187
        %3000 = vmatprep.subr.bf16.mxu0 %v2182
        %3001 = vmatpush2.bf16.msra.mxu0 %v2181
        %3002 = vmatprep.subr.bf16.mxu0 %v2176
        %3003 = vmatpush2.bf16.msra.mxu0 %v2175
        %3004 = vmatprep.subr.bf16.mxu0 %v2170
        %3005 = vmatpush2.bf16.msra.mxu0 %v2169
        %3006 = vmatprep.subr.bf16.mxu0 %v2164
        %3007 = vmatpush2.bf16.msra.mxu0 %v2163
        %3008 = vmatprep.subr.bf16.mxu0 %v2158
        %3009 = vmatpush2.bf16.msra.mxu0 %v2157
        %3010 = vmatprep.subr.bf16.mxu0 %v2152
        %3011 = vmatpush2.bf16.msra.mxu0 %v2151
        %3012 = vmatprep.subr.bf16.mxu0 %v2146
        %3013 = vmatpush2.bf16.msra.mxu0 %v2145
        %3014 = vmatprep.mubr.bf16.mxu0 %v834
        %3015 = vmatmul.mubr.bf16.gmra.mxu0 %v833
        %v3016 = vpop.f32.mrf.mxu0
        %v3017 = vadd.f32 %v2974, %v3016
        %v3018 = vpop.f32.mrf.mxu0
        %v3019 = vadd.f32 %v2976, %v3018
        %v3020 = vpop.f32.mrf.mxu0
        %v3021 = vadd.f32 %v2978, %v3020
        %v3022 = vpop.f32.mrf.mxu0
        %v3023 = vadd.f32 %v2980, %v3022
        %3024 = vdwg.mxu0
        %3025 = vmatprep.subr.bf16.mxu0 %v2236
        %3026 = vmatpush1.bf16.msra.mxu0 %v2235
        %3027 = vmatprep.subr.bf16.mxu0 %v2230
        %3028 = vmatpush1.bf16.msra.mxu0 %v2229
        %3029 = vmatprep.subr.bf16.mxu0 %v2224
        %3030 = vmatpush1.bf16.msra.mxu0 %v2223
        %3031 = vmatprep.subr.bf16.mxu0 %v2218
        %3032 = vmatpush1.bf16.msra.mxu0 %v2217
        %3033 = vmatprep.subr.bf16.mxu0 %v2212
        %3034 = vmatpush1.bf16.msra.mxu0 %v2211
        %3035 = vmatprep.subr.bf16.mxu0 %v2206
        %3036 = vmatpush1.bf16.msra.mxu0 %v2205
        %3037 = vmatprep.subr.bf16.mxu0 %v2200
        %3038 = vmatpush1.bf16.msra.mxu0 %v2199
        %3039 = vmatprep.subr.bf16.mxu0 %v2194
        %3040 = vmatpush1.bf16.msra.mxu0 %v2193
        %3041 = vmatprep.subr.bf16.mxu0 %v2284
        %3042 = vmatpush2.bf16.msra.mxu0 %v2283
        %3043 = vmatprep.subr.bf16.mxu0 %v2278
        %3044 = vmatpush2.bf16.msra.mxu0 %v2277
        %3045 = vmatprep.subr.bf16.mxu0 %v2272
        %3046 = vmatpush2.bf16.msra.mxu0 %v2271
        %3047 = vmatprep.subr.bf16.mxu0 %v2266
        %3048 = vmatpush2.bf16.msra.mxu0 %v2265
        %3049 = vmatprep.subr.bf16.mxu0 %v2260
        %3050 = vmatpush2.bf16.msra.mxu0 %v2259
        %3051 = vmatprep.subr.bf16.mxu0 %v2254
        %3052 = vmatpush2.bf16.msra.mxu0 %v2253
        %3053 = vmatprep.subr.bf16.mxu0 %v2248
        %3054 = vmatpush2.bf16.msra.mxu0 %v2247
        %3055 = vmatprep.subr.bf16.mxu0 %v2242
        %3056 = vmatpush2.bf16.msra.mxu0 %v2241
        %3057 = vmatprep.mubr.bf16.mxu0 %v836
        %3058 = vmatmul.mubr.bf16.gmra.mxu0 %v835
        %v3059 = vpop.f32.mrf.mxu0
        %v3060 = vadd.f32 %v3017, %v3059
        %v3061 = vpop.f32.mrf.mxu0
        %v3062 = vadd.f32 %v3019, %v3061
        %v3063 = vpop.f32.mrf.mxu0
        %v3064 = vadd.f32 %v3021, %v3063
        %v3065 = vpop.f32.mrf.mxu0
        %v3066 = vadd.f32 %v3023, %v3065
        %3067 = vdwg.mxu0
        %3068 = vmatprep.subr.bf16.mxu0 %v2332
        %3069 = vmatpush1.bf16.msra.mxu0 %v2331
        %3070 = vmatprep.subr.bf16.mxu0 %v2326
        %3071 = vmatpush1.bf16.msra.mxu0 %v2325
        %3072 = vmatprep.subr.bf16.mxu0 %v2320
        %3073 = vmatpush1.bf16.msra.mxu0 %v2319
        %3074 = vmatprep.subr.bf16.mxu0 %v2314
        %3075 = vmatpush1.bf16.msra.mxu0 %v2313
        %3076 = vmatprep.subr.bf16.mxu0 %v2308
        %3077 = vmatpush1.bf16.msra.mxu0 %v2307
        %3078 = vmatprep.subr.bf16.mxu0 %v2302
        %3079 = vmatpush1.bf16.msra.mxu0 %v2301
        %3080 = vmatprep.subr.bf16.mxu0 %v2296
        %3081 = vmatpush1.bf16.msra.mxu0 %v2295
        %3082 = vmatprep.subr.bf16.mxu0 %v2290
        %3083 = vmatpush1.bf16.msra.mxu0 %v2289
        %3084 = vmatprep.subr.bf16.mxu0 %v2380
        %3085 = vmatpush2.bf16.msra.mxu0 %v2379
        %3086 = vmatprep.subr.bf16.mxu0 %v2374
        %3087 = vmatpush2.bf16.msra.mxu0 %v2373
        %3088 = vmatprep.subr.bf16.mxu0 %v2368
        %3089 = vmatpush2.bf16.msra.mxu0 %v2367
        %3090 = vmatprep.subr.bf16.mxu0 %v2362
        %3091 = vmatpush2.bf16.msra.mxu0 %v2361
        %3092 = vmatprep.subr.bf16.mxu0 %v2356
        %3093 = vmatpush2.bf16.msra.mxu0 %v2355
        %3094 = vmatprep.subr.bf16.mxu0 %v2350
        %3095 = vmatpush2.bf16.msra.mxu0 %v2349
        %3096 = vmatprep.subr.bf16.mxu0 %v2344
        %3097 = vmatpush2.bf16.msra.mxu0 %v2343
        %3098 = vmatprep.subr.bf16.mxu0 %v2338
        %3099 = vmatpush2.bf16.msra.mxu0 %v2337
        %3100 = vmatprep.mubr.bf16.mxu0 %v838
        %3101 = vmatmul.mubr.bf16.gmra.mxu0 %v837
        %v3102 = vpop.f32.mrf.mxu0
        %v3103 = vadd.f32 %v3060, %v3102
        %v3104 = vpop.f32.mrf.mxu0
        %v3105 = vadd.f32 %v3062, %v3104
        %v3106 = vpop.f32.mrf.mxu0
        %v3107 = vadd.f32 %v3064, %v3106
        %v3108 = vpop.f32.mrf.mxu0
        %v3109 = vadd.f32 %v3066, %v3108
        %3110 = vdwg.mxu0
        %3111 = vmatprep.subr.bf16.mxu0 %v2046
        %3112 = vmatpush1.bf16.msra.mxu0 %v2045
        %3113 = vmatprep.subr.bf16.mxu0 %v2040
        %3114 = vmatpush1.bf16.msra.mxu0 %v2039
        %3115 = vmatprep.subr.bf16.mxu0 %v2034
        %3116 = vmatpush1.bf16.msra.mxu0 %v2033
        %3117 = vmatprep.subr.bf16.mxu0 %v2028
        %3118 = vmatpush1.bf16.msra.mxu0 %v2027
        %3119 = vmatprep.subr.bf16.mxu0 %v2022
        %3120 = vmatpush1.bf16.msra.mxu0 %v2021
        %3121 = vmatprep.subr.bf16.mxu0 %v2016
        %3122 = vmatpush1.bf16.msra.mxu0 %v2015
        %3123 = vmatprep.subr.bf16.mxu0 %v2010
        %3124 = vmatpush1.bf16.msra.mxu0 %v2009
        %3125 = vmatprep.subr.bf16.mxu0 %v2004
        %3126 = vmatpush1.bf16.msra.mxu0 %v2003
        %3127 = vmatprep.subr.bf16.mxu0 %v2094
        %3128 = vmatpush2.bf16.msra.mxu0 %v2093
        %3129 = vmatprep.subr.bf16.mxu0 %v2088
        %3130 = vmatpush2.bf16.msra.mxu0 %v2087
        %3131 = vmatprep.subr.bf16.mxu0 %v2082
        %3132 = vmatpush2.bf16.msra.mxu0 %v2081
        %3133 = vmatprep.subr.bf16.mxu0 %v2076
        %3134 = vmatpush2.bf16.msra.mxu0 %v2075
        %3135 = vmatprep.subr.bf16.mxu0 %v2070
        %3136 = vmatpush2.bf16.msra.mxu0 %v2069
        %3137 = vmatprep.subr.bf16.mxu0 %v2064
        %3138 = vmatpush2.bf16.msra.mxu0 %v2063
        %3139 = vmatprep.subr.bf16.mxu0 %v2058
        %3140 = vmatpush2.bf16.msra.mxu0 %v2057
        %3141 = vmatprep.subr.bf16.mxu0 %v2052
        %3142 = vmatpush2.bf16.msra.mxu0 %v2051
        %3143 = vmatprep.mubr.bf16.mxu0 %v832
        %3144 = vmatmul.mubr.bf16.gmra.mxu0 %v831
        %v3145 = vpop.f32.mrf.mxu0
        %v3146 = vadd.f32 %v796, %v3145
        %v3147 = vpop.f32.mrf.mxu0
        %v3148 = vadd.f32 %v800, %v3147
        %v3149 = vpop.f32.mrf.mxu0
        %v3150 = vadd.f32 %v796, %v3149
        %v3151 = vpop.f32.mrf.mxu0
        %v3152 = vadd.f32 %v800, %v3151
        %3153 = vdwg.mxu0
        %3154 = vmatprep.subr.bf16.mxu0 %v2142
        %3155 = vmatpush1.bf16.msra.mxu0 %v2141
        %3156 = vmatprep.subr.bf16.mxu0 %v2136
        %3157 = vmatpush1.bf16.msra.mxu0 %v2135
        %3158 = vmatprep.subr.bf16.mxu0 %v2130
        %3159 = vmatpush1.bf16.msra.mxu0 %v2129
        %3160 = vmatprep.subr.bf16.mxu0 %v2124
        %3161 = vmatpush1.bf16.msra.mxu0 %v2123
        %3162 = vmatprep.subr.bf16.mxu0 %v2118
        %3163 = vmatpush1.bf16.msra.mxu0 %v2117
        %3164 = vmatprep.subr.bf16.mxu0 %v2112
        %3165 = vmatpush1.bf16.msra.mxu0 %v2111
        %3166 = vmatprep.subr.bf16.mxu0 %v2106
        %3167 = vmatpush1.bf16.msra.mxu0 %v2105
        %3168 = vmatprep.subr.bf16.mxu0 %v2100
        %3169 = vmatpush1.bf16.msra.mxu0 %v2099
        %3170 = vmatprep.subr.bf16.mxu0 %v2190
        %3171 = vmatpush2.bf16.msra.mxu0 %v2189
        %3172 = vmatprep.subr.bf16.mxu0 %v2184
        %3173 = vmatpush2.bf16.msra.mxu0 %v2183
        %3174 = vmatprep.subr.bf16.mxu0 %v2178
        %3175 = vmatpush2.bf16.msra.mxu0 %v2177
        %3176 = vmatprep.subr.bf16.mxu0 %v2172
        %3177 = vmatpush2.bf16.msra.mxu0 %v2171
        %3178 = vmatprep.subr.bf16.mxu0 %v2166
        %3179 = vmatpush2.bf16.msra.mxu0 %v2165
        %3180 = vmatprep.subr.bf16.mxu0 %v2160
        %3181 = vmatpush2.bf16.msra.mxu0 %v2159
        %3182 = vmatprep.subr.bf16.mxu0 %v2154
        %3183 = vmatpush2.bf16.msra.mxu0 %v2153
        %3184 = vmatprep.subr.bf16.mxu0 %v2148
        %3185 = vmatpush2.bf16.msra.mxu0 %v2147
        %3186 = vmatprep.mubr.bf16.mxu0 %v834
        %3187 = vmatmul.mubr.bf16.gmra.mxu0 %v833
        %v3188 = vpop.f32.mrf.mxu0
        %v3189 = vadd.f32 %v3146, %v3188
        %v3190 = vpop.f32.mrf.mxu0
        %v3191 = vadd.f32 %v3148, %v3190
        %v3192 = vpop.f32.mrf.mxu0
        %v3193 = vadd.f32 %v3150, %v3192
        %v3194 = vpop.f32.mrf.mxu0
        %v3195 = vadd.f32 %v3152, %v3194
        %3196 = vdwg.mxu0
        %3197 = vmatprep.subr.bf16.mxu0 %v2238
        %3198 = vmatpush1.bf16.msra.mxu0 %v2237
        %3199 = vmatprep.subr.bf16.mxu0 %v2232
        %3200 = vmatpush1.bf16.msra.mxu0 %v2231
        %3201 = vmatprep.subr.bf16.mxu0 %v2226
        %3202 = vmatpush1.bf16.msra.mxu0 %v2225
        %3203 = vmatprep.subr.bf16.mxu0 %v2220
        %3204 = vmatpush1.bf16.msra.mxu0 %v2219
        %3205 = vmatprep.subr.bf16.mxu0 %v2214
        %3206 = vmatpush1.bf16.msra.mxu0 %v2213
        %3207 = vmatprep.subr.bf16.mxu0 %v2208
        %3208 = vmatpush1.bf16.msra.mxu0 %v2207
        %3209 = vmatprep.subr.bf16.mxu0 %v2202
        %3210 = vmatpush1.bf16.msra.mxu0 %v2201
        %3211 = vmatprep.subr.bf16.mxu0 %v2196
        %3212 = vmatpush1.bf16.msra.mxu0 %v2195
        %3213 = vmatprep.subr.bf16.mxu0 %v2286
        %3214 = vmatpush2.bf16.msra.mxu0 %v2285
        %3215 = vmatprep.subr.bf16.mxu0 %v2280
        %3216 = vmatpush2.bf16.msra.mxu0 %v2279
        %3217 = vmatprep.subr.bf16.mxu0 %v2274
        %3218 = vmatpush2.bf16.msra.mxu0 %v2273
        %3219 = vmatprep.subr.bf16.mxu0 %v2268
        %3220 = vmatpush2.bf16.msra.mxu0 %v2267
        %3221 = vmatprep.subr.bf16.mxu0 %v2262
        %3222 = vmatpush2.bf16.msra.mxu0 %v2261
        %3223 = vmatprep.subr.bf16.mxu0 %v2256
        %3224 = vmatpush2.bf16.msra.mxu0 %v2255
        %3225 = vmatprep.subr.bf16.mxu0 %v2250
        %3226 = vmatpush2.bf16.msra.mxu0 %v2249
        %3227 = vmatprep.subr.bf16.mxu0 %v2244
        %3228 = vmatpush2.bf16.msra.mxu0 %v2243
        %3229 = vmatprep.mubr.bf16.mxu0 %v836
        %3230 = vmatmul.mubr.bf16.gmra.mxu0 %v835
        %v3231 = vpop.f32.mrf.mxu0
        %v3232 = vadd.f32 %v3189, %v3231
        %v3233 = vpop.f32.mrf.mxu0
        %v3234 = vadd.f32 %v3191, %v3233
        %v3235 = vpop.f32.mrf.mxu0
        %v3236 = vadd.f32 %v3193, %v3235
        %v3237 = vpop.f32.mrf.mxu0
        %v3238 = vadd.f32 %v3195, %v3237
        %3239 = vdwg.mxu0
        %3240 = vmatprep.subr.bf16.mxu0 %v2334
        %3241 = vmatpush1.bf16.msra.mxu0 %v2333
        %3242 = vmatprep.subr.bf16.mxu0 %v2328
        %3243 = vmatpush1.bf16.msra.mxu0 %v2327
        %3244 = vmatprep.subr.bf16.mxu0 %v2322
        %3245 = vmatpush1.bf16.msra.mxu0 %v2321
        %3246 = vmatprep.subr.bf16.mxu0 %v2316
        %3247 = vmatpush1.bf16.msra.mxu0 %v2315
        %3248 = vmatprep.subr.bf16.mxu0 %v2310
        %3249 = vmatpush1.bf16.msra.mxu0 %v2309
        %3250 = vmatprep.subr.bf16.mxu0 %v2304
        %3251 = vmatpush1.bf16.msra.mxu0 %v2303
        %3252 = vmatprep.subr.bf16.mxu0 %v2298
        %3253 = vmatpush1.bf16.msra.mxu0 %v2297
        %3254 = vmatprep.subr.bf16.mxu0 %v2292
        %3255 = vmatpush1.bf16.msra.mxu0 %v2291
        %3256 = vmatprep.subr.bf16.mxu0 %v2382
        %3257 = vmatpush2.bf16.msra.mxu0 %v2381
        %3258 = vmatprep.subr.bf16.mxu0 %v2376
        %3259 = vmatpush2.bf16.msra.mxu0 %v2375
        %3260 = vmatprep.subr.bf16.mxu0 %v2370
        %3261 = vmatpush2.bf16.msra.mxu0 %v2369
        %3262 = vmatprep.subr.bf16.mxu0 %v2364
        %3263 = vmatpush2.bf16.msra.mxu0 %v2363
        %3264 = vmatprep.subr.bf16.mxu0 %v2358
        %3265 = vmatpush2.bf16.msra.mxu0 %v2357
        %3266 = vmatprep.subr.bf16.mxu0 %v2352
        %3267 = vmatpush2.bf16.msra.mxu0 %v2351
        %3268 = vmatprep.subr.bf16.mxu0 %v2346
        %3269 = vmatpush2.bf16.msra.mxu0 %v2345
        %3270 = vmatprep.subr.bf16.mxu0 %v2340
        %3271 = vmatpush2.bf16.msra.mxu0 %v2339
        %3272 = vmatprep.mubr.bf16.mxu0 %v838
        %3273 = vmatmul.mubr.bf16.gmra.mxu0 %v837
        %v3274 = vpop.f32.mrf.mxu0
        %v3275 = vadd.f32 %v3232, %v3274
        %v3276 = vpop.f32.mrf.mxu0
        %v3277 = vadd.f32 %v3234, %v3276
        %v3278 = vpop.f32.mrf.mxu0
        %v3279 = vadd.f32 %v3236, %v3278
        %v3280 = vpop.f32.mrf.mxu0
        %v3281 = vadd.f32 %v3238, %v3280
        %3282 = vdwg.mxu0
        %v3283 = vpack.c.bf16 %v2935, %v2931
        %v3284 = vpack.c.bf16 %v2937, %v2933
        %v3285 = vpack.c.bf16 %v3107, %v3103
        %v3286 = vpack.c.bf16 %v3109, %v3105
        %v3287 = vpack.c.bf16 %v3279, %v3275
        %v3288 = vpack.c.bf16 %v3281, %v3277
        %v3289 = vlaneseq
        %v3290 = vand.u32 %v3289, 127
        %v3291 = vstv %s382
        %vm3292 = vcmp.lt.s32.totalorder %v3290, %v3291
        %v3293 = vsel %vm3292, 0.0, -1e+30
        %vm3294 = vcmask 261120
        %v3296 = vsel %vm3294, %v3283, 0
        %v3299 = vsel %vm3294, %v3285, 0
        %3301 = vmatprep.subr.bf16.mxu0 0
        %3302 = vmatpush1.bf16.xpose.msra.mxu0 0
        %3303 = vmatprep.subr.bf16.mxu0 0
        %3304 = vmatpush1.bf16.xpose.msra.mxu0 0
        %3305 = vmatprep.subr.bf16.mxu0 0
        %3306 = vmatpush1.bf16.xpose.msra.mxu0 0
        %3307 = vmatprep.subr.bf16.mxu0 0
        %3308 = vmatpush1.bf16.xpose.msra.mxu0 0
        %3309 = vmatprep.subr.bf16.mxu0 0
        %3310 = vmatpush1.bf16.xpose.msra.mxu0 0
        %3311 = vmatprep.subr.bf16.mxu0 0
        %3312 = vmatpush1.bf16.xpose.msra.mxu0 0
        %3313 = vmatprep.subr.bf16.mxu0 0
        %3314 = vmatpush1.bf16.xpose.msra.mxu0 0
        %3315 = vmatprep.subr.bf16.mxu0 0
        %3316 = vmatpush1.bf16.xpose.msra.mxu0 %v3299
        %3317 = vmatprep.subr.bf16.mxu0 0
        %3318 = vmatpush2.bf16.xpose.msra.mxu0 0
        %3319 = vmatprep.subr.bf16.mxu0 0
        %3320 = vmatpush2.bf16.xpose.msra.mxu0 0
        %3321 = vmatprep.subr.bf16.mxu0 0
        %3322 = vmatpush2.bf16.xpose.msra.mxu0 0
        %3323 = vmatprep.subr.bf16.mxu0 0
        %3324 = vmatpush2.bf16.xpose.msra.mxu0 0
        %3325 = vmatprep.subr.bf16.mxu0 0
        %3326 = vmatpush2.bf16.xpose.msra.mxu0 0
        %3327 = vmatprep.subr.bf16.mxu0 0
        %3328 = vmatpush2.bf16.xpose.msra.mxu0 0
        %3329 = vmatprep.subr.bf16.mxu0 0
        %3330 = vmatpush2.bf16.xpose.msra.mxu0 0
        %3331 = vmatprep.subr.bf16.mxu0 0
        %3332 = vmatpush2.bf16.xpose.msra.mxu0 0
        %3333 = vmatprep.mubr.bf16.mxu0 0
        %3334 = vmatmul.mubr.bf16.gmra.mxu0 %v3296
        %v3335 = vpop.f32.mrf.mxu0
        %v3336 = vadd.f32 %v3293, %v3335
        %v3337 = vpop.f32.mrf.mxu0
        %v3338 = vpop.f32.mrf.mxu0
        %v3339 = vadd.f32 %v3293, %v3338
        %v3340 = vpop.f32.mrf.mxu0
        %3341 = vdwg.mxu0
        %vm3342 = vcmask 130048
        %v3343 = vsel %vm3342, %v3336, -inf
        %3344 = vmax.xlane.f32.xlu0 %v3343
        %v3345 = vpop.xlane.xlu0 %3344
        %v3346 = vsel %vm3342, %v3339, -inf
        %3347 = vmax.xlane.f32.xlu0 %v3346
        %v3348 = vpop.xlane.xlu0 %3347
        %v3349 = vsub.f32 %v3336, %v3345
        %v3350 = vsub.f32 %v3339, %v3348
        %v3351 = vmul.f32 %v3349, 1.442695
        %v3352 = vpow.pop %v3351
        %v3353 = vmul.f32 %v3350, 1.442695
        %v3354 = vpow.pop %v3353
        %v3355 = vsel %vm3342, %v3352, 0.0
        %3356 = vadd.xlane.f32.xlu0 %v3355
        %v3357 = vpop.xlane.xlu0 %3356
        %v3358 = vsel %vm3342, %v3354, 0.0
        %3359 = vadd.xlane.f32.xlu0 %v3358
        %v3360 = vpop.xlane.xlu0 %3359
        %v3361 = vpack.c.bf16 %v3354, %v3352
        %v3363 = vsel %vm3342, %v3361, 0
        %3365 = vmatprep.subr.bf16.mxu0 0
        %3366 = vmatpush1.bf16.msra.mxu0 0
        %3367 = vmatprep.subr.bf16.mxu0 0
        %3368 = vmatpush1.bf16.msra.mxu0 0
        %3369 = vmatprep.subr.bf16.mxu0 0
        %3370 = vmatpush1.bf16.msra.mxu0 0
        %3371 = vmatprep.subr.bf16.mxu0 0
        %3372 = vmatpush1.bf16.msra.mxu0 0
        %3373 = vmatprep.subr.bf16.mxu0 0
        %3374 = vmatpush1.bf16.msra.mxu0 0
        %3375 = vmatprep.subr.bf16.mxu0 0
        %3376 = vmatpush1.bf16.msra.mxu0 0
        %3377 = vmatprep.subr.bf16.mxu0 0
        %3378 = vmatpush1.bf16.msra.mxu0 0
        %3379 = vmatprep.subr.bf16.mxu0 0
        %3380 = vmatpush1.bf16.msra.mxu0 %v3287
        %3381 = vmatprep.subr.bf16.mxu0 0
        %3382 = vmatpush2.bf16.msra.mxu0 0
        %3383 = vmatprep.subr.bf16.mxu0 0
        %3384 = vmatpush2.bf16.msra.mxu0 0
        %3385 = vmatprep.subr.bf16.mxu0 0
        %3386 = vmatpush2.bf16.msra.mxu0 0
        %3387 = vmatprep.subr.bf16.mxu0 0
        %3388 = vmatpush2.bf16.msra.mxu0 0
        %3389 = vmatprep.subr.bf16.mxu0 0
        %3390 = vmatpush2.bf16.msra.mxu0 0
        %3391 = vmatprep.subr.bf16.mxu0 0
        %3392 = vmatpush2.bf16.msra.mxu0 0
        %3393 = vmatprep.subr.bf16.mxu0 0
        %3394 = vmatpush2.bf16.msra.mxu0 0
        %3395 = vmatprep.subr.bf16.mxu0 0
        %3396 = vmatpush2.bf16.msra.mxu0 0
        %3397 = vmatprep.mubr.bf16.mxu0 0
        %3398 = vmatmul.mubr.bf16.gmra.mxu0 %v3363
        %v3399 = vpop.f32.mrf.mxu0
        %v3400 = vadd.f32 0.0, %v3399
        %v3401 = vpop.f32.mrf.mxu0
        %v3402 = vpop.f32.mrf.mxu0
        %v3403 = vadd.f32 0.0, %v3402
        %v3404 = vpop.f32.mrf.mxu0
        %3405 = vdwg.mxu0
        %v3406 = vrcp.pop %v3357
        %v3407 = vrcp.pop %v3360
        %v3408 = vmul.f32 %v3400, %v3406
        %v3409 = vmul.f32 %v3403, %v3407
        %3411 = vrot.lane.b32.xlu0 %v3283, 96
        %v3412 = vpop.permute.xlu0 %3411
        %3414 = vrot.lane.b32.xlu0 %v3285, 96
        %v3415 = vpop.permute.xlu0 %3414
        %v3417 = vsel %vm3294, %v3412, 0
        %v3420 = vsel %vm3294, %v3415, 0
        %3422 = vmatprep.subr.bf16.mxu0 0
        %3423 = vmatpush1.bf16.xpose.msra.mxu0 0
        %3424 = vmatprep.subr.bf16.mxu0 0
        %3425 = vmatpush1.bf16.xpose.msra.mxu0 0
        %3426 = vmatprep.subr.bf16.mxu0 0
        %3427 = vmatpush1.bf16.xpose.msra.mxu0 0
        %3428 = vmatprep.subr.bf16.mxu0 0
        %3429 = vmatpush1.bf16.xpose.msra.mxu0 0
        %3430 = vmatprep.subr.bf16.mxu0 0
        %3431 = vmatpush1.bf16.xpose.msra.mxu0 0
        %3432 = vmatprep.subr.bf16.mxu0 0
        %3433 = vmatpush1.bf16.xpose.msra.mxu0 0
        %3434 = vmatprep.subr.bf16.mxu0 0
        %3435 = vmatpush1.bf16.xpose.msra.mxu0 0
        %3436 = vmatprep.subr.bf16.mxu0 0
        %3437 = vmatpush1.bf16.xpose.msra.mxu0 %v3420
        %3438 = vmatprep.subr.bf16.mxu0 0
        %3439 = vmatpush2.bf16.xpose.msra.mxu0 0
        %3440 = vmatprep.subr.bf16.mxu0 0
        %3441 = vmatpush2.bf16.xpose.msra.mxu0 0
        %3442 = vmatprep.subr.bf16.mxu0 0
        %3443 = vmatpush2.bf16.xpose.msra.mxu0 0
        %3444 = vmatprep.subr.bf16.mxu0 0
        %3445 = vmatpush2.bf16.xpose.msra.mxu0 0
        %3446 = vmatprep.subr.bf16.mxu0 0
        %3447 = vmatpush2.bf16.xpose.msra.mxu0 0
        %3448 = vmatprep.subr.bf16.mxu0 0
        %3449 = vmatpush2.bf16.xpose.msra.mxu0 0
        %3450 = vmatprep.subr.bf16.mxu0 0
        %3451 = vmatpush2.bf16.xpose.msra.mxu0 0
        %3452 = vmatprep.subr.bf16.mxu0 0
        %3453 = vmatpush2.bf16.xpose.msra.mxu0 0
        %3454 = vmatprep.mubr.bf16.mxu0 0
        %3455 = vmatmul.mubr.bf16.gmra.mxu0 %v3417
        %v3456 = vpop.f32.mrf.mxu0
        %v3457 = vadd.f32 %v3293, %v3456
        %v3458 = vpop.f32.mrf.mxu0
        %v3459 = vpop.f32.mrf.mxu0
        %v3460 = vadd.f32 %v3293, %v3459
        %v3461 = vpop.f32.mrf.mxu0
        %3462 = vdwg.mxu0
        %v3463 = vsel %vm3342, %v3457, -inf
        %3464 = vmax.xlane.f32.xlu0 %v3463
        %v3465 = vpop.xlane.xlu0 %3464
        %v3466 = vsel %vm3342, %v3460, -inf
        %3467 = vmax.xlane.f32.xlu0 %v3466
        %v3468 = vpop.xlane.xlu0 %3467
        %v3469 = vsub.f32 %v3457, %v3465
        %v3470 = vsub.f32 %v3460, %v3468
        %v3471 = vmul.f32 %v3469, 1.442695
        %v3472 = vpow.pop %v3471
        %v3473 = vmul.f32 %v3470, 1.442695
        %v3474 = vpow.pop %v3473
        %v3475 = vsel %vm3342, %v3472, 0.0
        %3476 = vadd.xlane.f32.xlu0 %v3475
        %v3477 = vpop.xlane.xlu0 %3476
        %v3478 = vsel %vm3342, %v3474, 0.0
        %3479 = vadd.xlane.f32.xlu0 %v3478
        %v3480 = vpop.xlane.xlu0 %3479
        %v3481 = vpack.c.bf16 %v3474, %v3472
        %3483 = vrot.lane.b32.xlu0 %v3287, 96
        %v3484 = vpop.permute.xlu0 %3483
        %v3487 = vsel %vm3342, %v3481, 0
        %3489 = vmatprep.subr.bf16.mxu0 0
        %3490 = vmatpush1.bf16.msra.mxu0 0
        %3491 = vmatprep.subr.bf16.mxu0 0
        %3492 = vmatpush1.bf16.msra.mxu0 0
        %3493 = vmatprep.subr.bf16.mxu0 0
        %3494 = vmatpush1.bf16.msra.mxu0 0
        %3495 = vmatprep.subr.bf16.mxu0 0
        %3496 = vmatpush1.bf16.msra.mxu0 0
        %3497 = vmatprep.subr.bf16.mxu0 0
        %3498 = vmatpush1.bf16.msra.mxu0 0
        %3499 = vmatprep.subr.bf16.mxu0 0
        %3500 = vmatpush1.bf16.msra.mxu0 0
        %3501 = vmatprep.subr.bf16.mxu0 0
        %3502 = vmatpush1.bf16.msra.mxu0 0
        %3503 = vmatprep.subr.bf16.mxu0 0
        %3504 = vmatpush1.bf16.msra.mxu0 %v3484
        %3505 = vmatprep.subr.bf16.mxu0 0
        %3506 = vmatpush2.bf16.msra.mxu0 0
        %3507 = vmatprep.subr.bf16.mxu0 0
        %3508 = vmatpush2.bf16.msra.mxu0 0
        %3509 = vmatprep.subr.bf16.mxu0 0
        %3510 = vmatpush2.bf16.msra.mxu0 0
        %3511 = vmatprep.subr.bf16.mxu0 0
        %3512 = vmatpush2.bf16.msra.mxu0 0
        %3513 = vmatprep.subr.bf16.mxu0 0
        %3514 = vmatpush2.bf16.msra.mxu0 0
        %3515 = vmatprep.subr.bf16.mxu0 0
        %3516 = vmatpush2.bf16.msra.mxu0 0
        %3517 = vmatprep.subr.bf16.mxu0 0
        %3518 = vmatpush2.bf16.msra.mxu0 0
        %3519 = vmatprep.subr.bf16.mxu0 0
        %3520 = vmatpush2.bf16.msra.mxu0 0
        %3521 = vmatprep.mubr.bf16.mxu0 0
        %3522 = vmatmul.mubr.bf16.gmra.mxu0 %v3487
        %v3523 = vpop.f32.mrf.mxu0
        %v3524 = vadd.f32 0.0, %v3523
        %v3525 = vpop.f32.mrf.mxu0
        %v3526 = vpop.f32.mrf.mxu0
        %v3527 = vadd.f32 0.0, %v3526
        %v3528 = vpop.f32.mrf.mxu0
        %3529 = vdwg.mxu0
        %v3530 = vrcp.pop %v3477
        %v3531 = vrcp.pop %v3480
        %v3532 = vmul.f32 %v3524, %v3530
        %v3533 = vmul.f32 %v3527, %v3531
        %3534 = vrot.lane.b32.xlu0 %v3283, 64
        %v3535 = vpop.permute.xlu0 %3534
        %3536 = vrot.lane.b32.xlu0 %v3285, 64
        %v3537 = vpop.permute.xlu0 %3536
        %v3539 = vsel %vm3294, %v3535, 0
        %v3542 = vsel %vm3294, %v3537, 0
        %3544 = vmatprep.subr.bf16.mxu0 0
        %3545 = vmatpush1.bf16.xpose.msra.mxu0 0
        %3546 = vmatprep.subr.bf16.mxu0 0
        %3547 = vmatpush1.bf16.xpose.msra.mxu0 0
        %3548 = vmatprep.subr.bf16.mxu0 0
        %3549 = vmatpush1.bf16.xpose.msra.mxu0 0
        %3550 = vmatprep.subr.bf16.mxu0 0
        %3551 = vmatpush1.bf16.xpose.msra.mxu0 0
        %3552 = vmatprep.subr.bf16.mxu0 0
        %3553 = vmatpush1.bf16.xpose.msra.mxu0 0
        %3554 = vmatprep.subr.bf16.mxu0 0
        %3555 = vmatpush1.bf16.xpose.msra.mxu0 0
        %3556 = vmatprep.subr.bf16.mxu0 0
        %3557 = vmatpush1.bf16.xpose.msra.mxu0 0
        %3558 = vmatprep.subr.bf16.mxu0 0
        %3559 = vmatpush1.bf16.xpose.msra.mxu0 %v3542
        %3560 = vmatprep.subr.bf16.mxu0 0
        %3561 = vmatpush2.bf16.xpose.msra.mxu0 0
        %3562 = vmatprep.subr.bf16.mxu0 0
        %3563 = vmatpush2.bf16.xpose.msra.mxu0 0
        %3564 = vmatprep.subr.bf16.mxu0 0
        %3565 = vmatpush2.bf16.xpose.msra.mxu0 0
        %3566 = vmatprep.subr.bf16.mxu0 0
        %3567 = vmatpush2.bf16.xpose.msra.mxu0 0
        %3568 = vmatprep.subr.bf16.mxu0 0
        %3569 = vmatpush2.bf16.xpose.msra.mxu0 0
        %3570 = vmatprep.subr.bf16.mxu0 0
        %3571 = vmatpush2.bf16.xpose.msra.mxu0 0
        %3572 = vmatprep.subr.bf16.mxu0 0
        %3573 = vmatpush2.bf16.xpose.msra.mxu0 0
        %3574 = vmatprep.subr.bf16.mxu0 0
        %3575 = vmatpush2.bf16.xpose.msra.mxu0 0
        %3576 = vmatprep.mubr.bf16.mxu0 0
        %3577 = vmatmul.mubr.bf16.gmra.mxu0 %v3539
        %v3578 = vpop.f32.mrf.mxu0
        %v3579 = vadd.f32 %v3293, %v3578
        %v3580 = vpop.f32.mrf.mxu0
        %v3581 = vpop.f32.mrf.mxu0
        %v3582 = vadd.f32 %v3293, %v3581
        %v3583 = vpop.f32.mrf.mxu0
        %3584 = vdwg.mxu0
        %v3585 = vsel %vm3342, %v3579, -inf
        %3586 = vmax.xlane.f32.xlu0 %v3585
        %v3587 = vpop.xlane.xlu0 %3586
        %v3588 = vsel %vm3342, %v3582, -inf
        %3589 = vmax.xlane.f32.xlu0 %v3588
        %v3590 = vpop.xlane.xlu0 %3589
        %v3591 = vsub.f32 %v3579, %v3587
        %v3592 = vsub.f32 %v3582, %v3590
        %v3593 = vmul.f32 %v3591, 1.442695
        %v3594 = vpow.pop %v3593
        %v3595 = vmul.f32 %v3592, 1.442695
        %v3596 = vpow.pop %v3595
        %v3597 = vsel %vm3342, %v3594, 0.0
        %3598 = vadd.xlane.f32.xlu0 %v3597
        %v3599 = vpop.xlane.xlu0 %3598
        %v3600 = vsel %vm3342, %v3596, 0.0
        %3601 = vadd.xlane.f32.xlu0 %v3600
        %v3602 = vpop.xlane.xlu0 %3601
        %v3603 = vpack.c.bf16 %v3596, %v3594
        %3604 = vrot.lane.b32.xlu0 %v3287, 64
        %v3605 = vpop.permute.xlu0 %3604
        %v3608 = vsel %vm3342, %v3603, 0
        %3610 = vmatprep.subr.bf16.mxu0 0
        %3611 = vmatpush1.bf16.msra.mxu0 0
        %3612 = vmatprep.subr.bf16.mxu0 0
        %3613 = vmatpush1.bf16.msra.mxu0 0
        %3614 = vmatprep.subr.bf16.mxu0 0
        %3615 = vmatpush1.bf16.msra.mxu0 0
        %3616 = vmatprep.subr.bf16.mxu0 0
        %3617 = vmatpush1.bf16.msra.mxu0 0
        %3618 = vmatprep.subr.bf16.mxu0 0
        %3619 = vmatpush1.bf16.msra.mxu0 0
        %3620 = vmatprep.subr.bf16.mxu0 0
        %3621 = vmatpush1.bf16.msra.mxu0 0
        %3622 = vmatprep.subr.bf16.mxu0 0
        %3623 = vmatpush1.bf16.msra.mxu0 0
        %3624 = vmatprep.subr.bf16.mxu0 0
        %3625 = vmatpush1.bf16.msra.mxu0 %v3605
        %3626 = vmatprep.subr.bf16.mxu0 0
        %3627 = vmatpush2.bf16.msra.mxu0 0
        %3628 = vmatprep.subr.bf16.mxu0 0
        %3629 = vmatpush2.bf16.msra.mxu0 0
        %3630 = vmatprep.subr.bf16.mxu0 0
        %3631 = vmatpush2.bf16.msra.mxu0 0
        %3632 = vmatprep.subr.bf16.mxu0 0
        %3633 = vmatpush2.bf16.msra.mxu0 0
        %3634 = vmatprep.subr.bf16.mxu0 0
        %3635 = vmatpush2.bf16.msra.mxu0 0
        %3636 = vmatprep.subr.bf16.mxu0 0
        %3637 = vmatpush2.bf16.msra.mxu0 0
        %3638 = vmatprep.subr.bf16.mxu0 0
        %3639 = vmatpush2.bf16.msra.mxu0 0
        %3640 = vmatprep.subr.bf16.mxu0 0
        %3641 = vmatpush2.bf16.msra.mxu0 0
        %3642 = vmatprep.mubr.bf16.mxu0 0
        %3643 = vmatmul.mubr.bf16.gmra.mxu0 %v3608
        %v3644 = vpop.f32.mrf.mxu0
        %v3645 = vadd.f32 0.0, %v3644
        %v3646 = vpop.f32.mrf.mxu0
        %v3647 = vpop.f32.mrf.mxu0
        %v3648 = vadd.f32 0.0, %v3647
        %v3649 = vpop.f32.mrf.mxu0
        %3650 = vdwg.mxu0
        %v3651 = vrcp.pop %v3599
        %v3652 = vrcp.pop %v3602
        %v3653 = vmul.f32 %v3645, %v3651
        %v3654 = vmul.f32 %v3648, %v3652
        %3655 = vrot.lane.b32.xlu0 %v3283, 32
        %v3656 = vpop.permute.xlu0 %3655
        %3657 = vrot.lane.b32.xlu0 %v3285, 32
        %v3658 = vpop.permute.xlu0 %3657
        %v3660 = vsel %vm3294, %v3656, 0
        %v3663 = vsel %vm3294, %v3658, 0
        %3665 = vmatprep.subr.bf16.mxu0 0
        %3666 = vmatpush1.bf16.xpose.msra.mxu0 0
        %3667 = vmatprep.subr.bf16.mxu0 0
        %3668 = vmatpush1.bf16.xpose.msra.mxu0 0
        %3669 = vmatprep.subr.bf16.mxu0 0
        %3670 = vmatpush1.bf16.xpose.msra.mxu0 0
        %3671 = vmatprep.subr.bf16.mxu0 0
        %3672 = vmatpush1.bf16.xpose.msra.mxu0 0
        %3673 = vmatprep.subr.bf16.mxu0 0
        %3674 = vmatpush1.bf16.xpose.msra.mxu0 0
        %3675 = vmatprep.subr.bf16.mxu0 0
        %3676 = vmatpush1.bf16.xpose.msra.mxu0 0
        %3677 = vmatprep.subr.bf16.mxu0 0
        %3678 = vmatpush1.bf16.xpose.msra.mxu0 0
        %3679 = vmatprep.subr.bf16.mxu0 0
        %3680 = vmatpush1.bf16.xpose.msra.mxu0 %v3663
        %3681 = vmatprep.subr.bf16.mxu0 0
        %3682 = vmatpush2.bf16.xpose.msra.mxu0 0
        %3683 = vmatprep.subr.bf16.mxu0 0
        %3684 = vmatpush2.bf16.xpose.msra.mxu0 0
        %3685 = vmatprep.subr.bf16.mxu0 0
        %3686 = vmatpush2.bf16.xpose.msra.mxu0 0
        %3687 = vmatprep.subr.bf16.mxu0 0
        %3688 = vmatpush2.bf16.xpose.msra.mxu0 0
        %3689 = vmatprep.subr.bf16.mxu0 0
        %3690 = vmatpush2.bf16.xpose.msra.mxu0 0
        %3691 = vmatprep.subr.bf16.mxu0 0
        %3692 = vmatpush2.bf16.xpose.msra.mxu0 0
        %3693 = vmatprep.subr.bf16.mxu0 0
        %3694 = vmatpush2.bf16.xpose.msra.mxu0 0
        %3695 = vmatprep.subr.bf16.mxu0 0
        %3696 = vmatpush2.bf16.xpose.msra.mxu0 0
        %3697 = vmatprep.mubr.bf16.mxu0 0
        %3698 = vmatmul.mubr.bf16.gmra.mxu0 %v3660
        %v3699 = vpop.f32.mrf.mxu0
        %v3700 = vadd.f32 %v3293, %v3699
        %v3701 = vpop.f32.mrf.mxu0
        %v3702 = vpop.f32.mrf.mxu0
        %v3703 = vadd.f32 %v3293, %v3702
        %v3704 = vpop.f32.mrf.mxu0
        %3705 = vdwg.mxu0
        %v3706 = vsel %vm3342, %v3700, -inf
        %3707 = vmax.xlane.f32.xlu0 %v3706
        %v3708 = vpop.xlane.xlu0 %3707
        %v3709 = vsel %vm3342, %v3703, -inf
        %3710 = vmax.xlane.f32.xlu0 %v3709
        %v3711 = vpop.xlane.xlu0 %3710
        %v3712 = vsub.f32 %v3700, %v3708
        %v3713 = vsub.f32 %v3703, %v3711
        %v3714 = vmul.f32 %v3712, 1.442695
        %v3715 = vpow.pop %v3714
        %v3716 = vmul.f32 %v3713, 1.442695
        %v3717 = vpow.pop %v3716
        %v3718 = vsel %vm3342, %v3715, 0.0
        %3719 = vadd.xlane.f32.xlu0 %v3718
        %v3720 = vpop.xlane.xlu0 %3719
        %v3721 = vsel %vm3342, %v3717, 0.0
        %3722 = vadd.xlane.f32.xlu0 %v3721
        %v3723 = vpop.xlane.xlu0 %3722
        %v3724 = vpack.c.bf16 %v3717, %v3715
        %3725 = vrot.lane.b32.xlu0 %v3287, 32
        %v3726 = vpop.permute.xlu0 %3725
        %v3729 = vsel %vm3342, %v3724, 0
        %3731 = vmatprep.subr.bf16.mxu0 0
        %3732 = vmatpush1.bf16.msra.mxu0 0
        %3733 = vmatprep.subr.bf16.mxu0 0
        %3734 = vmatpush1.bf16.msra.mxu0 0
        %3735 = vmatprep.subr.bf16.mxu0 0
        %3736 = vmatpush1.bf16.msra.mxu0 0
        %3737 = vmatprep.subr.bf16.mxu0 0
        %3738 = vmatpush1.bf16.msra.mxu0 0
        %3739 = vmatprep.subr.bf16.mxu0 0
        %3740 = vmatpush1.bf16.msra.mxu0 0
        %3741 = vmatprep.subr.bf16.mxu0 0
        %3742 = vmatpush1.bf16.msra.mxu0 0
        %3743 = vmatprep.subr.bf16.mxu0 0
        %3744 = vmatpush1.bf16.msra.mxu0 0
        %3745 = vmatprep.subr.bf16.mxu0 0
        %3746 = vmatpush1.bf16.msra.mxu0 %v3726
        %3747 = vmatprep.subr.bf16.mxu0 0
        %3748 = vmatpush2.bf16.msra.mxu0 0
        %3749 = vmatprep.subr.bf16.mxu0 0
        %3750 = vmatpush2.bf16.msra.mxu0 0
        %3751 = vmatprep.subr.bf16.mxu0 0
        %3752 = vmatpush2.bf16.msra.mxu0 0
        %3753 = vmatprep.subr.bf16.mxu0 0
        %3754 = vmatpush2.bf16.msra.mxu0 0
        %3755 = vmatprep.subr.bf16.mxu0 0
        %3756 = vmatpush2.bf16.msra.mxu0 0
        %3757 = vmatprep.subr.bf16.mxu0 0
        %3758 = vmatpush2.bf16.msra.mxu0 0
        %3759 = vmatprep.subr.bf16.mxu0 0
        %3760 = vmatpush2.bf16.msra.mxu0 0
        %3761 = vmatprep.subr.bf16.mxu0 0
        %3762 = vmatpush2.bf16.msra.mxu0 0
        %3763 = vmatprep.mubr.bf16.mxu0 0
        %3764 = vmatmul.mubr.bf16.gmra.mxu0 %v3729
        %v3765 = vpop.f32.mrf.mxu0
        %v3766 = vadd.f32 0.0, %v3765
        %v3767 = vpop.f32.mrf.mxu0
        %v3768 = vpop.f32.mrf.mxu0
        %v3769 = vadd.f32 0.0, %v3768
        %v3770 = vpop.f32.mrf.mxu0
        %3771 = vdwg.mxu0
        %v3772 = vrcp.pop %v3720
        %v3773 = vrcp.pop %v3723
        %v3774 = vmul.f32 %v3766, %v3772
        %v3775 = vmul.f32 %v3769, %v3773
        %v3777 = vsel %vm3294, %v3284, 0
        %v3780 = vsel %vm3294, %v3286, 0
        %3782 = vmatprep.subr.bf16.mxu0 0
        %3783 = vmatpush1.bf16.xpose.msra.mxu0 0
        %3784 = vmatprep.subr.bf16.mxu0 0
        %3785 = vmatpush1.bf16.xpose.msra.mxu0 0
        %3786 = vmatprep.subr.bf16.mxu0 0
        %3787 = vmatpush1.bf16.xpose.msra.mxu0 0
        %3788 = vmatprep.subr.bf16.mxu0 0
        %3789 = vmatpush1.bf16.xpose.msra.mxu0 0
        %3790 = vmatprep.subr.bf16.mxu0 0
        %3791 = vmatpush1.bf16.xpose.msra.mxu0 0
        %3792 = vmatprep.subr.bf16.mxu0 0
        %3793 = vmatpush1.bf16.xpose.msra.mxu0 0
        %3794 = vmatprep.subr.bf16.mxu0 0
        %3795 = vmatpush1.bf16.xpose.msra.mxu0 0
        %3796 = vmatprep.subr.bf16.mxu0 0
        %3797 = vmatpush1.bf16.xpose.msra.mxu0 %v3780
        %3798 = vmatprep.subr.bf16.mxu0 0
        %3799 = vmatpush2.bf16.xpose.msra.mxu0 0
        %3800 = vmatprep.subr.bf16.mxu0 0
        %3801 = vmatpush2.bf16.xpose.msra.mxu0 0
        %3802 = vmatprep.subr.bf16.mxu0 0
        %3803 = vmatpush2.bf16.xpose.msra.mxu0 0
        %3804 = vmatprep.subr.bf16.mxu0 0
        %3805 = vmatpush2.bf16.xpose.msra.mxu0 0
        %3806 = vmatprep.subr.bf16.mxu0 0
        %3807 = vmatpush2.bf16.xpose.msra.mxu0 0
        %3808 = vmatprep.subr.bf16.mxu0 0
        %3809 = vmatpush2.bf16.xpose.msra.mxu0 0
        %3810 = vmatprep.subr.bf16.mxu0 0
        %3811 = vmatpush2.bf16.xpose.msra.mxu0 0
        %3812 = vmatprep.subr.bf16.mxu0 0
        %3813 = vmatpush2.bf16.xpose.msra.mxu0 0
        %3814 = vmatprep.mubr.bf16.mxu0 0
        %3815 = vmatmul.mubr.bf16.gmra.mxu0 %v3777
        %v3816 = vpop.f32.mrf.mxu0
        %v3817 = vadd.f32 %v3293, %v3816
        %v3818 = vpop.f32.mrf.mxu0
        %v3819 = vpop.f32.mrf.mxu0
        %v3820 = vadd.f32 %v3293, %v3819
        %v3821 = vpop.f32.mrf.mxu0
        %3822 = vdwg.mxu0
        %v3823 = vsel %vm3342, %v3817, -inf
        %3824 = vmax.xlane.f32.xlu0 %v3823
        %v3825 = vpop.xlane.xlu0 %3824
        %v3826 = vsel %vm3342, %v3820, -inf
        %3827 = vmax.xlane.f32.xlu0 %v3826
        %v3828 = vpop.xlane.xlu0 %3827
        %v3829 = vsub.f32 %v3817, %v3825
        %v3830 = vsub.f32 %v3820, %v3828
        %v3831 = vmul.f32 %v3829, 1.442695
        %v3832 = vpow.pop %v3831
        %v3833 = vmul.f32 %v3830, 1.442695
        %v3834 = vpow.pop %v3833
        %v3835 = vsel %vm3342, %v3832, 0.0
        %3836 = vadd.xlane.f32.xlu0 %v3835
        %v3837 = vpop.xlane.xlu0 %3836
        %v3838 = vsel %vm3342, %v3834, 0.0
        %3839 = vadd.xlane.f32.xlu0 %v3838
        %v3840 = vpop.xlane.xlu0 %3839
        %v3841 = vpack.c.bf16 %v3834, %v3832
        %v3843 = vsel %vm3342, %v3841, 0
        %3845 = vmatprep.subr.bf16.mxu0 0
        %3846 = vmatpush1.bf16.msra.mxu0 0
        %3847 = vmatprep.subr.bf16.mxu0 0
        %3848 = vmatpush1.bf16.msra.mxu0 0
        %3849 = vmatprep.subr.bf16.mxu0 0
        %3850 = vmatpush1.bf16.msra.mxu0 0
        %3851 = vmatprep.subr.bf16.mxu0 0
        %3852 = vmatpush1.bf16.msra.mxu0 0
        %3853 = vmatprep.subr.bf16.mxu0 0
        %3854 = vmatpush1.bf16.msra.mxu0 0
        %3855 = vmatprep.subr.bf16.mxu0 0
        %3856 = vmatpush1.bf16.msra.mxu0 0
        %3857 = vmatprep.subr.bf16.mxu0 0
        %3858 = vmatpush1.bf16.msra.mxu0 0
        %3859 = vmatprep.subr.bf16.mxu0 0
        %3860 = vmatpush1.bf16.msra.mxu0 %v3288
        %3861 = vmatprep.subr.bf16.mxu0 0
        %3862 = vmatpush2.bf16.msra.mxu0 0
        %3863 = vmatprep.subr.bf16.mxu0 0
        %3864 = vmatpush2.bf16.msra.mxu0 0
        %3865 = vmatprep.subr.bf16.mxu0 0
        %3866 = vmatpush2.bf16.msra.mxu0 0
        %3867 = vmatprep.subr.bf16.mxu0 0
        %3868 = vmatpush2.bf16.msra.mxu0 0
        %3869 = vmatprep.subr.bf16.mxu0 0
        %3870 = vmatpush2.bf16.msra.mxu0 0
        %3871 = vmatprep.subr.bf16.mxu0 0
        %3872 = vmatpush2.bf16.msra.mxu0 0
        %3873 = vmatprep.subr.bf16.mxu0 0
        %3874 = vmatpush2.bf16.msra.mxu0 0
        %3875 = vmatprep.subr.bf16.mxu0 0
        %3876 = vmatpush2.bf16.msra.mxu0 0
        %3877 = vmatprep.mubr.bf16.mxu0 0
        %3878 = vmatmul.mubr.bf16.gmra.mxu0 %v3843
        %v3879 = vpop.f32.mrf.mxu0
        %v3880 = vadd.f32 0.0, %v3879
        %v3881 = vpop.f32.mrf.mxu0
        %v3882 = vpop.f32.mrf.mxu0
        %v3883 = vadd.f32 0.0, %v3882
        %v3884 = vpop.f32.mrf.mxu0
        %3885 = vdwg.mxu0
        %v3886 = vrcp.pop %v3837
        %v3887 = vrcp.pop %v3840
        %v3888 = vmul.f32 %v3880, %v3886
        %v3889 = vmul.f32 %v3883, %v3887
        %3891 = vrot.lane.b32.xlu0 %v3284, 96
        %v3892 = vpop.permute.xlu0 %3891
        %3894 = vrot.lane.b32.xlu0 %v3286, 96
        %v3895 = vpop.permute.xlu0 %3894
        %v3897 = vsel %vm3294, %v3892, 0
        %v3900 = vsel %vm3294, %v3895, 0
        %3902 = vmatprep.subr.bf16.mxu0 0
        %3903 = vmatpush1.bf16.xpose.msra.mxu0 0
        %3904 = vmatprep.subr.bf16.mxu0 0
        %3905 = vmatpush1.bf16.xpose.msra.mxu0 0
        %3906 = vmatprep.subr.bf16.mxu0 0
        %3907 = vmatpush1.bf16.xpose.msra.mxu0 0
        %3908 = vmatprep.subr.bf16.mxu0 0
        %3909 = vmatpush1.bf16.xpose.msra.mxu0 0
        %3910 = vmatprep.subr.bf16.mxu0 0
        %3911 = vmatpush1.bf16.xpose.msra.mxu0 0
        %3912 = vmatprep.subr.bf16.mxu0 0
        %3913 = vmatpush1.bf16.xpose.msra.mxu0 0
        %3914 = vmatprep.subr.bf16.mxu0 0
        %3915 = vmatpush1.bf16.xpose.msra.mxu0 0
        %3916 = vmatprep.subr.bf16.mxu0 0
        %3917 = vmatpush1.bf16.xpose.msra.mxu0 %v3900
        %3918 = vmatprep.subr.bf16.mxu0 0
        %3919 = vmatpush2.bf16.xpose.msra.mxu0 0
        %3920 = vmatprep.subr.bf16.mxu0 0
        %3921 = vmatpush2.bf16.xpose.msra.mxu0 0
        %3922 = vmatprep.subr.bf16.mxu0 0
        %3923 = vmatpush2.bf16.xpose.msra.mxu0 0
        %3924 = vmatprep.subr.bf16.mxu0 0
        %3925 = vmatpush2.bf16.xpose.msra.mxu0 0
        %3926 = vmatprep.subr.bf16.mxu0 0
        %3927 = vmatpush2.bf16.xpose.msra.mxu0 0
        %3928 = vmatprep.subr.bf16.mxu0 0
        %3929 = vmatpush2.bf16.xpose.msra.mxu0 0
        %3930 = vmatprep.subr.bf16.mxu0 0
        %3931 = vmatpush2.bf16.xpose.msra.mxu0 0
        %3932 = vmatprep.subr.bf16.mxu0 0
        %3933 = vmatpush2.bf16.xpose.msra.mxu0 0
        %3934 = vmatprep.mubr.bf16.mxu0 0
        %3935 = vmatmul.mubr.bf16.gmra.mxu0 %v3897
        %v3936 = vpop.f32.mrf.mxu0
        %v3937 = vadd.f32 %v3293, %v3936
        %v3938 = vpop.f32.mrf.mxu0
        %v3939 = vpop.f32.mrf.mxu0
        %v3940 = vadd.f32 %v3293, %v3939
        %v3941 = vpop.f32.mrf.mxu0
        %3942 = vdwg.mxu0
        %v3943 = vsel %vm3342, %v3937, -inf
        %3944 = vmax.xlane.f32.xlu0 %v3943
        %v3945 = vpop.xlane.xlu0 %3944
        %v3946 = vsel %vm3342, %v3940, -inf
        %3947 = vmax.xlane.f32.xlu0 %v3946
        %v3948 = vpop.xlane.xlu0 %3947
        %v3949 = vsub.f32 %v3937, %v3945
        %v3950 = vsub.f32 %v3940, %v3948
        %v3951 = vmul.f32 %v3949, 1.442695
        %v3952 = vpow.pop %v3951
        %v3953 = vmul.f32 %v3950, 1.442695
        %v3954 = vpow.pop %v3953
        %v3955 = vsel %vm3342, %v3952, 0.0
        %3956 = vadd.xlane.f32.xlu0 %v3955
        %v3957 = vpop.xlane.xlu0 %3956
        %v3958 = vsel %vm3342, %v3954, 0.0
        %3959 = vadd.xlane.f32.xlu0 %v3958
        %v3960 = vpop.xlane.xlu0 %3959
        %v3961 = vpack.c.bf16 %v3954, %v3952
        %3963 = vrot.lane.b32.xlu0 %v3288, 96
        %v3964 = vpop.permute.xlu0 %3963
        %v3967 = vsel %vm3342, %v3961, 0
        %3969 = vmatprep.subr.bf16.mxu0 0
        %3970 = vmatpush1.bf16.msra.mxu0 0
        %3971 = vmatprep.subr.bf16.mxu0 0
        %3972 = vmatpush1.bf16.msra.mxu0 0
        %3973 = vmatprep.subr.bf16.mxu0 0
        %3974 = vmatpush1.bf16.msra.mxu0 0
        %3975 = vmatprep.subr.bf16.mxu0 0
        %3976 = vmatpush1.bf16.msra.mxu0 0
        %3977 = vmatprep.subr.bf16.mxu0 0
        %3978 = vmatpush1.bf16.msra.mxu0 0
        %3979 = vmatprep.subr.bf16.mxu0 0
        %3980 = vmatpush1.bf16.msra.mxu0 0
        %3981 = vmatprep.subr.bf16.mxu0 0
        %3982 = vmatpush1.bf16.msra.mxu0 0
        %3983 = vmatprep.subr.bf16.mxu0 0
        %3984 = vmatpush1.bf16.msra.mxu0 %v3964
        %3985 = vmatprep.subr.bf16.mxu0 0
        %3986 = vmatpush2.bf16.msra.mxu0 0
        %3987 = vmatprep.subr.bf16.mxu0 0
        %3988 = vmatpush2.bf16.msra.mxu0 0
        %3989 = vmatprep.subr.bf16.mxu0 0
        %3990 = vmatpush2.bf16.msra.mxu0 0
        %3991 = vmatprep.subr.bf16.mxu0 0
        %3992 = vmatpush2.bf16.msra.mxu0 0
        %3993 = vmatprep.subr.bf16.mxu0 0
        %3994 = vmatpush2.bf16.msra.mxu0 0
        %3995 = vmatprep.subr.bf16.mxu0 0
        %3996 = vmatpush2.bf16.msra.mxu0 0
        %3997 = vmatprep.subr.bf16.mxu0 0
        %3998 = vmatpush2.bf16.msra.mxu0 0
        %3999 = vmatprep.subr.bf16.mxu0 0
        %4000 = vmatpush2.bf16.msra.mxu0 0
        %4001 = vmatprep.mubr.bf16.mxu0 0
        %4002 = vmatmul.mubr.bf16.gmra.mxu0 %v3967
        %v4003 = vpop.f32.mrf.mxu0
        %v4004 = vadd.f32 0.0, %v4003
        %v4005 = vpop.f32.mrf.mxu0
        %v4006 = vpop.f32.mrf.mxu0
        %v4007 = vadd.f32 0.0, %v4006
        %v4008 = vpop.f32.mrf.mxu0
        %4009 = vdwg.mxu0
        %v4010 = vrcp.pop %v3957
        %v4011 = vrcp.pop %v3960
        %v4012 = vmul.f32 %v4004, %v4010
        %v4013 = vmul.f32 %v4007, %v4011
        %4014 = vrot.lane.b32.xlu0 %v3284, 64
        %v4015 = vpop.permute.xlu0 %4014
        %4016 = vrot.lane.b32.xlu0 %v3286, 64
        %v4017 = vpop.permute.xlu0 %4016
        %v4019 = vsel %vm3294, %v4015, 0
        %v4022 = vsel %vm3294, %v4017, 0
        %4024 = vmatprep.subr.bf16.mxu0 0
        %4025 = vmatpush1.bf16.xpose.msra.mxu0 0
        %4026 = vmatprep.subr.bf16.mxu0 0
        %4027 = vmatpush1.bf16.xpose.msra.mxu0 0
        %4028 = vmatprep.subr.bf16.mxu0 0
        %4029 = vmatpush1.bf16.xpose.msra.mxu0 0
        %4030 = vmatprep.subr.bf16.mxu0 0
        %4031 = vmatpush1.bf16.xpose.msra.mxu0 0
        %4032 = vmatprep.subr.bf16.mxu0 0
        %4033 = vmatpush1.bf16.xpose.msra.mxu0 0
        %4034 = vmatprep.subr.bf16.mxu0 0
        %4035 = vmatpush1.bf16.xpose.msra.mxu0 0
        %4036 = vmatprep.subr.bf16.mxu0 0
        %4037 = vmatpush1.bf16.xpose.msra.mxu0 0
        %4038 = vmatprep.subr.bf16.mxu0 0
        %4039 = vmatpush1.bf16.xpose.msra.mxu0 %v4022
        %4040 = vmatprep.subr.bf16.mxu0 0
        %4041 = vmatpush2.bf16.xpose.msra.mxu0 0
        %4042 = vmatprep.subr.bf16.mxu0 0
        %4043 = vmatpush2.bf16.xpose.msra.mxu0 0
        %4044 = vmatprep.subr.bf16.mxu0 0
        %4045 = vmatpush2.bf16.xpose.msra.mxu0 0
        %4046 = vmatprep.subr.bf16.mxu0 0
        %4047 = vmatpush2.bf16.xpose.msra.mxu0 0
        %4048 = vmatprep.subr.bf16.mxu0 0
        %4049 = vmatpush2.bf16.xpose.msra.mxu0 0
        %4050 = vmatprep.subr.bf16.mxu0 0
        %4051 = vmatpush2.bf16.xpose.msra.mxu0 0
        %4052 = vmatprep.subr.bf16.mxu0 0
        %4053 = vmatpush2.bf16.xpose.msra.mxu0 0
        %4054 = vmatprep.subr.bf16.mxu0 0
        %4055 = vmatpush2.bf16.xpose.msra.mxu0 0
        %4056 = vmatprep.mubr.bf16.mxu0 0
        %4057 = vmatmul.mubr.bf16.gmra.mxu0 %v4019
        %v4058 = vpop.f32.mrf.mxu0
        %v4059 = vadd.f32 %v3293, %v4058
        %v4060 = vpop.f32.mrf.mxu0
        %v4061 = vpop.f32.mrf.mxu0
        %v4062 = vadd.f32 %v3293, %v4061
        %v4063 = vpop.f32.mrf.mxu0
        %4064 = vdwg.mxu0
        %v4065 = vsel %vm3342, %v4059, -inf
        %4066 = vmax.xlane.f32.xlu0 %v4065
        %v4067 = vpop.xlane.xlu0 %4066
        %v4068 = vsel %vm3342, %v4062, -inf
        %4069 = vmax.xlane.f32.xlu0 %v4068
        %v4070 = vpop.xlane.xlu0 %4069
        %v4071 = vsub.f32 %v4059, %v4067
        %v4072 = vsub.f32 %v4062, %v4070
        %v4073 = vmul.f32 %v4071, 1.442695
        %v4074 = vpow.pop %v4073
        %v4075 = vmul.f32 %v4072, 1.442695
        %v4076 = vpow.pop %v4075
        %v4077 = vsel %vm3342, %v4074, 0.0
        %4078 = vadd.xlane.f32.xlu0 %v4077
        %v4079 = vpop.xlane.xlu0 %4078
        %v4080 = vsel %vm3342, %v4076, 0.0
        %4081 = vadd.xlane.f32.xlu0 %v4080
        %v4082 = vpop.xlane.xlu0 %4081
        %v4083 = vpack.c.bf16 %v4076, %v4074
        %4084 = vrot.lane.b32.xlu0 %v3288, 64
        %v4085 = vpop.permute.xlu0 %4084
        %v4088 = vsel %vm3342, %v4083, 0
        %4090 = vmatprep.subr.bf16.mxu0 0
        %4091 = vmatpush1.bf16.msra.mxu0 0
        %4092 = vmatprep.subr.bf16.mxu0 0
        %4093 = vmatpush1.bf16.msra.mxu0 0
        %4094 = vmatprep.subr.bf16.mxu0 0
        %4095 = vmatpush1.bf16.msra.mxu0 0
        %4096 = vmatprep.subr.bf16.mxu0 0
        %4097 = vmatpush1.bf16.msra.mxu0 0
        %4098 = vmatprep.subr.bf16.mxu0 0
        %4099 = vmatpush1.bf16.msra.mxu0 0
        %4100 = vmatprep.subr.bf16.mxu0 0
        %4101 = vmatpush1.bf16.msra.mxu0 0
        %4102 = vmatprep.subr.bf16.mxu0 0
        %4103 = vmatpush1.bf16.msra.mxu0 0
        %4104 = vmatprep.subr.bf16.mxu0 0
        %4105 = vmatpush1.bf16.msra.mxu0 %v4085
        %4106 = vmatprep.subr.bf16.mxu0 0
        %4107 = vmatpush2.bf16.msra.mxu0 0
        %4108 = vmatprep.subr.bf16.mxu0 0
        %4109 = vmatpush2.bf16.msra.mxu0 0
        %4110 = vmatprep.subr.bf16.mxu0 0
        %4111 = vmatpush2.bf16.msra.mxu0 0
        %4112 = vmatprep.subr.bf16.mxu0 0
        %4113 = vmatpush2.bf16.msra.mxu0 0
        %4114 = vmatprep.subr.bf16.mxu0 0
        %4115 = vmatpush2.bf16.msra.mxu0 0
        %4116 = vmatprep.subr.bf16.mxu0 0
        %4117 = vmatpush2.bf16.msra.mxu0 0
        %4118 = vmatprep.subr.bf16.mxu0 0
        %4119 = vmatpush2.bf16.msra.mxu0 0
        %4120 = vmatprep.subr.bf16.mxu0 0
        %4121 = vmatpush2.bf16.msra.mxu0 0
        %4122 = vmatprep.mubr.bf16.mxu0 0
        %4123 = vmatmul.mubr.bf16.gmra.mxu0 %v4088
        %v4124 = vpop.f32.mrf.mxu0
        %v4125 = vadd.f32 0.0, %v4124
        %v4126 = vpop.f32.mrf.mxu0
        %v4127 = vpop.f32.mrf.mxu0
        %v4128 = vadd.f32 0.0, %v4127
        %v4129 = vpop.f32.mrf.mxu0
        %4130 = vdwg.mxu0
        %v4131 = vrcp.pop %v4079
        %v4132 = vrcp.pop %v4082
        %v4133 = vmul.f32 %v4125, %v4131
        %v4134 = vmul.f32 %v4128, %v4132
        %4135 = vrot.lane.b32.xlu0 %v3284, 32
        %v4136 = vpop.permute.xlu0 %4135
        %4137 = vrot.lane.b32.xlu0 %v3286, 32
        %v4138 = vpop.permute.xlu0 %4137
        %v4140 = vsel %vm3294, %v4136, 0
        %v4143 = vsel %vm3294, %v4138, 0
        %4145 = vmatprep.subr.bf16.mxu0 0
        %4146 = vmatpush1.bf16.xpose.msra.mxu0 0
        %4147 = vmatprep.subr.bf16.mxu0 0
        %4148 = vmatpush1.bf16.xpose.msra.mxu0 0
        %4149 = vmatprep.subr.bf16.mxu0 0
        %4150 = vmatpush1.bf16.xpose.msra.mxu0 0
        %4151 = vmatprep.subr.bf16.mxu0 0
        %4152 = vmatpush1.bf16.xpose.msra.mxu0 0
        %4153 = vmatprep.subr.bf16.mxu0 0
        %4154 = vmatpush1.bf16.xpose.msra.mxu0 0
        %4155 = vmatprep.subr.bf16.mxu0 0
        %4156 = vmatpush1.bf16.xpose.msra.mxu0 0
        %4157 = vmatprep.subr.bf16.mxu0 0
        %4158 = vmatpush1.bf16.xpose.msra.mxu0 0
        %4159 = vmatprep.subr.bf16.mxu0 0
        %4160 = vmatpush1.bf16.xpose.msra.mxu0 %v4143
        %4161 = vmatprep.subr.bf16.mxu0 0
        %4162 = vmatpush2.bf16.xpose.msra.mxu0 0
        %4163 = vmatprep.subr.bf16.mxu0 0
        %4164 = vmatpush2.bf16.xpose.msra.mxu0 0
        %4165 = vmatprep.subr.bf16.mxu0 0
        %4166 = vmatpush2.bf16.xpose.msra.mxu0 0
        %4167 = vmatprep.subr.bf16.mxu0 0
        %4168 = vmatpush2.bf16.xpose.msra.mxu0 0
        %4169 = vmatprep.subr.bf16.mxu0 0
        %4170 = vmatpush2.bf16.xpose.msra.mxu0 0
        %4171 = vmatprep.subr.bf16.mxu0 0
        %4172 = vmatpush2.bf16.xpose.msra.mxu0 0
        %4173 = vmatprep.subr.bf16.mxu0 0
        %4174 = vmatpush2.bf16.xpose.msra.mxu0 0
        %4175 = vmatprep.subr.bf16.mxu0 0
        %4176 = vmatpush2.bf16.xpose.msra.mxu0 0
        %4177 = vmatprep.mubr.bf16.mxu0 0
        %4178 = vmatmul.mubr.bf16.gmra.mxu0 %v4140
        %v4179 = vpop.f32.mrf.mxu0
        %v4180 = vadd.f32 %v3293, %v4179
        %v4181 = vpop.f32.mrf.mxu0
        %v4182 = vpop.f32.mrf.mxu0
        %v4183 = vadd.f32 %v3293, %v4182
        %v4184 = vpop.f32.mrf.mxu0
        %4185 = vdwg.mxu0
        %v4186 = vsel %vm3342, %v4180, -inf
        %4187 = vmax.xlane.f32.xlu0 %v4186
        %v4188 = vpop.xlane.xlu0 %4187
        %v4189 = vsel %vm3342, %v4183, -inf
        %4190 = vmax.xlane.f32.xlu0 %v4189
        %v4191 = vpop.xlane.xlu0 %4190
        %v4192 = vsub.f32 %v4180, %v4188
        %v4193 = vsub.f32 %v4183, %v4191
        %v4194 = vmul.f32 %v4192, 1.442695
        %v4195 = vpow.pop %v4194
        %v4196 = vmul.f32 %v4193, 1.442695
        %v4197 = vpow.pop %v4196
        %v4198 = vsel %vm3342, %v4195, 0.0
        %4199 = vadd.xlane.f32.xlu0 %v4198
        %v4200 = vpop.xlane.xlu0 %4199
        %v4201 = vsel %vm3342, %v4197, 0.0
        %4202 = vadd.xlane.f32.xlu0 %v4201
        %v4203 = vpop.xlane.xlu0 %4202
        %v4204 = vpack.c.bf16 %v4197, %v4195
        %4205 = vrot.lane.b32.xlu0 %v3288, 32
        %v4206 = vpop.permute.xlu0 %4205
        %v4209 = vsel %vm3342, %v4204, 0
        %4211 = vmatprep.subr.bf16.mxu0 0
        %4212 = vmatpush1.bf16.msra.mxu0 0
        %4213 = vmatprep.subr.bf16.mxu0 0
        %4214 = vmatpush1.bf16.msra.mxu0 0
        %4215 = vmatprep.subr.bf16.mxu0 0
        %4216 = vmatpush1.bf16.msra.mxu0 0
        %4217 = vmatprep.subr.bf16.mxu0 0
        %4218 = vmatpush1.bf16.msra.mxu0 0
        %4219 = vmatprep.subr.bf16.mxu0 0
        %4220 = vmatpush1.bf16.msra.mxu0 0
        %4221 = vmatprep.subr.bf16.mxu0 0
        %4222 = vmatpush1.bf16.msra.mxu0 0
        %4223 = vmatprep.subr.bf16.mxu0 0
        %4224 = vmatpush1.bf16.msra.mxu0 0
        %4225 = vmatprep.subr.bf16.mxu0 0
        %4226 = vmatpush1.bf16.msra.mxu0 %v4206
        %4227 = vmatprep.subr.bf16.mxu0 0
        %4228 = vmatpush2.bf16.msra.mxu0 0
        %4229 = vmatprep.subr.bf16.mxu0 0
        %4230 = vmatpush2.bf16.msra.mxu0 0
        %4231 = vmatprep.subr.bf16.mxu0 0
        %4232 = vmatpush2.bf16.msra.mxu0 0
        %4233 = vmatprep.subr.bf16.mxu0 0
        %4234 = vmatpush2.bf16.msra.mxu0 0
        %4235 = vmatprep.subr.bf16.mxu0 0
        %4236 = vmatpush2.bf16.msra.mxu0 0
        %4237 = vmatprep.subr.bf16.mxu0 0
        %4238 = vmatpush2.bf16.msra.mxu0 0
        %4239 = vmatprep.subr.bf16.mxu0 0
        %4240 = vmatpush2.bf16.msra.mxu0 0
        %4241 = vmatprep.subr.bf16.mxu0 0
        %4242 = vmatpush2.bf16.msra.mxu0 0
        %4243 = vmatprep.mubr.bf16.mxu0 0
        %4244 = vmatmul.mubr.bf16.gmra.mxu0 %v4209
        %v4245 = vpop.f32.mrf.mxu0
        %v4246 = vadd.f32 0.0, %v4245
        %v4247 = vpop.f32.mrf.mxu0
        %v4248 = vpop.f32.mrf.mxu0
        %v4249 = vadd.f32 0.0, %v4248
        %v4250 = vpop.f32.mrf.mxu0
        %4251 = vdwg.mxu0
        %v4252 = vrcp.pop %v4200
        %v4253 = vrcp.pop %v4203
        %v4254 = vmul.f32 %v4246, %v4252
        %v4255 = vmul.f32 %v4249, %v4253
        %4258 = vrot.lane.b32.xlu0 %v3532, 32
        %v4259 = vpop.permute.xlu0 %4258
        %4260 = vrot.lane.b32.xlu0 %v3533, 32
        %v4261 = vpop.permute.xlu0 %4260
        %4266 = vrot.lane.b32.xlu0 %v3653, 64
        %v4267 = vpop.permute.xlu0 %4266
        %4268 = vrot.lane.b32.xlu0 %v3654, 64
        %v4269 = vpop.permute.xlu0 %4268
        %4274 = vrot.lane.b32.xlu0 %v3774, 96
        %v4275 = vpop.permute.xlu0 %4274
        %4276 = vrot.lane.b32.xlu0 %v3775, 96
        %v4277 = vpop.permute.xlu0 %4276
        %4282 = vrot.lane.b32.xlu0 %v4012, 32
        %v4283 = vpop.permute.xlu0 %4282
        %4284 = vrot.lane.b32.xlu0 %v4013, 32
        %v4285 = vpop.permute.xlu0 %4284
        %4290 = vrot.lane.b32.xlu0 %v4133, 64
        %v4291 = vpop.permute.xlu0 %4290
        %4292 = vrot.lane.b32.xlu0 %v4134, 64
        %v4293 = vpop.permute.xlu0 %4292
        %4298 = vrot.lane.b32.xlu0 %v4254, 96
        %v4299 = vpop.permute.xlu0 %4298
        %4300 = vrot.lane.b32.xlu0 %v4255, 96
        %v4301 = vpop.permute.xlu0 %4300
        %v4304 = vsel %vm3294, %v3408, %v4259
        %v4305 = vsel %vm3294, %v3409, %v4261
        %vm4306 = vcmask 523264
        %v4307 = vsel %vm4306, %v4304, %v4267
        %v4308 = vsel %vm4306, %v4305, %v4269
        %vm4309 = vcmask 785408
        %v4310 = vsel %vm4309, %v4307, %v4275
        %v4311 = vsel %vm4309, %v4308, %v4277
        %v4312 = vsel %vm3294, %v3888, %v4283
        %v4313 = vsel %vm3294, %v3889, %v4285
        %v4314 = vsel %vm4306, %v4312, %v4291
        %v4315 = vsel %vm4306, %v4313, %v4293
        %v4316 = vsel %vm4309, %v4314, %v4299
        %v4317 = vsel %vm4309, %v4315, %v4301
        %v4318 = vpack.c.bf16 %v4311, %v4310
        %v4319 = vpack.c.bf16 %v4317, %v4316
        %v4320 = vld [vmem:[#allocation10] sm:$0xff]
        %v4321 = vld [vmem:[#allocation10 + $0x8] sm:$0xff]
        %v4322 = vld [vmem:[#allocation10 + $0x10] sm:$0xff]
        %v4323 = vld [vmem:[#allocation10 + $0x18] sm:$0xff]
        %v4324 = vld [vmem:[#allocation10 + $0x20] sm:$0xff]
        %v4325 = vld [vmem:[#allocation10 + $0x28] sm:$0xff]
        %v4326 = vld [vmem:[#allocation10 + $0x30] sm:$0xff]
        %v4327 = vld [vmem:[#allocation10 + $0x38] sm:$0xff]
        %v4328 = vld [vmem:[#allocation10 + $0x40] sm:$0xff]
        %v4329 = vld [vmem:[#allocation10 + $0x48] sm:$0xff]
        %v4330 = vld [vmem:[#allocation10 + $0x50] sm:$0xff]
        %v4331 = vld [vmem:[#allocation10 + $0x58] sm:$0xff]
        %v4332 = vld [vmem:[#allocation10 + $0x60] sm:$0xff]
        %v4333 = vld [vmem:[#allocation10 + $0x68] sm:$0xff]
        %v4334 = vld [vmem:[#allocation10 + $0x70] sm:$0xff]
        %v4335 = vld [vmem:[#allocation10 + $0x78] sm:$0xff]
        %v4336 = vld [vmem:[#allocation10 + $0x80] sm:$0xff]
        %v4337 = vld [vmem:[#allocation10 + $0x88] sm:$0xff]
        %v4338 = vld [vmem:[#allocation10 + $0x90] sm:$0xff]
        %v4339 = vld [vmem:[#allocation10 + $0x98] sm:$0xff]
        %v4340 = vld [vmem:[#allocation10 + $0xa0] sm:$0xff]
        %v4341 = vld [vmem:[#allocation10 + $0xa8] sm:$0xff]
        %v4342 = vld [vmem:[#allocation10 + $0xb0] sm:$0xff]
        %v4343 = vld [vmem:[#allocation10 + $0xb8] sm:$0xff]
        %v4344 = vld [vmem:[#allocation10 + $0xc0] sm:$0xff]
        %v4345 = vld [vmem:[#allocation10 + $0xc8] sm:$0xff]
        %v4346 = vld [vmem:[#allocation10 + $0xd0] sm:$0xff]
        %v4347 = vld [vmem:[#allocation10 + $0xd8] sm:$0xff]
        %v4348 = vld [vmem:[#allocation10 + $0xe0] sm:$0xff]
        %v4349 = vld [vmem:[#allocation10 + $0xe8] sm:$0xff]
        %v4350 = vld [vmem:[#allocation10 + $0xf0] sm:$0xff]
        %v4351 = vld [vmem:[#allocation10 + $0xf8] sm:$0xff]
        %v4352 = vld [vmem:[#allocation10 + $0x100] sm:$0xff]
        %v4353 = vld [vmem:[#allocation10 + $0x108] sm:$0xff]
        %v4354 = vld [vmem:[#allocation10 + $0x110] sm:$0xff]
        %v4355 = vld [vmem:[#allocation10 + $0x118] sm:$0xff]
        %v4356 = vld [vmem:[#allocation10 + $0x120] sm:$0xff]
        %v4357 = vld [vmem:[#allocation10 + $0x128] sm:$0xff]
        %v4358 = vld [vmem:[#allocation10 + $0x130] sm:$0xff]
        %v4359 = vld [vmem:[#allocation10 + $0x138] sm:$0xff]
        %v4360 = vld [vmem:[#allocation10 + $0x140] sm:$0xff]
        %v4361 = vld [vmem:[#allocation10 + $0x148] sm:$0xff]
        %v4362 = vld [vmem:[#allocation10 + $0x150] sm:$0xff]
        %v4363 = vld [vmem:[#allocation10 + $0x158] sm:$0xff]
        %v4364 = vld [vmem:[#allocation10 + $0x160] sm:$0xff]
        %v4365 = vld [vmem:[#allocation10 + $0x168] sm:$0xff]
        %v4366 = vld [vmem:[#allocation10 + $0x170] sm:$0xff]
        %v4367 = vld [vmem:[#allocation10 + $0x178] sm:$0xff]
        %v4368 = vld [vmem:[#allocation10 + $0x180] sm:$0xff]
        %v4369 = vld [vmem:[#allocation10 + $0x188] sm:$0xff]
        %v4370 = vld [vmem:[#allocation10 + $0x190] sm:$0xff]
        %v4371 = vld [vmem:[#allocation10 + $0x198] sm:$0xff]
        %v4372 = vld [vmem:[#allocation10 + $0x1a0] sm:$0xff]
        %v4373 = vld [vmem:[#allocation10 + $0x1a8] sm:$0xff]
        %v4374 = vld [vmem:[#allocation10 + $0x1b0] sm:$0xff]
        %v4375 = vld [vmem:[#allocation10 + $0x1b8] sm:$0xff]
        %v4376 = vld [vmem:[#allocation10 + $0x1c0] sm:$0xff]
        %v4377 = vld [vmem:[#allocation10 + $0x1c8] sm:$0xff]
        %v4378 = vld [vmem:[#allocation10 + $0x1d0] sm:$0xff]
        %v4379 = vld [vmem:[#allocation10 + $0x1d8] sm:$0xff]
        %v4380 = vld [vmem:[#allocation10 + $0x1e0] sm:$0xff]
        %v4381 = vld [vmem:[#allocation10 + $0x1e8] sm:$0xff]
        %v4382 = vld [vmem:[#allocation10 + $0x1f0] sm:$0xff]
        %v4383 = vld [vmem:[#allocation10 + $0x1f8] sm:$0xff]
        %v4384 = vld [vmem:[#allocation10 + $0x200] sm:$0xff]
        %v4385 = vld [vmem:[#allocation10 + $0x208] sm:$0xff]
        %v4386 = vld [vmem:[#allocation10 + $0x210] sm:$0xff]
        %v4387 = vld [vmem:[#allocation10 + $0x218] sm:$0xff]
        %v4388 = vld [vmem:[#allocation10 + $0x220] sm:$0xff]
        %v4389 = vld [vmem:[#allocation10 + $0x228] sm:$0xff]
        %v4390 = vld [vmem:[#allocation10 + $0x230] sm:$0xff]
        %v4391 = vld [vmem:[#allocation10 + $0x238] sm:$0xff]
        %v4392 = vld [vmem:[#allocation10 + $0x240] sm:$0xff]
        %v4393 = vld [vmem:[#allocation10 + $0x248] sm:$0xff]
        %v4394 = vld [vmem:[#allocation10 + $0x250] sm:$0xff]
        %v4395 = vld [vmem:[#allocation10 + $0x258] sm:$0xff]
        %v4396 = vld [vmem:[#allocation10 + $0x260] sm:$0xff]
        %v4397 = vld [vmem:[#allocation10 + $0x268] sm:$0xff]
        %v4398 = vld [vmem:[#allocation10 + $0x270] sm:$0xff]
        %v4399 = vld [vmem:[#allocation10 + $0x278] sm:$0xff]
        %v4400 = vld [vmem:[#allocation10 + $0x280] sm:$0xff]
        %v4401 = vld [vmem:[#allocation10 + $0x288] sm:$0xff]
        %v4402 = vld [vmem:[#allocation10 + $0x290] sm:$0xff]
        %v4403 = vld [vmem:[#allocation10 + $0x298] sm:$0xff]
        %v4404 = vld [vmem:[#allocation10 + $0x2a0] sm:$0xff]
        %v4405 = vld [vmem:[#allocation10 + $0x2a8] sm:$0xff]
        %v4406 = vld [vmem:[#allocation10 + $0x2b0] sm:$0xff]
        %v4407 = vld [vmem:[#allocation10 + $0x2b8] sm:$0xff]
        %v4408 = vld [vmem:[#allocation10 + $0x2c0] sm:$0xff]
        %v4409 = vld [vmem:[#allocation10 + $0x2c8] sm:$0xff]
        %v4410 = vld [vmem:[#allocation10 + $0x2d0] sm:$0xff]
        %v4411 = vld [vmem:[#allocation10 + $0x2d8] sm:$0xff]
        %v4412 = vld [vmem:[#allocation10 + $0x2e0] sm:$0xff]
        %v4413 = vld [vmem:[#allocation10 + $0x2e8] sm:$0xff]
        %v4414 = vld [vmem:[#allocation10 + $0x2f0] sm:$0xff]
        %v4415 = vld [vmem:[#allocation10 + $0x2f8] sm:$0xff]
        %v4416 = vld [vmem:[#allocation10 + $0x300] sm:$0xff]
        %v4417 = vld [vmem:[#allocation10 + $0x308] sm:$0xff]
        %v4418 = vld [vmem:[#allocation10 + $0x310] sm:$0xff]
        %v4419 = vld [vmem:[#allocation10 + $0x318] sm:$0xff]
        %v4420 = vld [vmem:[#allocation10 + $0x320] sm:$0xff]
        %v4421 = vld [vmem:[#allocation10 + $0x328] sm:$0xff]
        %v4422 = vld [vmem:[#allocation10 + $0x330] sm:$0xff]
        %v4423 = vld [vmem:[#allocation10 + $0x338] sm:$0xff]
        %v4424 = vld [vmem:[#allocation10 + $0x340] sm:$0xff]
        %v4425 = vld [vmem:[#allocation10 + $0x348] sm:$0xff]
        %v4426 = vld [vmem:[#allocation10 + $0x350] sm:$0xff]
        %v4427 = vld [vmem:[#allocation10 + $0x358] sm:$0xff]
        %v4428 = vld [vmem:[#allocation10 + $0x360] sm:$0xff]
        %v4429 = vld [vmem:[#allocation10 + $0x368] sm:$0xff]
        %v4430 = vld [vmem:[#allocation10 + $0x370] sm:$0xff]
        %v4431 = vld [vmem:[#allocation10 + $0x378] sm:$0xff]
        %v4432 = vld [vmem:[#allocation10 + $0x380] sm:$0xff]
        %v4433 = vld [vmem:[#allocation10 + $0x388] sm:$0xff]
        %v4434 = vld [vmem:[#allocation10 + $0x390] sm:$0xff]
        %v4435 = vld [vmem:[#allocation10 + $0x398] sm:$0xff]
        %v4436 = vld [vmem:[#allocation10 + $0x3a0] sm:$0xff]
        %v4437 = vld [vmem:[#allocation10 + $0x3a8] sm:$0xff]
        %v4438 = vld [vmem:[#allocation10 + $0x3b0] sm:$0xff]
        %v4439 = vld [vmem:[#allocation10 + $0x3b8] sm:$0xff]
        %v4440 = vld [vmem:[#allocation10 + $0x3c0] sm:$0xff]
        %v4441 = vld [vmem:[#allocation10 + $0x3c8] sm:$0xff]
        %v4442 = vld [vmem:[#allocation10 + $0x3d0] sm:$0xff]
        %v4443 = vld [vmem:[#allocation10 + $0x3d8] sm:$0xff]
        %v4444 = vld [vmem:[#allocation10 + $0x3e0] sm:$0xff]
        %v4445 = vld [vmem:[#allocation10 + $0x3e8] sm:$0xff]
        %v4446 = vld [vmem:[#allocation10 + $0x3f0] sm:$0xff]
        %v4447 = vld [vmem:[#allocation10 + $0x3f8] sm:$0xff]
        %v4448 = vld [vmem:[#allocation12] sm:$0xff]
        %v4450 = vlaneseq
        %v4451 = vshrl.u32 %v4450, 7
        %v4452 = vsub.s32 0, %v4451
        %v4453 = vrot.slane %v4448, %v4452
        %v4454 = vlaneseq
        %v4455 = vshrl.u32 %v4454, 7
        %v4456 = vsub.s32 1, %v4455
        %v4457 = vrot.slane %v4448, %v4456
        %v4458 = vlaneseq
        %v4459 = vshrl.u32 %v4458, 7
        %v4460 = vsub.s32 2, %v4459
        %v4461 = vrot.slane %v4448, %v4460
        %v4462 = vlaneseq
        %v4463 = vshrl.u32 %v4462, 7
        %v4464 = vsub.s32 3, %v4463
        %v4465 = vrot.slane %v4448, %v4464
        %v4466 = vlaneseq
        %v4467 = vshrl.u32 %v4466, 7
        %v4468 = vsub.s32 4, %v4467
        %v4469 = vrot.slane %v4448, %v4468
        %v4470 = vlaneseq
        %v4471 = vshrl.u32 %v4470, 7
        %v4472 = vsub.s32 5, %v4471
        %v4473 = vrot.slane %v4448, %v4472
        %v4474 = vlaneseq
        %v4475 = vshrl.u32 %v4474, 7
        %v4476 = vsub.s32 6, %v4475
        %v4477 = vrot.slane %v4448, %v4476
        %v4478 = vlaneseq
        %v4479 = vshrl.u32 %v4478, 7
        %v4480 = vsub.s32 7, %v4479
        %v4481 = vrot.slane %v4448, %v4480
        %v4618 = vunpack.c.l.b16 %v4320
        %v4619 = vunpack.c.h.b16 %v4320
        %v4620 = vunpack.c.l.b16 %v4321
        %v4621 = vunpack.c.h.b16 %v4321
        %v4622 = vunpack.c.l.b16 %v4322
        %v4623 = vunpack.c.h.b16 %v4322
        %v4624 = vunpack.c.l.b16 %v4323
        %v4625 = vunpack.c.h.b16 %v4323
        %v4626 = vunpack.c.l.b16 %v4324
        %v4627 = vunpack.c.h.b16 %v4324
        %v4628 = vunpack.c.l.b16 %v4325
        %v4629 = vunpack.c.h.b16 %v4325
        %v4630 = vunpack.c.l.b16 %v4326
        %v4631 = vunpack.c.h.b16 %v4326
        %v4632 = vunpack.c.l.b16 %v4327
        %v4633 = vunpack.c.h.b16 %v4327
        %v4634 = vunpack.c.l.b16 %v4328
        %v4635 = vunpack.c.h.b16 %v4328
        %v4636 = vunpack.c.l.b16 %v4329
        %v4637 = vunpack.c.h.b16 %v4329
        %v4638 = vunpack.c.l.b16 %v4330
        %v4639 = vunpack.c.h.b16 %v4330
        %v4640 = vunpack.c.l.b16 %v4331
        %v4641 = vunpack.c.h.b16 %v4331
        %v4642 = vunpack.c.l.b16 %v4332
        %v4643 = vunpack.c.h.b16 %v4332
        %v4644 = vunpack.c.l.b16 %v4333
        %v4645 = vunpack.c.h.b16 %v4333
        %v4646 = vunpack.c.l.b16 %v4334
        %v4647 = vunpack.c.h.b16 %v4334
        %v4648 = vunpack.c.l.b16 %v4335
        %v4649 = vunpack.c.h.b16 %v4335
        %v4650 = vunpack.c.l.b16 %v4336
        %v4651 = vunpack.c.h.b16 %v4336
        %v4652 = vunpack.c.l.b16 %v4337
        %v4653 = vunpack.c.h.b16 %v4337
        %v4654 = vunpack.c.l.b16 %v4338
        %v4655 = vunpack.c.h.b16 %v4338
        %v4656 = vunpack.c.l.b16 %v4339
        %v4657 = vunpack.c.h.b16 %v4339
        %v4658 = vunpack.c.l.b16 %v4340
        %v4659 = vunpack.c.h.b16 %v4340
        %v4660 = vunpack.c.l.b16 %v4341
        %v4661 = vunpack.c.h.b16 %v4341
        %v4662 = vunpack.c.l.b16 %v4342
        %v4663 = vunpack.c.h.b16 %v4342
        %v4664 = vunpack.c.l.b16 %v4343
        %v4665 = vunpack.c.h.b16 %v4343
        %v4666 = vunpack.c.l.b16 %v4344
        %v4667 = vunpack.c.h.b16 %v4344
        %v4668 = vunpack.c.l.b16 %v4345
        %v4669 = vunpack.c.h.b16 %v4345
        %v4670 = vunpack.c.l.b16 %v4346
        %v4671 = vunpack.c.h.b16 %v4346
        %v4672 = vunpack.c.l.b16 %v4347
        %v4673 = vunpack.c.h.b16 %v4347
        %v4674 = vunpack.c.l.b16 %v4348
        %v4675 = vunpack.c.h.b16 %v4348
        %v4676 = vunpack.c.l.b16 %v4349
        %v4677 = vunpack.c.h.b16 %v4349
        %v4678 = vunpack.c.l.b16 %v4350
        %v4679 = vunpack.c.h.b16 %v4350
        %v4680 = vunpack.c.l.b16 %v4351
        %v4681 = vunpack.c.h.b16 %v4351
        %v4682 = vunpack.c.l.b16 %v4352
        %v4683 = vunpack.c.h.b16 %v4352
        %v4684 = vunpack.c.l.b16 %v4353
        %v4685 = vunpack.c.h.b16 %v4353
        %v4686 = vunpack.c.l.b16 %v4354
        %v4687 = vunpack.c.h.b16 %v4354
        %v4688 = vunpack.c.l.b16 %v4355
        %v4689 = vunpack.c.h.b16 %v4355
        %v4690 = vunpack.c.l.b16 %v4356
        %v4691 = vunpack.c.h.b16 %v4356
        %v4692 = vunpack.c.l.b16 %v4357
        %v4693 = vunpack.c.h.b16 %v4357
        %v4694 = vunpack.c.l.b16 %v4358
        %v4695 = vunpack.c.h.b16 %v4358
        %v4696 = vunpack.c.l.b16 %v4359
        %v4697 = vunpack.c.h.b16 %v4359
        %v4698 = vunpack.c.l.b16 %v4360
        %v4699 = vunpack.c.h.b16 %v4360
        %v4700 = vunpack.c.l.b16 %v4361
        %v4701 = vunpack.c.h.b16 %v4361
        %v4702 = vunpack.c.l.b16 %v4362
        %v4703 = vunpack.c.h.b16 %v4362
        %v4704 = vunpack.c.l.b16 %v4363
        %v4705 = vunpack.c.h.b16 %v4363
        %v4706 = vunpack.c.l.b16 %v4364
        %v4707 = vunpack.c.h.b16 %v4364
        %v4708 = vunpack.c.l.b16 %v4365
        %v4709 = vunpack.c.h.b16 %v4365
        %v4710 = vunpack.c.l.b16 %v4366
        %v4711 = vunpack.c.h.b16 %v4366
        %v4712 = vunpack.c.l.b16 %v4367
        %v4713 = vunpack.c.h.b16 %v4367
        %v4714 = vunpack.c.l.b16 %v4368
        %v4715 = vunpack.c.h.b16 %v4368
        %v4716 = vunpack.c.l.b16 %v4369
        %v4717 = vunpack.c.h.b16 %v4369
        %v4718 = vunpack.c.l.b16 %v4370
        %v4719 = vunpack.c.h.b16 %v4370
        %v4720 = vunpack.c.l.b16 %v4371
        %v4721 = vunpack.c.h.b16 %v4371
        %v4722 = vunpack.c.l.b16 %v4372
        %v4723 = vunpack.c.h.b16 %v4372
        %v4724 = vunpack.c.l.b16 %v4373
        %v4725 = vunpack.c.h.b16 %v4373
        %v4726 = vunpack.c.l.b16 %v4374
        %v4727 = vunpack.c.h.b16 %v4374
        %v4728 = vunpack.c.l.b16 %v4375
        %v4729 = vunpack.c.h.b16 %v4375
        %v4730 = vunpack.c.l.b16 %v4376
        %v4731 = vunpack.c.h.b16 %v4376
        %v4732 = vunpack.c.l.b16 %v4377
        %v4733 = vunpack.c.h.b16 %v4377
        %v4734 = vunpack.c.l.b16 %v4378
        %v4735 = vunpack.c.h.b16 %v4378
        %v4736 = vunpack.c.l.b16 %v4379
        %v4737 = vunpack.c.h.b16 %v4379
        %v4738 = vunpack.c.l.b16 %v4380
        %v4739 = vunpack.c.h.b16 %v4380
        %v4740 = vunpack.c.l.b16 %v4381
        %v4741 = vunpack.c.h.b16 %v4381
        %v4742 = vunpack.c.l.b16 %v4382
        %v4743 = vunpack.c.h.b16 %v4382
        %v4744 = vunpack.c.l.b16 %v4383
        %v4745 = vunpack.c.h.b16 %v4383
        %v4746 = vunpack.c.l.b16 %v4384
        %v4747 = vunpack.c.h.b16 %v4384
        %v4748 = vunpack.c.l.b16 %v4385
        %v4749 = vunpack.c.h.b16 %v4385
        %v4750 = vunpack.c.l.b16 %v4386
        %v4751 = vunpack.c.h.b16 %v4386
        %v4752 = vunpack.c.l.b16 %v4387
        %v4753 = vunpack.c.h.b16 %v4387
        %v4754 = vunpack.c.l.b16 %v4388
        %v4755 = vunpack.c.h.b16 %v4388
        %v4756 = vunpack.c.l.b16 %v4389
        %v4757 = vunpack.c.h.b16 %v4389
        %v4758 = vunpack.c.l.b16 %v4390
        %v4759 = vunpack.c.h.b16 %v4390
        %v4760 = vunpack.c.l.b16 %v4391
        %v4761 = vunpack.c.h.b16 %v4391
        %v4762 = vunpack.c.l.b16 %v4392
        %v4763 = vunpack.c.h.b16 %v4392
        %v4764 = vunpack.c.l.b16 %v4393
        %v4765 = vunpack.c.h.b16 %v4393
        %v4766 = vunpack.c.l.b16 %v4394
        %v4767 = vunpack.c.h.b16 %v4394
        %v4768 = vunpack.c.l.b16 %v4395
        %v4769 = vunpack.c.h.b16 %v4395
        %v4770 = vunpack.c.l.b16 %v4396
        %v4771 = vunpack.c.h.b16 %v4396
        %v4772 = vunpack.c.l.b16 %v4397
        %v4773 = vunpack.c.h.b16 %v4397
        %v4774 = vunpack.c.l.b16 %v4398
        %v4775 = vunpack.c.h.b16 %v4398
        %v4776 = vunpack.c.l.b16 %v4399
        %v4777 = vunpack.c.h.b16 %v4399
        %v4778 = vunpack.c.l.b16 %v4400
        %v4779 = vunpack.c.h.b16 %v4400
        %v4780 = vunpack.c.l.b16 %v4401
        %v4781 = vunpack.c.h.b16 %v4401
        %v4782 = vunpack.c.l.b16 %v4402
        %v4783 = vunpack.c.h.b16 %v4402
        %v4784 = vunpack.c.l.b16 %v4403
        %v4785 = vunpack.c.h.b16 %v4403
        %v4786 = vunpack.c.l.b16 %v4404
        %v4787 = vunpack.c.h.b16 %v4404
        %v4788 = vunpack.c.l.b16 %v4405
        %v4789 = vunpack.c.h.b16 %v4405
        %v4790 = vunpack.c.l.b16 %v4406
        %v4791 = vunpack.c.h.b16 %v4406
        %v4792 = vunpack.c.l.b16 %v4407
        %v4793 = vunpack.c.h.b16 %v4407
        %v4794 = vunpack.c.l.b16 %v4408
        %v4795 = vunpack.c.h.b16 %v4408
        %v4796 = vunpack.c.l.b16 %v4409
        %v4797 = vunpack.c.h.b16 %v4409
        %v4798 = vunpack.c.l.b16 %v4410
        %v4799 = vunpack.c.h.b16 %v4410
        %v4800 = vunpack.c.l.b16 %v4411
        %v4801 = vunpack.c.h.b16 %v4411
        %v4802 = vunpack.c.l.b16 %v4412
        %v4803 = vunpack.c.h.b16 %v4412
        %v4804 = vunpack.c.l.b16 %v4413
        %v4805 = vunpack.c.h.b16 %v4413
        %v4806 = vunpack.c.l.b16 %v4414
        %v4807 = vunpack.c.h.b16 %v4414
        %v4808 = vunpack.c.l.b16 %v4415
        %v4809 = vunpack.c.h.b16 %v4415
        %v4810 = vunpack.c.l.b16 %v4416
        %v4811 = vunpack.c.h.b16 %v4416
        %v4812 = vunpack.c.l.b16 %v4417
        %v4813 = vunpack.c.h.b16 %v4417
        %v4814 = vunpack.c.l.b16 %v4418
        %v4815 = vunpack.c.h.b16 %v4418
        %v4816 = vunpack.c.l.b16 %v4419
        %v4817 = vunpack.c.h.b16 %v4419
        %v4818 = vunpack.c.l.b16 %v4420
        %v4819 = vunpack.c.h.b16 %v4420
        %v4820 = vunpack.c.l.b16 %v4421
        %v4821 = vunpack.c.h.b16 %v4421
        %v4822 = vunpack.c.l.b16 %v4422
        %v4823 = vunpack.c.h.b16 %v4422
        %v4824 = vunpack.c.l.b16 %v4423
        %v4825 = vunpack.c.h.b16 %v4423
        %v4826 = vunpack.c.l.b16 %v4424
        %v4827 = vunpack.c.h.b16 %v4424
        %v4828 = vunpack.c.l.b16 %v4425
        %v4829 = vunpack.c.h.b16 %v4425
        %v4830 = vunpack.c.l.b16 %v4426
        %v4831 = vunpack.c.h.b16 %v4426
        %v4832 = vunpack.c.l.b16 %v4427
        %v4833 = vunpack.c.h.b16 %v4427
        %v4834 = vunpack.c.l.b16 %v4428
        %v4835 = vunpack.c.h.b16 %v4428
        %v4836 = vunpack.c.l.b16 %v4429
        %v4837 = vunpack.c.h.b16 %v4429
        %v4838 = vunpack.c.l.b16 %v4430
        %v4839 = vunpack.c.h.b16 %v4430
        %v4840 = vunpack.c.l.b16 %v4431
        %v4841 = vunpack.c.h.b16 %v4431
        %v4842 = vunpack.c.l.b16 %v4432
        %v4843 = vunpack.c.h.b16 %v4432
        %v4844 = vunpack.c.l.b16 %v4433
        %v4845 = vunpack.c.h.b16 %v4433
        %v4846 = vunpack.c.l.b16 %v4434
        %v4847 = vunpack.c.h.b16 %v4434
        %v4848 = vunpack.c.l.b16 %v4435
        %v4849 = vunpack.c.h.b16 %v4435
        %v4850 = vunpack.c.l.b16 %v4436
        %v4851 = vunpack.c.h.b16 %v4436
        %v4852 = vunpack.c.l.b16 %v4437
        %v4853 = vunpack.c.h.b16 %v4437
        %v4854 = vunpack.c.l.b16 %v4438
        %v4855 = vunpack.c.h.b16 %v4438
        %v4856 = vunpack.c.l.b16 %v4439
        %v4857 = vunpack.c.h.b16 %v4439
        %v4858 = vunpack.c.l.b16 %v4440
        %v4859 = vunpack.c.h.b16 %v4440
        %v4860 = vunpack.c.l.b16 %v4441
        %v4861 = vunpack.c.h.b16 %v4441
        %v4862 = vunpack.c.l.b16 %v4442
        %v4863 = vunpack.c.h.b16 %v4442
        %v4864 = vunpack.c.l.b16 %v4443
        %v4865 = vunpack.c.h.b16 %v4443
        %v4866 = vunpack.c.l.b16 %v4444
        %v4867 = vunpack.c.h.b16 %v4444
        %v4868 = vunpack.c.l.b16 %v4445
        %v4869 = vunpack.c.h.b16 %v4445
        %v4870 = vunpack.c.l.b16 %v4446
        %v4871 = vunpack.c.h.b16 %v4446
        %v4872 = vunpack.c.l.b16 %v4447
        %v4873 = vunpack.c.h.b16 %v4447
        %v4874 = vpack.c.b16 %v4626, %v4618
        %v4875 = vpack.c.b16 %v4627, %v4619
        %v4876 = vpack.c.b16 %v4628, %v4620
        %v4877 = vpack.c.b16 %v4629, %v4621
        %v4878 = vpack.c.b16 %v4630, %v4622
        %v4879 = vpack.c.b16 %v4631, %v4623
        %v4880 = vpack.c.b16 %v4632, %v4624
        %v4881 = vpack.c.b16 %v4633, %v4625
        %v4882 = vpack.c.b16 %v4642, %v4634
        %v4883 = vpack.c.b16 %v4643, %v4635
        %v4884 = vpack.c.b16 %v4644, %v4636
        %v4885 = vpack.c.b16 %v4645, %v4637
        %v4886 = vpack.c.b16 %v4646, %v4638
        %v4887 = vpack.c.b16 %v4647, %v4639
        %v4888 = vpack.c.b16 %v4648, %v4640
        %v4889 = vpack.c.b16 %v4649, %v4641
        %v4890 = vpack.c.b16 %v4658, %v4650
        %v4891 = vpack.c.b16 %v4659, %v4651
        %v4892 = vpack.c.b16 %v4660, %v4652
        %v4893 = vpack.c.b16 %v4661, %v4653
        %v4894 = vpack.c.b16 %v4662, %v4654
        %v4895 = vpack.c.b16 %v4663, %v4655
        %v4896 = vpack.c.b16 %v4664, %v4656
        %v4897 = vpack.c.b16 %v4665, %v4657
        %v4898 = vpack.c.b16 %v4674, %v4666
        %v4899 = vpack.c.b16 %v4675, %v4667
        %v4900 = vpack.c.b16 %v4676, %v4668
        %v4901 = vpack.c.b16 %v4677, %v4669
        %v4902 = vpack.c.b16 %v4678, %v4670
        %v4903 = vpack.c.b16 %v4679, %v4671
        %v4904 = vpack.c.b16 %v4680, %v4672
        %v4905 = vpack.c.b16 %v4681, %v4673
        %v4906 = vpack.c.b16 %v4690, %v4682
        %v4907 = vpack.c.b16 %v4691, %v4683
        %v4908 = vpack.c.b16 %v4692, %v4684
        %v4909 = vpack.c.b16 %v4693, %v4685
        %v4910 = vpack.c.b16 %v4694, %v4686
        %v4911 = vpack.c.b16 %v4695, %v4687
        %v4912 = vpack.c.b16 %v4696, %v4688
        %v4913 = vpack.c.b16 %v4697, %v4689
        %v4914 = vpack.c.b16 %v4706, %v4698
        %v4915 = vpack.c.b16 %v4707, %v4699
        %v4916 = vpack.c.b16 %v4708, %v4700
        %v4917 = vpack.c.b16 %v4709, %v4701
        %v4918 = vpack.c.b16 %v4710, %v4702
        %v4919 = vpack.c.b16 %v4711, %v4703
        %v4920 = vpack.c.b16 %v4712, %v4704
        %v4921 = vpack.c.b16 %v4713, %v4705
        %v4922 = vpack.c.b16 %v4722, %v4714
        %v4923 = vpack.c.b16 %v4723, %v4715
        %v4924 = vpack.c.b16 %v4724, %v4716
        %v4925 = vpack.c.b16 %v4725, %v4717
        %v4926 = vpack.c.b16 %v4726, %v4718
        %v4927 = vpack.c.b16 %v4727, %v4719
        %v4928 = vpack.c.b16 %v4728, %v4720
        %v4929 = vpack.c.b16 %v4729, %v4721
        %v4930 = vpack.c.b16 %v4738, %v4730
        %v4931 = vpack.c.b16 %v4739, %v4731
        %v4932 = vpack.c.b16 %v4740, %v4732
        %v4933 = vpack.c.b16 %v4741, %v4733
        %v4934 = vpack.c.b16 %v4742, %v4734
        %v4935 = vpack.c.b16 %v4743, %v4735
        %v4936 = vpack.c.b16 %v4744, %v4736
        %v4937 = vpack.c.b16 %v4745, %v4737
        %v4938 = vpack.c.b16 %v4754, %v4746
        %v4939 = vpack.c.b16 %v4755, %v4747
        %v4940 = vpack.c.b16 %v4756, %v4748
        %v4941 = vpack.c.b16 %v4757, %v4749
        %v4942 = vpack.c.b16 %v4758, %v4750
        %v4943 = vpack.c.b16 %v4759, %v4751
        %v4944 = vpack.c.b16 %v4760, %v4752
        %v4945 = vpack.c.b16 %v4761, %v4753
        %v4946 = vpack.c.b16 %v4770, %v4762
        %v4947 = vpack.c.b16 %v4771, %v4763
        %v4948 = vpack.c.b16 %v4772, %v4764
        %v4949 = vpack.c.b16 %v4773, %v4765
        %v4950 = vpack.c.b16 %v4774, %v4766
        %v4951 = vpack.c.b16 %v4775, %v4767
        %v4952 = vpack.c.b16 %v4776, %v4768
        %v4953 = vpack.c.b16 %v4777, %v4769
        %v4954 = vpack.c.b16 %v4786, %v4778
        %v4955 = vpack.c.b16 %v4787, %v4779
        %v4956 = vpack.c.b16 %v4788, %v4780
        %v4957 = vpack.c.b16 %v4789, %v4781
        %v4958 = vpack.c.b16 %v4790, %v4782
        %v4959 = vpack.c.b16 %v4791, %v4783
        %v4960 = vpack.c.b16 %v4792, %v4784
        %v4961 = vpack.c.b16 %v4793, %v4785
        %v4962 = vpack.c.b16 %v4802, %v4794
        %v4963 = vpack.c.b16 %v4803, %v4795
        %v4964 = vpack.c.b16 %v4804, %v4796
        %v4965 = vpack.c.b16 %v4805, %v4797
        %v4966 = vpack.c.b16 %v4806, %v4798
        %v4967 = vpack.c.b16 %v4807, %v4799
        %v4968 = vpack.c.b16 %v4808, %v4800
        %v4969 = vpack.c.b16 %v4809, %v4801
        %v4970 = vpack.c.b16 %v4818, %v4810
        %v4971 = vpack.c.b16 %v4819, %v4811
        %v4972 = vpack.c.b16 %v4820, %v4812
        %v4973 = vpack.c.b16 %v4821, %v4813
        %v4974 = vpack.c.b16 %v4822, %v4814
        %v4975 = vpack.c.b16 %v4823, %v4815
        %v4976 = vpack.c.b16 %v4824, %v4816
        %v4977 = vpack.c.b16 %v4825, %v4817
        %v4978 = vpack.c.b16 %v4834, %v4826
        %v4979 = vpack.c.b16 %v4835, %v4827
        %v4980 = vpack.c.b16 %v4836, %v4828
        %v4981 = vpack.c.b16 %v4837, %v4829
        %v4982 = vpack.c.b16 %v4838, %v4830
        %v4983 = vpack.c.b16 %v4839, %v4831
        %v4984 = vpack.c.b16 %v4840, %v4832
        %v4985 = vpack.c.b16 %v4841, %v4833
        %v4986 = vpack.c.b16 %v4850, %v4842
        %v4987 = vpack.c.b16 %v4851, %v4843
        %v4988 = vpack.c.b16 %v4852, %v4844
        %v4989 = vpack.c.b16 %v4853, %v4845
        %v4990 = vpack.c.b16 %v4854, %v4846
        %v4991 = vpack.c.b16 %v4855, %v4847
        %v4992 = vpack.c.b16 %v4856, %v4848
        %v4993 = vpack.c.b16 %v4857, %v4849
        %v4994 = vpack.c.b16 %v4866, %v4858
        %v4995 = vpack.c.b16 %v4867, %v4859
        %v4996 = vpack.c.b16 %v4868, %v4860
        %v4997 = vpack.c.b16 %v4869, %v4861
        %v4998 = vpack.c.b16 %v4870, %v4862
        %v4999 = vpack.c.b16 %v4871, %v4863
        %v5000 = vpack.c.b16 %v4872, %v4864
        %v5001 = vpack.c.b16 %v4873, %v4865
        %5130 = vmatprep.subr.bf16.mxu0 %v4931
        %5131 = vmatpush1.bf16.msra.mxu0 %v4930
        %5132 = vmatprep.subr.bf16.mxu0 %v4923
        %5133 = vmatpush1.bf16.msra.mxu0 %v4922
        %5134 = vmatprep.subr.bf16.mxu0 %v4915
        %5135 = vmatpush1.bf16.msra.mxu0 %v4914
        %5136 = vmatprep.subr.bf16.mxu0 %v4907
        %5137 = vmatpush1.bf16.msra.mxu0 %v4906
        %5138 = vmatprep.subr.bf16.mxu0 %v4899
        %5139 = vmatpush1.bf16.msra.mxu0 %v4898
        %5140 = vmatprep.subr.bf16.mxu0 %v4891
        %5141 = vmatpush1.bf16.msra.mxu0 %v4890
        %5142 = vmatprep.subr.bf16.mxu0 %v4883
        %5143 = vmatpush1.bf16.msra.mxu0 %v4882
        %5144 = vmatprep.subr.bf16.mxu0 %v4875
        %5145 = vmatpush1.bf16.msra.mxu0 %v4874
        %5146 = vmatprep.subr.bf16.mxu0 %v4995
        %5147 = vmatpush2.bf16.msra.mxu0 %v4994
        %5148 = vmatprep.subr.bf16.mxu0 %v4987
        %5149 = vmatpush2.bf16.msra.mxu0 %v4986
        %5150 = vmatprep.subr.bf16.mxu0 %v4979
        %5151 = vmatpush2.bf16.msra.mxu0 %v4978
        %5152 = vmatprep.subr.bf16.mxu0 %v4971
        %5153 = vmatpush2.bf16.msra.mxu0 %v4970
        %5154 = vmatprep.subr.bf16.mxu0 %v4963
        %5155 = vmatpush2.bf16.msra.mxu0 %v4962
        %5156 = vmatprep.subr.bf16.mxu0 %v4955
        %5157 = vmatpush2.bf16.msra.mxu0 %v4954
        %5158 = vmatprep.subr.bf16.mxu0 %v4947
        %5159 = vmatpush2.bf16.msra.mxu0 %v4946
        %5160 = vmatprep.subr.bf16.mxu0 %v4939
        %5161 = vmatpush2.bf16.msra.mxu0 %v4938
        %5162 = vmatprep.mubr.bf16.mxu0 %v4319
        %5163 = vmatmul.mubr.bf16.gmra.mxu0 %v4318
        %v5164 = vpop.f32.mrf.mxu0
        %v5165 = vadd.f32 %v4453, %v5164
        %v5166 = vpop.f32.mrf.mxu0
        %v5167 = vadd.f32 %v4457, %v5166
        %v5168 = vpop.f32.mrf.mxu0
        %v5169 = vadd.f32 %v4453, %v5168
        %v5170 = vpop.f32.mrf.mxu0
        %v5171 = vadd.f32 %v4457, %v5170
        %5172 = vdwg.mxu0
        %5173 = vmatprep.subr.bf16.mxu0 %v4933
        %5174 = vmatpush1.bf16.msra.mxu0 %v4932
        %5175 = vmatprep.subr.bf16.mxu0 %v4925
        %5176 = vmatpush1.bf16.msra.mxu0 %v4924
        %5177 = vmatprep.subr.bf16.mxu0 %v4917
        %5178 = vmatpush1.bf16.msra.mxu0 %v4916
        %5179 = vmatprep.subr.bf16.mxu0 %v4909
        %5180 = vmatpush1.bf16.msra.mxu0 %v4908
        %5181 = vmatprep.subr.bf16.mxu0 %v4901
        %5182 = vmatpush1.bf16.msra.mxu0 %v4900
        %5183 = vmatprep.subr.bf16.mxu0 %v4893
        %5184 = vmatpush1.bf16.msra.mxu0 %v4892
        %5185 = vmatprep.subr.bf16.mxu0 %v4885
        %5186 = vmatpush1.bf16.msra.mxu0 %v4884
        %5187 = vmatprep.subr.bf16.mxu0 %v4877
        %5188 = vmatpush1.bf16.msra.mxu0 %v4876
        %5189 = vmatprep.subr.bf16.mxu0 %v4997
        %5190 = vmatpush2.bf16.msra.mxu0 %v4996
        %5191 = vmatprep.subr.bf16.mxu0 %v4989
        %5192 = vmatpush2.bf16.msra.mxu0 %v4988
        %5193 = vmatprep.subr.bf16.mxu0 %v4981
        %5194 = vmatpush2.bf16.msra.mxu0 %v4980
        %5195 = vmatprep.subr.bf16.mxu0 %v4973
        %5196 = vmatpush2.bf16.msra.mxu0 %v4972
        %5197 = vmatprep.subr.bf16.mxu0 %v4965
        %5198 = vmatpush2.bf16.msra.mxu0 %v4964
        %5199 = vmatprep.subr.bf16.mxu0 %v4957
        %5200 = vmatpush2.bf16.msra.mxu0 %v4956
        %5201 = vmatprep.subr.bf16.mxu0 %v4949
        %5202 = vmatpush2.bf16.msra.mxu0 %v4948
        %5203 = vmatprep.subr.bf16.mxu0 %v4941
        %5204 = vmatpush2.bf16.msra.mxu0 %v4940
        %5205 = vmatprep.mubr.bf16.mxu0 %v4319
        %5206 = vmatmul.mubr.bf16.gmra.mxu0 %v4318
        %v5207 = vpop.f32.mrf.mxu0
        %v5208 = vadd.f32 %v4461, %v5207
        %v5209 = vpop.f32.mrf.mxu0
        %v5210 = vadd.f32 %v4465, %v5209
        %v5211 = vpop.f32.mrf.mxu0
        %v5212 = vadd.f32 %v4461, %v5211
        %v5213 = vpop.f32.mrf.mxu0
        %v5214 = vadd.f32 %v4465, %v5213
        %5215 = vdwg.mxu0
        %5216 = vmatprep.subr.bf16.mxu0 %v4935
        %5217 = vmatpush1.bf16.msra.mxu0 %v4934
        %5218 = vmatprep.subr.bf16.mxu0 %v4927
        %5219 = vmatpush1.bf16.msra.mxu0 %v4926
        %5220 = vmatprep.subr.bf16.mxu0 %v4919
        %5221 = vmatpush1.bf16.msra.mxu0 %v4918
        %5222 = vmatprep.subr.bf16.mxu0 %v4911
        %5223 = vmatpush1.bf16.msra.mxu0 %v4910
        %5224 = vmatprep.subr.bf16.mxu0 %v4903
        %5225 = vmatpush1.bf16.msra.mxu0 %v4902
        %5226 = vmatprep.subr.bf16.mxu0 %v4895
        %5227 = vmatpush1.bf16.msra.mxu0 %v4894
        %5228 = vmatprep.subr.bf16.mxu0 %v4887
        %5229 = vmatpush1.bf16.msra.mxu0 %v4886
        %5230 = vmatprep.subr.bf16.mxu0 %v4879
        %5231 = vmatpush1.bf16.msra.mxu0 %v4878
        %5232 = vmatprep.subr.bf16.mxu0 %v4999
        %5233 = vmatpush2.bf16.msra.mxu0 %v4998
        %5234 = vmatprep.subr.bf16.mxu0 %v4991
        %5235 = vmatpush2.bf16.msra.mxu0 %v4990
        %5236 = vmatprep.subr.bf16.mxu0 %v4983
        %5237 = vmatpush2.bf16.msra.mxu0 %v4982
        %5238 = vmatprep.subr.bf16.mxu0 %v4975
        %5239 = vmatpush2.bf16.msra.mxu0 %v4974
        %5240 = vmatprep.subr.bf16.mxu0 %v4967
        %5241 = vmatpush2.bf16.msra.mxu0 %v4966
        %5242 = vmatprep.subr.bf16.mxu0 %v4959
        %5243 = vmatpush2.bf16.msra.mxu0 %v4958
        %5244 = vmatprep.subr.bf16.mxu0 %v4951
        %5245 = vmatpush2.bf16.msra.mxu0 %v4950
        %5246 = vmatprep.subr.bf16.mxu0 %v4943
        %5247 = vmatpush2.bf16.msra.mxu0 %v4942
        %5248 = vmatprep.mubr.bf16.mxu0 %v4319
        %5249 = vmatmul.mubr.bf16.gmra.mxu0 %v4318
        %v5250 = vpop.f32.mrf.mxu0
        %v5251 = vadd.f32 %v4469, %v5250
        %v5252 = vpop.f32.mrf.mxu0
        %v5253 = vadd.f32 %v4473, %v5252
        %v5254 = vpop.f32.mrf.mxu0
        %v5255 = vadd.f32 %v4469, %v5254
        %v5256 = vpop.f32.mrf.mxu0
        %v5257 = vadd.f32 %v4473, %v5256
        %5258 = vdwg.mxu0
        %5259 = vmatprep.subr.bf16.mxu0 %v4937
        %5260 = vmatpush1.bf16.msra.mxu0 %v4936
        %5261 = vmatprep.subr.bf16.mxu0 %v4929
        %5262 = vmatpush1.bf16.msra.mxu0 %v4928
        %5263 = vmatprep.subr.bf16.mxu0 %v4921
        %5264 = vmatpush1.bf16.msra.mxu0 %v4920
        %5265 = vmatprep.subr.bf16.mxu0 %v4913
        %5266 = vmatpush1.bf16.msra.mxu0 %v4912
        %5267 = vmatprep.subr.bf16.mxu0 %v4905
        %5268 = vmatpush1.bf16.msra.mxu0 %v4904
        %5269 = vmatprep.subr.bf16.mxu0 %v4897
        %5270 = vmatpush1.bf16.msra.mxu0 %v4896
        %5271 = vmatprep.subr.bf16.mxu0 %v4889
        %5272 = vmatpush1.bf16.msra.mxu0 %v4888
        %5273 = vmatprep.subr.bf16.mxu0 %v4881
        %5274 = vmatpush1.bf16.msra.mxu0 %v4880
        %5275 = vmatprep.subr.bf16.mxu0 %v5001
        %5276 = vmatpush2.bf16.msra.mxu0 %v5000
        %5277 = vmatprep.subr.bf16.mxu0 %v4993
        %5278 = vmatpush2.bf16.msra.mxu0 %v4992
        %5279 = vmatprep.subr.bf16.mxu0 %v4985
        %5280 = vmatpush2.bf16.msra.mxu0 %v4984
        %5281 = vmatprep.subr.bf16.mxu0 %v4977
        %5282 = vmatpush2.bf16.msra.mxu0 %v4976
        %5283 = vmatprep.subr.bf16.mxu0 %v4969
        %5284 = vmatpush2.bf16.msra.mxu0 %v4968
        %5285 = vmatprep.subr.bf16.mxu0 %v4961
        %5286 = vmatpush2.bf16.msra.mxu0 %v4960
        %5287 = vmatprep.subr.bf16.mxu0 %v4953
        %5288 = vmatpush2.bf16.msra.mxu0 %v4952
        %5289 = vmatprep.subr.bf16.mxu0 %v4945
        %5290 = vmatpush2.bf16.msra.mxu0 %v4944
        %5291 = vmatprep.mubr.bf16.mxu0 %v4319
        %5292 = vmatmul.mubr.bf16.gmra.mxu0 %v4318
        %v5293 = vpop.f32.mrf.mxu0
        %v5294 = vadd.f32 %v4477, %v5293
        %v5295 = vpop.f32.mrf.mxu0
        %v5296 = vadd.f32 %v4481, %v5295
        %v5297 = vpop.f32.mrf.mxu0
        %v5298 = vadd.f32 %v4477, %v5297
        %v5299 = vpop.f32.mrf.mxu0
        %v5300 = vadd.f32 %v4481, %v5299
        %5301 = vdwg.mxu0
        %v5302 = vunpack.c.l.bf16 %v383
        %v5303 = vunpack.c.h.bf16 %v383
        %v5304 = vunpack.c.l.bf16 %v384
        %v5305 = vunpack.c.h.bf16 %v384
        %v5306 = vunpack.c.l.bf16 %v385
        %v5307 = vunpack.c.h.bf16 %v385
        %v5308 = vunpack.c.l.bf16 %v386
        %v5309 = vunpack.c.h.bf16 %v386
        %v5310 = vunpack.c.l.bf16 %v387
        %v5311 = vunpack.c.h.bf16 %v387
        %v5312 = vunpack.c.l.bf16 %v388
        %v5313 = vunpack.c.h.bf16 %v388
        %v5314 = vunpack.c.l.bf16 %v389
        %v5315 = vunpack.c.h.bf16 %v389
        %v5316 = vunpack.c.l.bf16 %v390
        %v5317 = vunpack.c.h.bf16 %v390
        %v5318 = vadd.f32 %v5165, %v5302
        %v5319 = vadd.f32 %v5167, %v5303
        %v5320 = vadd.f32 %v5208, %v5304
        %v5321 = vadd.f32 %v5210, %v5305
        %v5322 = vadd.f32 %v5251, %v5306
        %v5323 = vadd.f32 %v5253, %v5307
        %v5324 = vadd.f32 %v5294, %v5308
        %v5325 = vadd.f32 %v5296, %v5309
        %v5326 = vadd.f32 %v5169, %v5310
        %v5327 = vadd.f32 %v5171, %v5311
        %v5328 = vadd.f32 %v5212, %v5312
        %v5329 = vadd.f32 %v5214, %v5313
        %v5330 = vadd.f32 %v5255, %v5314
        %v5331 = vadd.f32 %v5257, %v5315
        %v5332 = vadd.f32 %v5298, %v5316
        %v5333 = vadd.f32 %v5300, %v5317
        %v5334 = vadd.f32 %v5318, %v5319
        %v5335 = vadd.f32 %v5334, %v5320
        %v5336 = vadd.f32 %v5335, %v5321
        %v5337 = vadd.f32 %v5336, %v5322
        %v5338 = vadd.f32 %v5337, %v5323
        %v5339 = vadd.f32 %v5338, %v5324
        %v5340 = vadd.f32 %v5339, %v5325
        %5341 = vadd.xlane.f32.xlu0 %v5340
        %v5342 = vpop.xlane.xlu0 %5341
        %v5343 = vadd.f32 %v5326, %v5327
        %v5344 = vadd.f32 %v5343, %v5328
        %v5345 = vadd.f32 %v5344, %v5329
        %v5346 = vadd.f32 %v5345, %v5330
        %v5347 = vadd.f32 %v5346, %v5331
        %v5348 = vadd.f32 %v5347, %v5332
        %v5349 = vadd.f32 %v5348, %v5333
        %5350 = vadd.xlane.f32.xlu0 %v5349
        %v5351 = vpop.xlane.xlu0 %5350
        %v5352 = vrcp.pop 1024.0
        %v5353 = vmul.f32 %v5342, %v5352
        %v5354 = vmul.f32 %v5351, %v5352
        %v5355 = vsub.f32 %v5318, %v5353
        %v5356 = vsub.f32 %v5319, %v5353
        %v5357 = vsub.f32 %v5320, %v5353
        %v5358 = vsub.f32 %v5321, %v5353
        %v5359 = vsub.f32 %v5322, %v5353
        %v5360 = vsub.f32 %v5323, %v5353
        %v5361 = vsub.f32 %v5324, %v5353
        %v5362 = vsub.f32 %v5325, %v5353
        %v5363 = vsub.f32 %v5326, %v5354
        %v5364 = vsub.f32 %v5327, %v5354
        %v5365 = vsub.f32 %v5328, %v5354
        %v5366 = vsub.f32 %v5329, %v5354
        %v5367 = vsub.f32 %v5330, %v5354
        %v5368 = vsub.f32 %v5331, %v5354
        %v5369 = vsub.f32 %v5332, %v5354
        %v5370 = vsub.f32 %v5333, %v5354
        %v5371 = vmul.f32 %v5355, %v5355
        %v5372 = vmul.f32 %v5356, %v5356
        %v5373 = vmul.f32 %v5357, %v5357
        %v5374 = vmul.f32 %v5358, %v5358
        %v5375 = vmul.f32 %v5359, %v5359
        %v5376 = vmul.f32 %v5360, %v5360
        %v5377 = vmul.f32 %v5361, %v5361
        %v5378 = vmul.f32 %v5362, %v5362
        %v5379 = vmul.f32 %v5363, %v5363
        %v5380 = vmul.f32 %v5364, %v5364
        %v5381 = vmul.f32 %v5365, %v5365
        %v5382 = vmul.f32 %v5366, %v5366
        %v5383 = vmul.f32 %v5367, %v5367
        %v5384 = vmul.f32 %v5368, %v5368
        %v5385 = vmul.f32 %v5369, %v5369
        %v5386 = vmul.f32 %v5370, %v5370
        %v5387 = vadd.f32 %v5371, %v5372
        %v5388 = vadd.f32 %v5387, %v5373
        %v5389 = vadd.f32 %v5388, %v5374
        %v5390 = vadd.f32 %v5389, %v5375
        %v5391 = vadd.f32 %v5390, %v5376
        %v5392 = vadd.f32 %v5391, %v5377
        %v5393 = vadd.f32 %v5392, %v5378
        %5394 = vadd.xlane.f32.xlu0 %v5393
        %v5395 = vpop.xlane.xlu0 %5394
        %v5396 = vadd.f32 %v5379, %v5380
        %v5397 = vadd.f32 %v5396, %v5381
        %v5398 = vadd.f32 %v5397, %v5382
        %v5399 = vadd.f32 %v5398, %v5383
        %v5400 = vadd.f32 %v5399, %v5384
        %v5401 = vadd.f32 %v5400, %v5385
        %v5402 = vadd.f32 %v5401, %v5386
        %5403 = vadd.xlane.f32.xlu0 %v5402
        %v5404 = vpop.xlane.xlu0 %5403
        %v5405 = vmul.f32 %v5395, %v5352
        %v5406 = vmul.f32 %v5404, %v5352
        %v5407 = vadd.f32 %v5405, 1e-06
        %v5408 = vadd.f32 %v5406, 1e-06
        %v5409 = vrsqrt.pop %v5407
        %v5410 = vrsqrt.pop %v5408
        %v5411 = vmul.f32 %v5355, %v5409
        %v5412 = vmul.f32 %v5356, %v5409
        %v5413 = vmul.f32 %v5357, %v5409
        %v5414 = vmul.f32 %v5358, %v5409
        %v5415 = vmul.f32 %v5359, %v5409
        %v5416 = vmul.f32 %v5360, %v5409
        %v5417 = vmul.f32 %v5361, %v5409
        %v5418 = vmul.f32 %v5362, %v5409
        %v5419 = vmul.f32 %v5363, %v5410
        %v5420 = vmul.f32 %v5364, %v5410
        %v5421 = vmul.f32 %v5365, %v5410
        %v5422 = vmul.f32 %v5366, %v5410
        %v5423 = vmul.f32 %v5367, %v5410
        %v5424 = vmul.f32 %v5368, %v5410
        %v5425 = vmul.f32 %v5369, %v5410
        %v5426 = vmul.f32 %v5370, %v5410
        %v5427 = vld [vmem:[#allocation13] sm:$0xff]
        %v5429 = vlaneseq
        %v5430 = vshrl.u32 %v5429, 7
        %v5431 = vsub.s32 0, %v5430
        %v5432 = vrot.slane %v5427, %v5431
        %v5433 = vlaneseq
        %v5434 = vshrl.u32 %v5433, 7
        %v5435 = vsub.s32 1, %v5434
        %v5436 = vrot.slane %v5427, %v5435
        %v5437 = vlaneseq
        %v5438 = vshrl.u32 %v5437, 7
        %v5439 = vsub.s32 2, %v5438
        %v5440 = vrot.slane %v5427, %v5439
        %v5441 = vlaneseq
        %v5442 = vshrl.u32 %v5441, 7
        %v5443 = vsub.s32 3, %v5442
        %v5444 = vrot.slane %v5427, %v5443
        %v5445 = vlaneseq
        %v5446 = vshrl.u32 %v5445, 7
        %v5447 = vsub.s32 4, %v5446
        %v5448 = vrot.slane %v5427, %v5447
        %v5449 = vlaneseq
        %v5450 = vshrl.u32 %v5449, 7
        %v5451 = vsub.s32 5, %v5450
        %v5452 = vrot.slane %v5427, %v5451
        %v5453 = vlaneseq
        %v5454 = vshrl.u32 %v5453, 7
        %v5455 = vsub.s32 6, %v5454
        %v5456 = vrot.slane %v5427, %v5455
        %v5457 = vlaneseq
        %v5458 = vshrl.u32 %v5457, 7
        %v5459 = vsub.s32 7, %v5458
        %v5460 = vrot.slane %v5427, %v5459
        %v5469 = vmul.f32 %v5411, %v5432
        %v5470 = vmul.f32 %v5412, %v5436
        %v5471 = vmul.f32 %v5413, %v5440
        %v5472 = vmul.f32 %v5414, %v5444
        %v5473 = vmul.f32 %v5415, %v5448
        %v5474 = vmul.f32 %v5416, %v5452
        %v5475 = vmul.f32 %v5417, %v5456
        %v5476 = vmul.f32 %v5418, %v5460
        %v5477 = vmul.f32 %v5419, %v5432
        %v5478 = vmul.f32 %v5420, %v5436
        %v5479 = vmul.f32 %v5421, %v5440
        %v5480 = vmul.f32 %v5422, %v5444
        %v5481 = vmul.f32 %v5423, %v5448
        %v5482 = vmul.f32 %v5424, %v5452
        %v5483 = vmul.f32 %v5425, %v5456
        %v5484 = vmul.f32 %v5426, %v5460
        %v5485 = vld [vmem:[#allocation15] sm:$0xff]
        %v5487 = vlaneseq
        %v5488 = vshrl.u32 %v5487, 7
        %v5489 = vsub.s32 0, %v5488
        %v5490 = vrot.slane %v5485, %v5489
        %v5491 = vlaneseq
        %v5492 = vshrl.u32 %v5491, 7
        %v5493 = vsub.s32 1, %v5492
        %v5494 = vrot.slane %v5485, %v5493
        %v5495 = vlaneseq
        %v5496 = vshrl.u32 %v5495, 7
        %v5497 = vsub.s32 2, %v5496
        %v5498 = vrot.slane %v5485, %v5497
        %v5499 = vlaneseq
        %v5500 = vshrl.u32 %v5499, 7
        %v5501 = vsub.s32 3, %v5500
        %v5502 = vrot.slane %v5485, %v5501
        %v5503 = vlaneseq
        %v5504 = vshrl.u32 %v5503, 7
        %v5505 = vsub.s32 4, %v5504
        %v5506 = vrot.slane %v5485, %v5505
        %v5507 = vlaneseq
        %v5508 = vshrl.u32 %v5507, 7
        %v5509 = vsub.s32 5, %v5508
        %v5510 = vrot.slane %v5485, %v5509
        %v5511 = vlaneseq
        %v5512 = vshrl.u32 %v5511, 7
        %v5513 = vsub.s32 6, %v5512
        %v5514 = vrot.slane %v5485, %v5513
        %v5515 = vlaneseq
        %v5516 = vshrl.u32 %v5515, 7
        %v5517 = vsub.s32 7, %v5516
        %v5518 = vrot.slane %v5485, %v5517
        %v5527 = vadd.f32 %v5469, %v5490
        %v5528 = vadd.f32 %v5470, %v5494
        %v5529 = vadd.f32 %v5471, %v5498
        %v5530 = vadd.f32 %v5472, %v5502
        %v5531 = vadd.f32 %v5473, %v5506
        %v5532 = vadd.f32 %v5474, %v5510
        %v5533 = vadd.f32 %v5475, %v5514
        %v5534 = vadd.f32 %v5476, %v5518
        %v5535 = vadd.f32 %v5477, %v5490
        %v5536 = vadd.f32 %v5478, %v5494
        %v5537 = vadd.f32 %v5479, %v5498
        %v5538 = vadd.f32 %v5480, %v5502
        %v5539 = vadd.f32 %v5481, %v5506
        %v5540 = vadd.f32 %v5482, %v5510
        %v5541 = vadd.f32 %v5483, %v5514
        %v5542 = vadd.f32 %v5484, %v5518
        %5543 = vst [vmem:[%s380] sm:$0xff] %v5527
        %5544 = vst [vmem:[%s380 + $0x8] sm:$0xff] %v5528
        %5545 = vst [vmem:[%s380 + $0x10] sm:$0xff] %v5529
        %5546 = vst [vmem:[%s380 + $0x18] sm:$0xff] %v5530
        %5547 = vst [vmem:[%s380 + $0x20] sm:$0xff] %v5531
        %5548 = vst [vmem:[%s380 + $0x28] sm:$0xff] %v5532
        %5549 = vst [vmem:[%s380 + $0x30] sm:$0xff] %v5533
        %5550 = vst [vmem:[%s380 + $0x38] sm:$0xff] %v5534
        %5551 = vst [vmem:[%s380 + $0x40] sm:$0xff] %v5535
        %5552 = vst [vmem:[%s380 + $0x48] sm:$0xff] %v5536
        %5553 = vst [vmem:[%s380 + $0x50] sm:$0xff] %v5537
        %5554 = vst [vmem:[%s380 + $0x58] sm:$0xff] %v5538
        %5555 = vst [vmem:[%s380 + $0x60] sm:$0xff] %v5539
        %5556 = vst [vmem:[%s380 + $0x68] sm:$0xff] %v5540
        %5557 = vst [vmem:[%s380 + $0x70] sm:$0xff] %v5541
        %5558 = vst [vmem:[%s380 + $0x78] sm:$0xff] %v5542
        %s5559 = sand.u32 %s192, 1
        %s5560 = scalar_lea.sflag [#allocation6], %s5559
        %s5561 = sand.u32 %s192, 1
        %s5562 = smul.addr %s5561, 128
        %s5563 = scalar_lea.vmem [#allocation16], %s5562
        // Predicated region
        $region77: #{tpu_custom_call.1} parent=47 // pred_check
          %p5564 = pneg %p202
        $region78: #{tpu_custom_call.1} parent=47 // pred_check_branch
          %5566 = sbr.rel (%p5564) target = $region80
        $region79: #{tpu_custom_call.1} parent=47 // pred_region
          %s5568 = ssub.s32 2048, 2048
          %5569 = vsyncadd %s5560, %s5568
          %s5570 = smul.addr %s32, 16
          %s5571 = smul.addr %s5570, 128
          %s5572 = scalar_lea.hbm %s8, %s5571
          %s5573 = sshll.u32 %s5563, 4
          %s5574 = int_to_ptr.vmem [resolvable:$true] %s5573
          %5579 = dma.vmem_to_hbm [thread:$0]  %s5574, 2048, %s5572, %s5560, 1024, 1024, 64
        $region80: #{tpu_custom_call.1} parent=47 // pred_fallthru
          _
      $region48: #{tpu_custom_call.1} parent=5 // pred_fallthru
        _
      %p5580 = scmp.le.s32.totalorder 2, %s27
      // Predicated region
      $region81: #{tpu_custom_call.1} parent=5 // pred_check
        %p5581 = pneg %p5580
      $region82: #{tpu_custom_call.1} parent=5 // pred_check_branch
        %5583 = sbr.rel (%p5581) target = $region84
      $region83: #{tpu_custom_call.1} parent=5 // pred_region
        %s5584 = ssub.s32 %s27, 2
        // Predicated region
        $region85: #{tpu_custom_call.1} parent=83 // pred_check
          %p5585 = pneg %p208
        $region86: #{tpu_custom_call.1} parent=83 // pred_check_branch
          %5587 = sbr.rel (%p5585) target = $region88
        $region87: #{tpu_custom_call.1} parent=83 // pred_region
          %s5588 = sand.u32 %s193, 1
          %s5589 = scalar_lea.sflag [#allocation6], %s5588
          %s5590 = sand.u32 %s193, 1
          %s5591 = smul.addr %s5590, 128
          %s5592 = scalar_lea.vmem [#allocation16], %s5591
          %5593 = dma.done %s5589, 2048
        $region88: #{tpu_custom_call.1} parent=83 // pred_fallthru
          _
      $region84: #{tpu_custom_call.1} parent=5 // pred_fallthru
        _
    $region6: #{tpu_custom_call.1} parent=1 // loop_footer
      %s31 = sadd.s32 1, %s27
    $region7: #{tpu_custom_call.1} parent=1 // loop_footer_branch
      %26 = sbr.rel target = $region3
    $region8: #{tpu_custom_call.1} parent=1 // loop_exit
      _
    %5594 = vsyncpa [#allocation5], 1
    %s5595 = scalar_lea.sflag [#allocation5], 1
    %5596 = vsyncpa %s5595, 1
    %5597 = vsyncpa [#allocation8], 1
    %5598 = vsyncpa [#allocation11], 1
    %5599 = vsyncpa [#allocation14], 1
    %5600 = vsyncpa [#allocation6], 1
    %s5601 = scalar_lea.sflag [#allocation6], 1
    %5602 = vsyncpa %s5601, 1

</llo_original>
